<compile_context>
chip_gen: v6e
topology: v6e:2x2x1
jax: 0.10.0
libtpu: 0.0.40
codegen_flags: <defaults>
</compile_context>

<pallas_src>
import jax
import jax.numpy as jnp
from jax.experimental import pallas as pl
from jax.experimental.pallas import tpu as pltpu


def _rnn_kernel(lens_ref, x_ref,
                wih_ref, bih_ref,
                whh_f_ref, whh_b_ref,
                w1a_ref, w1b_ref, b1_ref, w2_ref, b2_ref,
                out_ref,
                gxf_scr, gxb_scr, fwd_scr, bwd_scr):
    T, B, H = x_ref.shape          # time-major batch tile
    H3 = 3 * H
    H4 = 4 * H
    DP = out_ref.shape[-1]         # lane-padded output width (128)

    # ---- fused input projection for both directions: one [T*B, H] x [H, 8H] ----
    x_tb = x_ref[...].reshape(T * B, H)
    gx = jnp.dot(x_tb, wih_ref[...], preferred_element_type=jnp.float32) + bih_ref[...]
    gxf_scr[...] = gx[:, :H4].reshape(T, B, H4)
    gxb_scr[...] = gx[:, H4:].reshape(T, B, H4)

    lens = lens_ref[...]           # [B, 1] int32

    def cell(gates_x, h, c, whh):
        # gate layout (repacked in wrapper): i | f | o | g
        gates = gates_x + jnp.dot(h, whh, preferred_element_type=jnp.float32)
        ifo = jax.nn.sigmoid(gates[:, :H3])     # one EUP push for i, f, o
        g = jnp.tanh(gates[:, H3:])             # one EUP push for g
        i = ifo[:, :H]
        f = ifo[:, H:2 * H]
        o = ifo[:, 2 * H:H3]
        c_new = f * c + i * g
        h_new = o * jnp.tanh(c_new)
        return h_new, c_new

    zeros = jnp.zeros((B, H), jnp.float32)

    def body(s, carry):
        h_f, c_f, h_b, c_b = carry
        # ---- forward direction, t = s ----
        hf_new, cf_new = cell(gxf_scr[s], h_f, c_f, whh_f_ref[...])
        vf = s < lens                             # [B, 1] bool
        h_f = jnp.where(vf, hf_new, h_f)
        c_f = jnp.where(vf, cf_new, c_f)
        fwd_scr[s] = jnp.where(vf, hf_new, 0.0)
        # ---- backward direction, t = T-1-s (starts at len-1 from zero state) ----
        tb = T - 1 - s
        hb_new, cb_new = cell(gxb_scr[tb], h_b, c_b, whh_b_ref[...])
        vb = tb < lens
        h_b = jnp.where(vb, hb_new, h_b)
        c_b = jnp.where(vb, cb_new, c_b)
        bwd_scr[tb] = jnp.where(vb, hb_new, 0.0)
        return h_f, c_f, h_b, c_b

    jax.lax.fori_loop(0, T, body, (zeros, zeros, zeros, zeros), unroll=True)

    # ---- MLP head: Linear(2H->H) split into fwd/bwd halves + ReLU + Linear(H->DP) ----
    fwd2 = fwd_scr[...].reshape(T * B, H)
    bwd2 = bwd_scr[...].reshape(T * B, H)
    y = (jnp.dot(fwd2, w1a_ref[...], preferred_element_type=jnp.float32)
         + jnp.dot(bwd2, w1b_ref[...], preferred_element_type=jnp.float32)
         + b1_ref[...])
    y = jnp.maximum(y, 0.0)
    y = jnp.dot(y, w2_ref[...], preferred_element_type=jnp.float32) + b2_ref[...]
    out_ref[...] = y.reshape(T, B, DP)            # lane-dense (DP = 128) store


def rnn_forward(embeddings, lens, params, out_dim):
    """embeddings: [B, T, H] f32, lens: [B] int32. Returns [B, T, out_dim]."""
    B, T, H = embeddings.shape
    BT = 8                                   # batch tile = f32 sublane count
    Bpad = ((B + BT - 1) // BT) * BT
    DP = 128                                 # lane-padded output width
    assert out_dim <= DP

    # --- batch pad (padded rows get len=0 -> zero LSTM output, sliced off) ---
    x = jnp.zeros((Bpad, T, H), jnp.float32).at[:B].set(embeddings.astype(jnp.float32))
    lens_p = jnp.zeros((Bpad,), jnp.int32).at[:B].set(lens.astype(jnp.int32))
    x_tm = jnp.transpose(x, (1, 0, 2))       # time-major [T, Bpad, H] (XLA-side)
    lens2 = lens_p.reshape(Bpad, 1)

    # --- repack PyTorch gate order (i,f,g,o) -> (i,f,o,g) ---
    def reorder(w):                          # first axis is 4H
        i, f, g, o = jnp.split(w, 4, axis=0)
        return jnp.concatenate([i, f, o, g], axis=0)

    wih_f = reorder(params['w_ih_f'])        # [4H, H]
    wih_b = reorder(params['w_ih_b'])
    whh_f = reorder(params['w_hh_f'])
    whh_b = reorder(params['w_hh_b'])
    b_f = reorder(params['b_ih_f'] + params['b_hh_f'])
    b_b = reorder(params['b_ih_b'] + params['b_hh_b'])

    # fused input-projection weight [H, 8H] and bias [1, 8H]
    wih_fb = jnp.concatenate([wih_f.T, wih_b.T], axis=1)
    bih_fb = jnp.concatenate([b_f, b_b]).reshape(1, 8 * H)

    # split MLP first layer to avoid in-kernel concat: w1 is [H, 2H]
    w1 = params['w1']
    w1a = w1[:, :H].T                        # [H, H] fwd half
    w1b = w1[:, H:].T                        # [H, H] bwd half
    b1 = params['b1'].reshape(1, H)

    # lane-pad output projection to 128 columns (sliced back below)
    w2p = jnp.zeros((H, DP), jnp.float32).at[:, :out_dim].set(params['w2'].T)
    b2p = jnp.zeros((1, DP), jnp.float32).at[:, :out_dim].set(params['b2'].reshape(1, out_dim))

    def full_spec(shape):
        return pl.BlockSpec(shape, lambda b, _n=len(shape): (0,) * _n)

    out_tm = pl.pallas_call(
        _rnn_kernel,
        out_shape=jax.ShapeDtypeStruct((T, Bpad, DP), jnp.float32),
        grid_spec=pltpu.PrefetchScalarGridSpec(
            num_scalar_prefetch=0,
            grid=(Bpad // BT,),
            in_specs=[
                pl.BlockSpec((BT, 1), lambda b: (b, 0)),          # lens
                pl.BlockSpec((T, BT, H), lambda b: (0, b, 0)),    # x (time-major)
                full_spec((H, 8 * H)),                            # fused w_ih
                full_spec((1, 8 * H)),                            # fused bias
                full_spec((H, 4 * H)),                            # w_hh fwd
                full_spec((H, 4 * H)),                            # w_hh bwd
                full_spec((H, H)),                                # w1 fwd half
                full_spec((H, H)),                                # w1 bwd half
                full_spec((1, H)),                                # b1
                full_spec((H, DP)),                               # w2 (lane-padded)
                full_spec((1, DP)),                               # b2 (lane-padded)
            ],
            out_specs=pl.BlockSpec((T, BT, DP), lambda b: (0, b, 0)),
            scratch_shapes=[
                pltpu.VMEM((T, BT, 4 * H), jnp.float32),          # pre-projected fwd gates
                pltpu.VMEM((T, BT, 4 * H), jnp.float32),          # pre-projected bwd gates
                pltpu.VMEM((T, BT, H), jnp.float32),              # fwd hidden per step
                pltpu.VMEM((T, BT, H), jnp.float32),              # bwd hidden per step
            ],
        ),
        compiler_params=pltpu.CompilerParams(
            dimension_semantics=("parallel",)),
    )(lens2, x_tm, wih_fb, bih_fb, whh_f.T, whh_b.T, w1a, w1b, b1, w2p, b2p)

    # back to batch_first, drop batch padding and lane padding (XLA-side)
    return jnp.transpose(out_tm, (1, 0, 2))[:B, :, :out_dim]


def _init_params(key, hidden_dim, out_dim):
    # Deterministic init mirroring the module's parameter shapes
    # (nn.LSTM(H, H, bidirectional=True), Linear(2H, H), Linear(H, out_dim)).
    H, D = hidden_dim, out_dim
    k = 1.0 / jnp.sqrt(jnp.float32(H))
    names_shapes = [
        ('w_ih_f', (4 * H, H)), ('w_hh_f', (4 * H, H)),
        ('b_ih_f', (4 * H,)), ('b_hh_f', (4 * H,)),
        ('w_ih_b', (4 * H, H)), ('w_hh_b', (4 * H, H)),
        ('b_ih_b', (4 * H,)), ('b_hh_b', (4 * H,)),
        ('w1', (H, 2 * H)), ('b1', (H,)),
        ('w2', (D, H)), ('b2', (D,)),
    ]
    params = {}
    for name, shape in names_shapes:
        key, sub = jax.random.split(key)
        params[name] = jax.random.uniform(sub, shape, jnp.float32, -k, k)
    return params


if __name__ == "__main__":
    B, T, H, OUT = 2, 8, 32, 16
    key = jax.random.PRNGKey(0)
    k_emb, k_par = jax.random.split(key)

    embeddings = jax.random.normal(k_emb, (B, T, H), jnp.float32)
    lens = jnp.array([T, 5], jnp.int32)      # max(lens) == T (pad_packed total length)
    params = _init_params(k_par, H, OUT)

    out = rnn_forward(embeddings, lens, params, OUT)
    jax.block_until_ready(out)
    assert out.shape == (B, T, OUT)
    print("KERNEL_OK")
</pallas_src>

<mosaic_0001>
module attributes {stable_mosaic.version = 11 : i64} {
  func.func @_rnn_kernel(%arg0: i32, %arg1: memref<8x1xi32, #tpu.memory_space<vmem>>, %arg2: memref<8x8x32xf32, #tpu.memory_space<vmem>>, %arg3: memref<32x256xf32, #tpu.memory_space<vmem>>, %arg4: memref<1x256xf32, #tpu.memory_space<vmem>>, %arg5: memref<32x128xf32, #tpu.memory_space<vmem>>, %arg6: memref<32x128xf32, #tpu.memory_space<vmem>>, %arg7: memref<32x32xf32, #tpu.memory_space<vmem>>, %arg8: memref<32x32xf32, #tpu.memory_space<vmem>>, %arg9: memref<1x32xf32, #tpu.memory_space<vmem>>, %arg10: memref<32x128xf32, #tpu.memory_space<vmem>>, %arg11: memref<1x128xf32, #tpu.memory_space<vmem>>, %arg12: memref<8x8x128xf32, #tpu.memory_space<vmem>>, %arg13: memref<8x8x128xf32, #tpu.memory_space<vmem>>, %arg14: memref<8x8x128xf32, #tpu.memory_space<vmem>>, %arg15: memref<8x8x32xf32, #tpu.memory_space<vmem>>, %arg16: memref<8x8x32xf32, #tpu.memory_space<vmem>>) attributes {dimension_semantics = [#tpu.dimension_semantics<parallel>], iteration_bounds = array<i64: 1>, scalar_prefetch = 0 : i64, scratch_operands = 4 : i64, tpu.core_type = #tpu.core_type<tc>, window_params = [{transform_indices = @transform_0, window_bounds = array<i64: 8, 1>}, {transform_indices = @transform_1, window_bounds = array<i64: 8, 8, 32>}, {pipeline_mode = #tpu.pipeline_mode<synchronous>, transform_indices = @transform_2, window_bounds = array<i64: 32, 256>}, {pipeline_mode = #tpu.pipeline_mode<synchronous>, transform_indices = @transform_3, window_bounds = array<i64: 1, 256>}, {pipeline_mode = #tpu.pipeline_mode<synchronous>, transform_indices = @transform_4, window_bounds = array<i64: 32, 128>}, {pipeline_mode = #tpu.pipeline_mode<synchronous>, transform_indices = @transform_5, window_bounds = array<i64: 32, 128>}, {pipeline_mode = #tpu.pipeline_mode<synchronous>, transform_indices = @transform_6, window_bounds = array<i64: 32, 32>}, {pipeline_mode = #tpu.pipeline_mode<synchronous>, transform_indices = @transform_7, window_bounds = array<i64: 32, 32>}, {pipeline_mode = #tpu.pipeline_mode<synchronous>, transform_indices = @transform_8, window_bounds = array<i64: 1, 32>}, {pipeline_mode = #tpu.pipeline_mode<synchronous>, transform_indices = @transform_9, window_bounds = array<i64: 32, 128>}, {pipeline_mode = #tpu.pipeline_mode<synchronous>, transform_indices = @transform_10, window_bounds = array<i64: 1, 128>}, {transform_indices = @transform_11, window_bounds = array<i64: 8, 8, 128>}]} {
    %c0 = arith.constant 0 : index
    %c0_0 = arith.constant 0 : index
    %c0_1 = arith.constant 0 : index
    %0 = vector.load %arg2[%c0, %c0_0, %c0_1] : memref<8x8x32xf32, #tpu.memory_space<vmem>>, vector<8x8x32xf32>
    %1 = vector.shape_cast %0 : vector<8x8x32xf32> to vector<64x32xf32>
    %c0_2 = arith.constant 0 : index
    %c0_3 = arith.constant 0 : index
    %2 = vector.load %arg3[%c0_2, %c0_3] : memref<32x256xf32, #tpu.memory_space<vmem>>, vector<32x256xf32>
    %cst = arith.constant dense<0.000000e+00> : vector<64x256xf32>
    %3 = tpu.matmul %1, %2, %cst {dimension_numbers = #tpu.dot_dimension_numbers<[1], [0], [0], [1], [0, 0, 1, 1], [], []>} : vector<64x32xf32>, vector<32x256xf32>, vector<64x256xf32> -> vector<64x256xf32>
    %c0_4 = arith.constant 0 : index
    %c0_5 = arith.constant 0 : index
    %4 = vector.load %arg4[%c0_4, %c0_5] : memref<1x256xf32, #tpu.memory_space<vmem>>, vector<1x256xf32>
    %5 = vector.broadcast %4 : vector<1x256xf32> to vector<64x256xf32>
    %6 = arith.addf %3, %5 : vector<64x256xf32>
    %7 = vector.extract_strided_slice %6 {offsets = [0, 0], sizes = [64, 128], strides = [1, 1]} : vector<64x256xf32> to vector<64x128xf32>
    %8 = vector.shape_cast %7 : vector<64x128xf32> to vector<8x8x128xf32>
    %c0_6 = arith.constant 0 : index
    %c0_7 = arith.constant 0 : index
    %c0_8 = arith.constant 0 : index
    %9 = vector.load %arg13[%c0_6, %c0_7, %c0_8] : memref<8x8x128xf32, #tpu.memory_space<vmem>>, vector<8x8x128xf32>
    tpu.vector_store %arg13[%c0_6, %c0_7, %c0_8], %8 {strides = array<i32>} : memref<8x8x128xf32, #tpu.memory_space<vmem>>, vector<8x8x128xf32>,
    %10 = vector.extract_strided_slice %6 {offsets = [0, 128], sizes = [64, 128], strides = [1, 1]} : vector<64x256xf32> to vector<64x128xf32>
    %11 = vector.shape_cast %10 : vector<64x128xf32> to vector<8x8x128xf32>
    %c0_9 = arith.constant 0 : index
    %c0_10 = arith.constant 0 : index
    %c0_11 = arith.constant 0 : index
    %12 = vector.load %arg14[%c0_9, %c0_10, %c0_11] : memref<8x8x128xf32, #tpu.memory_space<vmem>>, vector<8x8x128xf32>
    tpu.vector_store %arg14[%c0_9, %c0_10, %c0_11], %11 {strides = array<i32>} : memref<8x8x128xf32, #tpu.memory_space<vmem>>, vector<8x8x128xf32>,
    %c0_12 = arith.constant 0 : index
    %c0_13 = arith.constant 0 : index
    %13 = vector.load %arg1[%c0_12, %c0_13] : memref<8x1xi32, #tpu.memory_space<vmem>>, vector<8x1xi32>
    %cst_14 = arith.constant 0.000000e+00 : f32
    %14 = vector.broadcast %cst_14 : f32 to vector<8x32xf32>
    %c0_i32 = arith.constant 0 : i32
    %15 = arith.index_cast %c0_i32 : i32 to index
    %c0_15 = arith.constant 0 : index
    %c0_16 = arith.constant 0 : index
    %16 = vector.load %arg13[%15, %c0_15, %c0_16] : memref<8x8x128xf32, #tpu.memory_space<vmem>>, vector<1x8x128xf32>
    %17 = vector.shape_cast %16 : vector<1x8x128xf32> to vector<8x128xf32>
    %c0_17 = arith.constant 0 : index
    %c0_18 = arith.constant 0 : index
    %18 = vector.load %arg5[%c0_17, %c0_18] : memref<32x128xf32, #tpu.memory_space<vmem>>, vector<32x128xf32>
    %cst_19 = arith.constant dense<0.000000e+00> : vector<8x128xf32>
    %19 = tpu.matmul %14, %18, %cst_19 {dimension_numbers = #tpu.dot_dimension_numbers<[1], [0], [0], [1], [0, 0, 1, 1], [], []>} : vector<8x32xf32>, vector<32x128xf32>, vector<8x128xf32> -> vector<8x128xf32>
    %20 = arith.addf %17, %19 : vector<8x128xf32>
    %21 = vector.extract_strided_slice %20 {offsets = [0, 0], sizes = [8, 96], strides = [1, 1]} : vector<8x128xf32> to vector<8x96xf32>
    %22 = arith.negf %21 : vector<8x96xf32>
    %23 = math.exp %22 : vector<8x96xf32>
    %cst_20 = arith.constant 1.000000e+00 : f32
    %24 = vector.broadcast %cst_20 : f32 to vector<8x96xf32>
    %25 = arith.addf %24, %23 : vector<8x96xf32>
    %26 = arith.divf %24, %25 : vector<8x96xf32>
    %27 = vector.extract_strided_slice %20 {offsets = [0, 96], sizes = [8, 32], strides = [1, 1]} : vector<8x128xf32> to vector<8x32xf32>
    %28 = math.tanh %27 : vector<8x32xf32>
    %29 = vector.extract_strided_slice %26 {offsets = [0, 0], sizes = [8, 32], strides = [1, 1]} : vector<8x96xf32> to vector<8x32xf32>
    %30 = vector.extract_strided_slice %26 {offsets = [0, 32], sizes = [8, 32], strides = [1, 1]} : vector<8x96xf32> to vector<8x32xf32>
    %31 = vector.extract_strided_slice %26 {offsets = [0, 64], sizes = [8, 32], strides = [1, 1]} : vector<8x96xf32> to vector<8x32xf32>
    %32 = arith.mulf %30, %14 : vector<8x32xf32>
    %33 = arith.mulf %29, %28 : vector<8x32xf32>
    %34 = arith.addf %32, %33 : vector<8x32xf32>
    %35 = math.tanh %34 : vector<8x32xf32>
    %36 = arith.mulf %31, %35 : vector<8x32xf32>
    %37 = vector.broadcast %c0_i32 : i32 to vector<8x1xi32>
    %38 = arith.cmpi slt, %37, %13 : vector<8x1xi32>
    %39 = vector.shape_cast %38 : vector<8x1xi1> to vector<8x1xi1>
    %40 = vector.broadcast %39 : vector<8x1xi1> to vector<8x32xi1>
    %41 = arith.select %40, %36, %14 : vector<8x32xi1>, vector<8x32xf32>
    %42 = vector.shape_cast %38 : vector<8x1xi1> to vector<8x1xi1>
    %43 = vector.broadcast %42 : vector<8x1xi1> to vector<8x32xi1>
    %44 = arith.select %43, %34, %14 : vector<8x32xi1>, vector<8x32xf32>
    %cst_21 = arith.constant 0.000000e+00 : f32
    %45 = vector.shape_cast %38 : vector<8x1xi1> to vector<8x1xi1>
    %46 = vector.broadcast %45 : vector<8x1xi1> to vector<8x32xi1>
    %47 = vector.broadcast %cst_21 : f32 to vector<8x32xf32>
    %48 = arith.select %46, %36, %47 : vector<8x32xi1>, vector<8x32xf32>
    %49 = arith.index_cast %c0_i32 : i32 to index
    %c0_22 = arith.constant 0 : index
    %c0_23 = arith.constant 0 : index
    %50 = vector.load %arg15[%49, %c0_22, %c0_23] : memref<8x8x32xf32, #tpu.memory_space<vmem>>, vector<1x8x32xf32>
    %51 = vector.shape_cast %50 : vector<1x8x32xf32> to vector<8x32xf32>
    %52 = vector.shape_cast %48 : vector<8x32xf32> to vector<1x8x32xf32>
    tpu.vector_store %arg15[%49, %c0_22, %c0_23], %52 {strides = array<i32>} : memref<8x8x32xf32, #tpu.memory_space<vmem>>, vector<1x8x32xf32>,
    %c7_i32 = arith.constant 7 : i32
    %53 = arith.subi %c7_i32, %c0_i32 : i32
    %54 = arith.index_cast %53 : i32 to index
    %c0_24 = arith.constant 0 : index
    %c0_25 = arith.constant 0 : index
    %55 = vector.load %arg14[%54, %c0_24, %c0_25] : memref<8x8x128xf32, #tpu.memory_space<vmem>>, vector<1x8x128xf32>
    %56 = vector.shape_cast %55 : vector<1x8x128xf32> to vector<8x128xf32>
    %c0_26 = arith.constant 0 : index
    %c0_27 = arith.constant 0 : index
    %57 = vector.load %arg6[%c0_26, %c0_27] : memref<32x128xf32, #tpu.memory_space<vmem>>, vector<32x128xf32>
    %cst_28 = arith.constant dense<0.000000e+00> : vector<8x128xf32>
    %58 = tpu.matmul %14, %57, %cst_28 {dimension_numbers = #tpu.dot_dimension_numbers<[1], [0], [0], [1], [0, 0, 1, 1], [], []>} : vector<8x32xf32>, vector<32x128xf32>, vector<8x128xf32> -> vector<8x128xf32>
    %59 = arith.addf %56, %58 : vector<8x128xf32>
    %60 = vector.extract_strided_slice %59 {offsets = [0, 0], sizes = [8, 96], strides = [1, 1]} : vector<8x128xf32> to vector<8x96xf32>
    %61 = arith.negf %60 : vector<8x96xf32>
    %62 = math.exp %61 : vector<8x96xf32>
    %cst_29 = arith.constant 1.000000e+00 : f32
    %63 = vector.broadcast %cst_29 : f32 to vector<8x96xf32>
    %64 = arith.addf %63, %62 : vector<8x96xf32>
    %65 = arith.divf %63, %64 : vector<8x96xf32>
    %66 = vector.extract_strided_slice %59 {offsets = [0, 96], sizes = [8, 32], strides = [1, 1]} : vector<8x128xf32> to vector<8x32xf32>
    %67 = math.tanh %66 : vector<8x32xf32>
    %68 = vector.extract_strided_slice %65 {offsets = [0, 0], sizes = [8, 32], strides = [1, 1]} : vector<8x96xf32> to vector<8x32xf32>
    %69 = vector.extract_strided_slice %65 {offsets = [0, 32], sizes = [8, 32], strides = [1, 1]} : vector<8x96xf32> to vector<8x32xf32>
    %70 = vector.extract_strided_slice %65 {offsets = [0, 64], sizes = [8, 32], strides = [1, 1]} : vector<8x96xf32> to vector<8x32xf32>
    %71 = arith.mulf %69, %14 : vector<8x32xf32>
    %72 = arith.mulf %68, %67 : vector<8x32xf32>
    %73 = arith.addf %71, %72 : vector<8x32xf32>
    %74 = math.tanh %73 : vector<8x32xf32>
    %75 = arith.mulf %70, %74 : vector<8x32xf32>
    %76 = vector.broadcast %53 : i32 to vector<8x1xi32>
    %77 = arith.cmpi slt, %76, %13 : vector<8x1xi32>
    %78 = vector.shape_cast %77 : vector<8x1xi1> to vector<8x1xi1>
    %79 = vector.broadcast %78 : vector<8x1xi1> to vector<8x32xi1>
    %80 = arith.select %79, %75, %14 : vector<8x32xi1>, vector<8x32xf32>
    %81 = vector.shape_cast %77 : vector<8x1xi1> to vector<8x1xi1>
    %82 = vector.broadcast %81 : vector<8x1xi1> to vector<8x32xi1>
    %83 = arith.select %82, %73, %14 : vector<8x32xi1>, vector<8x32xf32>
    %cst_30 = arith.constant 0.000000e+00 : f32
    %84 = vector.shape_cast %77 : vector<8x1xi1> to vector<8x1xi1>
    %85 = vector.broadcast %84 : vector<8x1xi1> to vector<8x32xi1>
    %86 = vector.broadcast %cst_30 : f32 to vector<8x32xf32>
    %87 = arith.select %85, %75, %86 : vector<8x32xi1>, vector<8x32xf32>
    %88 = arith.index_cast %53 : i32 to index
    %c0_31 = arith.constant 0 : index
    %c0_32 = arith.constant 0 : index
    %89 = vector.load %arg16[%88, %c0_31, %c0_32] : memref<8x8x32xf32, #tpu.memory_space<vmem>>, vector<1x8x32xf32>
    %90 = vector.shape_cast %89 : vector<1x8x32xf32> to vector<8x32xf32>
    %91 = vector.shape_cast %87 : vector<8x32xf32> to vector<1x8x32xf32>
    tpu.vector_store %arg16[%88, %c0_31, %c0_32], %91 {strides = array<i32>} : memref<8x8x32xf32, #tpu.memory_space<vmem>>, vector<1x8x32xf32>,
    %c1_i32 = arith.constant 1 : i32
    %92 = arith.index_cast %c1_i32 : i32 to index
    %c0_33 = arith.constant 0 : index
    %c0_34 = arith.constant 0 : index
    %93 = vector.load %arg13[%92, %c0_33, %c0_34] : memref<8x8x128xf32, #tpu.memory_space<vmem>>, vector<1x8x128xf32>
    %94 = vector.shape_cast %93 : vector<1x8x128xf32> to vector<8x128xf32>
    %c0_35 = arith.constant 0 : index
    %c0_36 = arith.constant 0 : index
    %95 = vector.load %arg5[%c0_35, %c0_36] : memref<32x128xf32, #tpu.memory_space<vmem>>, vector<32x128xf32>
    %cst_37 = arith.constant dense<0.000000e+00> : vector<8x128xf32>
    %96 = tpu.matmul %41, %95, %cst_37 {dimension_numbers = #tpu.dot_dimension_numbers<[1], [0], [0], [1], [0, 0, 1, 1], [], []>} : vector<8x32xf32>, vector<32x128xf32>, vector<8x128xf32> -> vector<8x128xf32>
    %97 = arith.addf %94, %96 : vector<8x128xf32>
    %98 = vector.extract_strided_slice %97 {offsets = [0, 0], sizes = [8, 96], strides = [1, 1]} : vector<8x128xf32> to vector<8x96xf32>
    %99 = arith.negf %98 : vector<8x96xf32>
    %100 = math.exp %99 : vector<8x96xf32>
    %cst_38 = arith.constant 1.000000e+00 : f32
    %101 = vector.broadcast %cst_38 : f32 to vector<8x96xf32>
    %102 = arith.addf %101, %100 : vector<8x96xf32>
    %103 = arith.divf %101, %102 : vector<8x96xf32>
    %104 = vector.extract_strided_slice %97 {offsets = [0, 96], sizes = [8, 32], strides = [1, 1]} : vector<8x128xf32> to vector<8x32xf32>
    %105 = math.tanh %104 : vector<8x32xf32>
    %106 = vector.extract_strided_slice %103 {offsets = [0, 0], sizes = [8, 32], strides = [1, 1]} : vector<8x96xf32> to vector<8x32xf32>
    %107 = vector.extract_strided_slice %103 {offsets = [0, 32], sizes = [8, 32], strides = [1, 1]} : vector<8x96xf32> to vector<8x32xf32>
    %108 = vector.extract_strided_slice %103 {offsets = [0, 64], sizes = [8, 32], strides = [1, 1]} : vector<8x96xf32> to vector<8x32xf32>
    %109 = arith.mulf %107, %44 : vector<8x32xf32>
    %110 = arith.mulf %106, %105 : vector<8x32xf32>
    %111 = arith.addf %109, %110 : vector<8x32xf32>
    %112 = math.tanh %111 : vector<8x32xf32>
    %113 = arith.mulf %108, %112 : vector<8x32xf32>
    %114 = vector.broadcast %c1_i32 : i32 to vector<8x1xi32>
    %115 = arith.cmpi slt, %114, %13 : vector<8x1xi32>
    %116 = vector.shape_cast %115 : vector<8x1xi1> to vector<8x1xi1>
    %117 = vector.broadcast %116 : vector<8x1xi1> to vector<8x32xi1>
    %118 = arith.select %117, %113, %41 : vector<8x32xi1>, vector<8x32xf32>
    %119 = vector.shape_cast %115 : vector<8x1xi1> to vector<8x1xi1>
    %120 = vector.broadcast %119 : vector<8x1xi1> to vector<8x32xi1>
    %121 = arith.select %120, %111, %44 : vector<8x32xi1>, vector<8x32xf32>
    %cst_39 = arith.constant 0.000000e+00 : f32
    %122 = vector.shape_cast %115 : vector<8x1xi1> to vector<8x1xi1>
    %123 = vector.broadcast %122 : vector<8x1xi1> to vector<8x32xi1>
    %124 = vector.broadcast %cst_39 : f32 to vector<8x32xf32>
    %125 = arith.select %123, %113, %124 : vector<8x32xi1>, vector<8x32xf32>
    %126 = arith.index_cast %c1_i32 : i32 to index
    %c0_40 = arith.constant 0 : index
    %c0_41 = arith.constant 0 : index
    %127 = vector.load %arg15[%126, %c0_40, %c0_41] : memref<8x8x32xf32, #tpu.memory_space<vmem>>, vector<1x8x32xf32>
    %128 = vector.shape_cast %127 : vector<1x8x32xf32> to vector<8x32xf32>
    %129 = vector.shape_cast %125 : vector<8x32xf32> to vector<1x8x32xf32>
    tpu.vector_store %arg15[%126, %c0_40, %c0_41], %129 {strides = array<i32>} : memref<8x8x32xf32, #tpu.memory_space<vmem>>, vector<1x8x32xf32>,
    %c7_i32_42 = arith.constant 7 : i32
    %130 = arith.subi %c7_i32_42, %c1_i32 : i32
    %131 = arith.index_cast %130 : i32 to index
    %c0_43 = arith.constant 0 : index
    %c0_44 = arith.constant 0 : index
    %132 = vector.load %arg14[%131, %c0_43, %c0_44] : memref<8x8x128xf32, #tpu.memory_space<vmem>>, vector<1x8x128xf32>
    %133 = vector.shape_cast %132 : vector<1x8x128xf32> to vector<8x128xf32>
    %c0_45 = arith.constant 0 : index
    %c0_46 = arith.constant 0 : index
    %134 = vector.load %arg6[%c0_45, %c0_46] : memref<32x128xf32, #tpu.memory_space<vmem>>, vector<32x128xf32>
    %cst_47 = arith.constant dense<0.000000e+00> : vector<8x128xf32>
    %135 = tpu.matmul %80, %134, %cst_47 {dimension_numbers = #tpu.dot_dimension_numbers<[1], [0], [0], [1], [0, 0, 1, 1], [], []>} : vector<8x32xf32>, vector<32x128xf32>, vector<8x128xf32> -> vector<8x128xf32>
    %136 = arith.addf %133, %135 : vector<8x128xf32>
    %137 = vector.extract_strided_slice %136 {offsets = [0, 0], sizes = [8, 96], strides = [1, 1]} : vector<8x128xf32> to vector<8x96xf32>
    %138 = arith.negf %137 : vector<8x96xf32>
    %139 = math.exp %138 : vector<8x96xf32>
    %cst_48 = arith.constant 1.000000e+00 : f32
    %140 = vector.broadcast %cst_48 : f32 to vector<8x96xf32>
    %141 = arith.addf %140, %139 : vector<8x96xf32>
    %142 = arith.divf %140, %141 : vector<8x96xf32>
    %143 = vector.extract_strided_slice %136 {offsets = [0, 96], sizes = [8, 32], strides = [1, 1]} : vector<8x128xf32> to vector<8x32xf32>
    %144 = math.tanh %143 : vector<8x32xf32>
    %145 = vector.extract_strided_slice %142 {offsets = [0, 0], sizes = [8, 32], strides = [1, 1]} : vector<8x96xf32> to vector<8x32xf32>
    %146 = vector.extract_strided_slice %142 {offsets = [0, 32], sizes = [8, 32], strides = [1, 1]} : vector<8x96xf32> to vector<8x32xf32>
    %147 = vector.extract_strided_slice %142 {offsets = [0, 64], sizes = [8, 32], strides = [1, 1]} : vector<8x96xf32> to vector<8x32xf32>
    %148 = arith.mulf %146, %83 : vector<8x32xf32>
    %149 = arith.mulf %145, %144 : vector<8x32xf32>
    %150 = arith.addf %148, %149 : vector<8x32xf32>
    %151 = math.tanh %150 : vector<8x32xf32>
    %152 = arith.mulf %147, %151 : vector<8x32xf32>
    %153 = vector.broadcast %130 : i32 to vector<8x1xi32>
    %154 = arith.cmpi slt, %153, %13 : vector<8x1xi32>
    %155 = vector.shape_cast %154 : vector<8x1xi1> to vector<8x1xi1>
    %156 = vector.broadcast %155 : vector<8x1xi1> to vector<8x32xi1>
    %157 = arith.select %156, %152, %80 : vector<8x32xi1>, vector<8x32xf32>
    %158 = vector.shape_cast %154 : vector<8x1xi1> to vector<8x1xi1>
    %159 = vector.broadcast %158 : vector<8x1xi1> to vector<8x32xi1>
    %160 = arith.select %159, %150, %83 : vector<8x32xi1>, vector<8x32xf32>
    %cst_49 = arith.constant 0.000000e+00 : f32
    %161 = vector.shape_cast %154 : vector<8x1xi1> to vector<8x1xi1>
    %162 = vector.broadcast %161 : vector<8x1xi1> to vector<8x32xi1>
    %163 = vector.broadcast %cst_49 : f32 to vector<8x32xf32>
    %164 = arith.select %162, %152, %163 : vector<8x32xi1>, vector<8x32xf32>
    %165 = arith.index_cast %130 : i32 to index
    %c0_50 = arith.constant 0 : index
    %c0_51 = arith.constant 0 : index
    %166 = vector.load %arg16[%165, %c0_50, %c0_51] : memref<8x8x32xf32, #tpu.memory_space<vmem>>, vector<1x8x32xf32>
    %167 = vector.shape_cast %166 : vector<1x8x32xf32> to vector<8x32xf32>
    %168 = vector.shape_cast %164 : vector<8x32xf32> to vector<1x8x32xf32>
    tpu.vector_store %arg16[%165, %c0_50, %c0_51], %168 {strides = array<i32>} : memref<8x8x32xf32, #tpu.memory_space<vmem>>, vector<1x8x32xf32>,
    %c2_i32 = arith.constant 2 : i32
    %169 = arith.index_cast %c2_i32 : i32 to index
    %c0_52 = arith.constant 0 : index
    %c0_53 = arith.constant 0 : index
    %170 = vector.load %arg13[%169, %c0_52, %c0_53] : memref<8x8x128xf32, #tpu.memory_space<vmem>>, vector<1x8x128xf32>
    %171 = vector.shape_cast %170 : vector<1x8x128xf32> to vector<8x128xf32>
    %c0_54 = arith.constant 0 : index
    %c0_55 = arith.constant 0 : index
    %172 = vector.load %arg5[%c0_54, %c0_55] : memref<32x128xf32, #tpu.memory_space<vmem>>, vector<32x128xf32>
    %cst_56 = arith.constant dense<0.000000e+00> : vector<8x128xf32>
    %173 = tpu.matmul %118, %172, %cst_56 {dimension_numbers = #tpu.dot_dimension_numbers<[1], [0], [0], [1], [0, 0, 1, 1], [], []>} : vector<8x32xf32>, vector<32x128xf32>, vector<8x128xf32> -> vector<8x128xf32>
    %174 = arith.addf %171, %173 : vector<8x128xf32>
    %175 = vector.extract_strided_slice %174 {offsets = [0, 0], sizes = [8, 96], strides = [1, 1]} : vector<8x128xf32> to vector<8x96xf32>
    %176 = arith.negf %175 : vector<8x96xf32>
    %177 = math.exp %176 : vector<8x96xf32>
    %cst_57 = arith.constant 1.000000e+00 : f32
    %178 = vector.broadcast %cst_57 : f32 to vector<8x96xf32>
    %179 = arith.addf %178, %177 : vector<8x96xf32>
    %180 = arith.divf %178, %179 : vector<8x96xf32>
    %181 = vector.extract_strided_slice %174 {offsets = [0, 96], sizes = [8, 32], strides = [1, 1]} : vector<8x128xf32> to vector<8x32xf32>
    %182 = math.tanh %181 : vector<8x32xf32>
    %183 = vector.extract_strided_slice %180 {offsets = [0, 0], sizes = [8, 32], strides = [1, 1]} : vector<8x96xf32> to vector<8x32xf32>
    %184 = vector.extract_strided_slice %180 {offsets = [0, 32], sizes = [8, 32], strides = [1, 1]} : vector<8x96xf32> to vector<8x32xf32>
    %185 = vector.extract_strided_slice %180 {offsets = [0, 64], sizes = [8, 32], strides = [1, 1]} : vector<8x96xf32> to vector<8x32xf32>
    %186 = arith.mulf %184, %121 : vector<8x32xf32>
    %187 = arith.mulf %183, %182 : vector<8x32xf32>
    %188 = arith.addf %186, %187 : vector<8x32xf32>
    %189 = math.tanh %188 : vector<8x32xf32>
    %190 = arith.mulf %185, %189 : vector<8x32xf32>
    %191 = vector.broadcast %c2_i32 : i32 to vector<8x1xi32>
    %192 = arith.cmpi slt, %191, %13 : vector<8x1xi32>
    %193 = vector.shape_cast %192 : vector<8x1xi1> to vector<8x1xi1>
    %194 = vector.broadcast %193 : vector<8x1xi1> to vector<8x32xi1>
    %195 = arith.select %194, %190, %118 : vector<8x32xi1>, vector<8x32xf32>
    %196 = vector.shape_cast %192 : vector<8x1xi1> to vector<8x1xi1>
    %197 = vector.broadcast %196 : vector<8x1xi1> to vector<8x32xi1>
    %198 = arith.select %197, %188, %121 : vector<8x32xi1>, vector<8x32xf32>
    %cst_58 = arith.constant 0.000000e+00 : f32
    %199 = vector.shape_cast %192 : vector<8x1xi1> to vector<8x1xi1>
    %200 = vector.broadcast %199 : vector<8x1xi1> to vector<8x32xi1>
    %201 = vector.broadcast %cst_58 : f32 to vector<8x32xf32>
    %202 = arith.select %200, %190, %201 : vector<8x32xi1>, vector<8x32xf32>
    %203 = arith.index_cast %c2_i32 : i32 to index
    %c0_59 = arith.constant 0 : index
    %c0_60 = arith.constant 0 : index
    %204 = vector.load %arg15[%203, %c0_59, %c0_60] : memref<8x8x32xf32, #tpu.memory_space<vmem>>, vector<1x8x32xf32>
    %205 = vector.shape_cast %204 : vector<1x8x32xf32> to vector<8x32xf32>
    %206 = vector.shape_cast %202 : vector<8x32xf32> to vector<1x8x32xf32>
    tpu.vector_store %arg15[%203, %c0_59, %c0_60], %206 {strides = array<i32>} : memref<8x8x32xf32, #tpu.memory_space<vmem>>, vector<1x8x32xf32>,
    %c7_i32_61 = arith.constant 7 : i32
    %207 = arith.subi %c7_i32_61, %c2_i32 : i32
    %208 = arith.index_cast %207 : i32 to index
    %c0_62 = arith.constant 0 : index
    %c0_63 = arith.constant 0 : index
    %209 = vector.load %arg14[%208, %c0_62, %c0_63] : memref<8x8x128xf32, #tpu.memory_space<vmem>>, vector<1x8x128xf32>
    %210 = vector.shape_cast %209 : vector<1x8x128xf32> to vector<8x128xf32>
    %c0_64 = arith.constant 0 : index
    %c0_65 = arith.constant 0 : index
    %211 = vector.load %arg6[%c0_64, %c0_65] : memref<32x128xf32, #tpu.memory_space<vmem>>, vector<32x128xf32>
    %cst_66 = arith.constant dense<0.000000e+00> : vector<8x128xf32>
    %212 = tpu.matmul %157, %211, %cst_66 {dimension_numbers = #tpu.dot_dimension_numbers<[1], [0], [0], [1], [0, 0, 1, 1], [], []>} : vector<8x32xf32>, vector<32x128xf32>, vector<8x128xf32> -> vector<8x128xf32>
    %213 = arith.addf %210, %212 : vector<8x128xf32>
    %214 = vector.extract_strided_slice %213 {offsets = [0, 0], sizes = [8, 96], strides = [1, 1]} : vector<8x128xf32> to vector<8x96xf32>
    %215 = arith.negf %214 : vector<8x96xf32>
    %216 = math.exp %215 : vector<8x96xf32>
    %cst_67 = arith.constant 1.000000e+00 : f32
    %217 = vector.broadcast %cst_67 : f32 to vector<8x96xf32>
    %218 = arith.addf %217, %216 : vector<8x96xf32>
    %219 = arith.divf %217, %218 : vector<8x96xf32>
    %220 = vector.extract_strided_slice %213 {offsets = [0, 96], sizes = [8, 32], strides = [1, 1]} : vector<8x128xf32> to vector<8x32xf32>
    %221 = math.tanh %220 : vector<8x32xf32>
    %222 = vector.extract_strided_slice %219 {offsets = [0, 0], sizes = [8, 32], strides = [1, 1]} : vector<8x96xf32> to vector<8x32xf32>
    %223 = vector.extract_strided_slice %219 {offsets = [0, 32], sizes = [8, 32], strides = [1, 1]} : vector<8x96xf32> to vector<8x32xf32>
    %224 = vector.extract_strided_slice %219 {offsets = [0, 64], sizes = [8, 32], strides = [1, 1]} : vector<8x96xf32> to vector<8x32xf32>
    %225 = arith.mulf %223, %160 : vector<8x32xf32>
    %226 = arith.mulf %222, %221 : vector<8x32xf32>
    %227 = arith.addf %225, %226 : vector<8x32xf32>
    %228 = math.tanh %227 : vector<8x32xf32>
    %229 = arith.mulf %224, %228 : vector<8x32xf32>
    %230 = vector.broadcast %207 : i32 to vector<8x1xi32>
    %231 = arith.cmpi slt, %230, %13 : vector<8x1xi32>
    %232 = vector.shape_cast %231 : vector<8x1xi1> to vector<8x1xi1>
    %233 = vector.broadcast %232 : vector<8x1xi1> to vector<8x32xi1>
    %234 = arith.select %233, %229, %157 : vector<8x32xi1>, vector<8x32xf32>
    %235 = vector.shape_cast %231 : vector<8x1xi1> to vector<8x1xi1>
    %236 = vector.broadcast %235 : vector<8x1xi1> to vector<8x32xi1>
    %237 = arith.select %236, %227, %160 : vector<8x32xi1>, vector<8x32xf32>
    %cst_68 = arith.constant 0.000000e+00 : f32
    %238 = vector.shape_cast %231 : vector<8x1xi1> to vector<8x1xi1>
    %239 = vector.broadcast %238 : vector<8x1xi1> to vector<8x32xi1>
    %240 = vector.broadcast %cst_68 : f32 to vector<8x32xf32>
    %241 = arith.select %239, %229, %240 : vector<8x32xi1>, vector<8x32xf32>
    %242 = arith.index_cast %207 : i32 to index
    %c0_69 = arith.constant 0 : index
    %c0_70 = arith.constant 0 : index
    %243 = vector.load %arg16[%242, %c0_69, %c0_70] : memref<8x8x32xf32, #tpu.memory_space<vmem>>, vector<1x8x32xf32>
    %244 = vector.shape_cast %243 : vector<1x8x32xf32> to vector<8x32xf32>
    %245 = vector.shape_cast %241 : vector<8x32xf32> to vector<1x8x32xf32>
    tpu.vector_store %arg16[%242, %c0_69, %c0_70], %245 {strides = array<i32>} : memref<8x8x32xf32, #tpu.memory_space<vmem>>, vector<1x8x32xf32>,
    %c3_i32 = arith.constant 3 : i32
    %246 = arith.index_cast %c3_i32 : i32 to index
    %c0_71 = arith.constant 0 : index
    %c0_72 = arith.constant 0 : index
    %247 = vector.load %arg13[%246, %c0_71, %c0_72] : memref<8x8x128xf32, #tpu.memory_space<vmem>>, vector<1x8x128xf32>
    %248 = vector.shape_cast %247 : vector<1x8x128xf32> to vector<8x128xf32>
    %c0_73 = arith.constant 0 : index
    %c0_74 = arith.constant 0 : index
    %249 = vector.load %arg5[%c0_73, %c0_74] : memref<32x128xf32, #tpu.memory_space<vmem>>, vector<32x128xf32>
    %cst_75 = arith.constant dense<0.000000e+00> : vector<8x128xf32>
    %250 = tpu.matmul %195, %249, %cst_75 {dimension_numbers = #tpu.dot_dimension_numbers<[1], [0], [0], [1], [0, 0, 1, 1], [], []>} : vector<8x32xf32>, vector<32x128xf32>, vector<8x128xf32> -> vector<8x128xf32>
    %251 = arith.addf %248, %250 : vector<8x128xf32>
    %252 = vector.extract_strided_slice %251 {offsets = [0, 0], sizes = [8, 96], strides = [1, 1]} : vector<8x128xf32> to vector<8x96xf32>
    %253 = arith.negf %252 : vector<8x96xf32>
    %254 = math.exp %253 : vector<8x96xf32>
    %cst_76 = arith.constant 1.000000e+00 : f32
    %255 = vector.broadcast %cst_76 : f32 to vector<8x96xf32>
    %256 = arith.addf %255, %254 : vector<8x96xf32>
    %257 = arith.divf %255, %256 : vector<8x96xf32>
    %258 = vector.extract_strided_slice %251 {offsets = [0, 96], sizes = [8, 32], strides = [1, 1]} : vector<8x128xf32> to vector<8x32xf32>
    %259 = math.tanh %258 : vector<8x32xf32>
    %260 = vector.extract_strided_slice %257 {offsets = [0, 0], sizes = [8, 32], strides = [1, 1]} : vector<8x96xf32> to vector<8x32xf32>
    %261 = vector.extract_strided_slice %257 {offsets = [0, 32], sizes = [8, 32], strides = [1, 1]} : vector<8x96xf32> to vector<8x32xf32>
    %262 = vector.extract_strided_slice %257 {offsets = [0, 64], sizes = [8, 32], strides = [1, 1]} : vector<8x96xf32> to vector<8x32xf32>
    %263 = arith.mulf %261, %198 : vector<8x32xf32>
    %264 = arith.mulf %260, %259 : vector<8x32xf32>
    %265 = arith.addf %263, %264 : vector<8x32xf32>
    %266 = math.tanh %265 : vector<8x32xf32>
    %267 = arith.mulf %262, %266 : vector<8x32xf32>
    %268 = vector.broadcast %c3_i32 : i32 to vector<8x1xi32>
    %269 = arith.cmpi slt, %268, %13 : vector<8x1xi32>
    %270 = vector.shape_cast %269 : vector<8x1xi1> to vector<8x1xi1>
    %271 = vector.broadcast %270 : vector<8x1xi1> to vector<8x32xi1>
    %272 = arith.select %271, %267, %195 : vector<8x32xi1>, vector<8x32xf32>
    %273 = vector.shape_cast %269 : vector<8x1xi1> to vector<8x1xi1>
    %274 = vector.broadcast %273 : vector<8x1xi1> to vector<8x32xi1>
    %275 = arith.select %274, %265, %198 : vector<8x32xi1>, vector<8x32xf32>
    %cst_77 = arith.constant 0.000000e+00 : f32
    %276 = vector.shape_cast %269 : vector<8x1xi1> to vector<8x1xi1>
    %277 = vector.broadcast %276 : vector<8x1xi1> to vector<8x32xi1>
    %278 = vector.broadcast %cst_77 : f32 to vector<8x32xf32>
    %279 = arith.select %277, %267, %278 : vector<8x32xi1>, vector<8x32xf32>
    %280 = arith.index_cast %c3_i32 : i32 to index
    %c0_78 = arith.constant 0 : index
    %c0_79 = arith.constant 0 : index
    %281 = vector.load %arg15[%280, %c0_78, %c0_79] : memref<8x8x32xf32, #tpu.memory_space<vmem>>, vector<1x8x32xf32>
    %282 = vector.shape_cast %281 : vector<1x8x32xf32> to vector<8x32xf32>
    %283 = vector.shape_cast %279 : vector<8x32xf32> to vector<1x8x32xf32>
    tpu.vector_store %arg15[%280, %c0_78, %c0_79], %283 {strides = array<i32>} : memref<8x8x32xf32, #tpu.memory_space<vmem>>, vector<1x8x32xf32>,
    %c7_i32_80 = arith.constant 7 : i32
    %284 = arith.subi %c7_i32_80, %c3_i32 : i32
    %285 = arith.index_cast %284 : i32 to index
    %c0_81 = arith.constant 0 : index
    %c0_82 = arith.constant 0 : index
    %286 = vector.load %arg14[%285, %c0_81, %c0_82] : memref<8x8x128xf32, #tpu.memory_space<vmem>>, vector<1x8x128xf32>
    %287 = vector.shape_cast %286 : vector<1x8x128xf32> to vector<8x128xf32>
    %c0_83 = arith.constant 0 : index
    %c0_84 = arith.constant 0 : index
    %288 = vector.load %arg6[%c0_83, %c0_84] : memref<32x128xf32, #tpu.memory_space<vmem>>, vector<32x128xf32>
    %cst_85 = arith.constant dense<0.000000e+00> : vector<8x128xf32>
    %289 = tpu.matmul %234, %288, %cst_85 {dimension_numbers = #tpu.dot_dimension_numbers<[1], [0], [0], [1], [0, 0, 1, 1], [], []>} : vector<8x32xf32>, vector<32x128xf32>, vector<8x128xf32> -> vector<8x128xf32>
    %290 = arith.addf %287, %289 : vector<8x128xf32>
    %291 = vector.extract_strided_slice %290 {offsets = [0, 0], sizes = [8, 96], strides = [1, 1]} : vector<8x128xf32> to vector<8x96xf32>
    %292 = arith.negf %291 : vector<8x96xf32>
    %293 = math.exp %292 : vector<8x96xf32>
    %cst_86 = arith.constant 1.000000e+00 : f32
    %294 = vector.broadcast %cst_86 : f32 to vector<8x96xf32>
    %295 = arith.addf %294, %293 : vector<8x96xf32>
    %296 = arith.divf %294, %295 : vector<8x96xf32>
    %297 = vector.extract_strided_slice %290 {offsets = [0, 96], sizes = [8, 32], strides = [1, 1]} : vector<8x128xf32> to vector<8x32xf32>
    %298 = math.tanh %297 : vector<8x32xf32>
    %299 = vector.extract_strided_slice %296 {offsets = [0, 0], sizes = [8, 32], strides = [1, 1]} : vector<8x96xf32> to vector<8x32xf32>
    %300 = vector.extract_strided_slice %296 {offsets = [0, 32], sizes = [8, 32], strides = [1, 1]} : vector<8x96xf32> to vector<8x32xf32>
    %301 = vector.extract_strided_slice %296 {offsets = [0, 64], sizes = [8, 32], strides = [1, 1]} : vector<8x96xf32> to vector<8x32xf32>
    %302 = arith.mulf %300, %237 : vector<8x32xf32>
    %303 = arith.mulf %299, %298 : vector<8x32xf32>
    %304 = arith.addf %302, %303 : vector<8x32xf32>
    %305 = math.tanh %304 : vector<8x32xf32>
    %306 = arith.mulf %301, %305 : vector<8x32xf32>
    %307 = vector.broadcast %284 : i32 to vector<8x1xi32>
    %308 = arith.cmpi slt, %307, %13 : vector<8x1xi32>
    %309 = vector.shape_cast %308 : vector<8x1xi1> to vector<8x1xi1>
    %310 = vector.broadcast %309 : vector<8x1xi1> to vector<8x32xi1>
    %311 = arith.select %310, %306, %234 : vector<8x32xi1>, vector<8x32xf32>
    %312 = vector.shape_cast %308 : vector<8x1xi1> to vector<8x1xi1>
    %313 = vector.broadcast %312 : vector<8x1xi1> to vector<8x32xi1>
    %314 = arith.select %313, %304, %237 : vector<8x32xi1>, vector<8x32xf32>
    %cst_87 = arith.constant 0.000000e+00 : f32
    %315 = vector.shape_cast %308 : vector<8x1xi1> to vector<8x1xi1>
    %316 = vector.broadcast %315 : vector<8x1xi1> to vector<8x32xi1>
    %317 = vector.broadcast %cst_87 : f32 to vector<8x32xf32>
    %318 = arith.select %316, %306, %317 : vector<8x32xi1>, vector<8x32xf32>
    %319 = arith.index_cast %284 : i32 to index
    %c0_88 = arith.constant 0 : index
    %c0_89 = arith.constant 0 : index
    %320 = vector.load %arg16[%319, %c0_88, %c0_89] : memref<8x8x32xf32, #tpu.memory_space<vmem>>, vector<1x8x32xf32>
    %321 = vector.shape_cast %320 : vector<1x8x32xf32> to vector<8x32xf32>
    %322 = vector.shape_cast %318 : vector<8x32xf32> to vector<1x8x32xf32>
    tpu.vector_store %arg16[%319, %c0_88, %c0_89], %322 {strides = array<i32>} : memref<8x8x32xf32, #tpu.memory_space<vmem>>, vector<1x8x32xf32>,
    %c4_i32 = arith.constant 4 : i32
    %323 = arith.index_cast %c4_i32 : i32 to index
    %c0_90 = arith.constant 0 : index
    %c0_91 = arith.constant 0 : index
    %324 = vector.load %arg13[%323, %c0_90, %c0_91] : memref<8x8x128xf32, #tpu.memory_space<vmem>>, vector<1x8x128xf32>
    %325 = vector.shape_cast %324 : vector<1x8x128xf32> to vector<8x128xf32>
    %c0_92 = arith.constant 0 : index
    %c0_93 = arith.constant 0 : index
    %326 = vector.load %arg5[%c0_92, %c0_93] : memref<32x128xf32, #tpu.memory_space<vmem>>, vector<32x128xf32>
    %cst_94 = arith.constant dense<0.000000e+00> : vector<8x128xf32>
    %327 = tpu.matmul %272, %326, %cst_94 {dimension_numbers = #tpu.dot_dimension_numbers<[1], [0], [0], [1], [0, 0, 1, 1], [], []>} : vector<8x32xf32>, vector<32x128xf32>, vector<8x128xf32> -> vector<8x128xf32>
    %328 = arith.addf %325, %327 : vector<8x128xf32>
    %329 = vector.extract_strided_slice %328 {offsets = [0, 0], sizes = [8, 96], strides = [1, 1]} : vector<8x128xf32> to vector<8x96xf32>
    %330 = arith.negf %329 : vector<8x96xf32>
    %331 = math.exp %330 : vector<8x96xf32>
    %cst_95 = arith.constant 1.000000e+00 : f32
    %332 = vector.broadcast %cst_95 : f32 to vector<8x96xf32>
    %333 = arith.addf %332, %331 : vector<8x96xf32>
    %334 = arith.divf %332, %333 : vector<8x96xf32>
    %335 = vector.extract_strided_slice %328 {offsets = [0, 96], sizes = [8, 32], strides = [1, 1]} : vector<8x128xf32> to vector<8x32xf32>
    %336 = math.tanh %335 : vector<8x32xf32>
    %337 = vector.extract_strided_slice %334 {offsets = [0, 0], sizes = [8, 32], strides = [1, 1]} : vector<8x96xf32> to vector<8x32xf32>
    %338 = vector.extract_strided_slice %334 {offsets = [0, 32], sizes = [8, 32], strides = [1, 1]} : vector<8x96xf32> to vector<8x32xf32>
    %339 = vector.extract_strided_slice %334 {offsets = [0, 64], sizes = [8, 32], strides = [1, 1]} : vector<8x96xf32> to vector<8x32xf32>
    %340 = arith.mulf %338, %275 : vector<8x32xf32>
    %341 = arith.mulf %337, %336 : vector<8x32xf32>
    %342 = arith.addf %340, %341 : vector<8x32xf32>
    %343 = math.tanh %342 : vector<8x32xf32>
    %344 = arith.mulf %339, %343 : vector<8x32xf32>
    %345 = vector.broadcast %c4_i32 : i32 to vector<8x1xi32>
    %346 = arith.cmpi slt, %345, %13 : vector<8x1xi32>
    %347 = vector.shape_cast %346 : vector<8x1xi1> to vector<8x1xi1>
    %348 = vector.broadcast %347 : vector<8x1xi1> to vector<8x32xi1>
    %349 = arith.select %348, %344, %272 : vector<8x32xi1>, vector<8x32xf32>
    %350 = vector.shape_cast %346 : vector<8x1xi1> to vector<8x1xi1>
    %351 = vector.broadcast %350 : vector<8x1xi1> to vector<8x32xi1>
    %352 = arith.select %351, %342, %275 : vector<8x32xi1>, vector<8x32xf32>
    %cst_96 = arith.constant 0.000000e+00 : f32
    %353 = vector.shape_cast %346 : vector<8x1xi1> to vector<8x1xi1>
    %354 = vector.broadcast %353 : vector<8x1xi1> to vector<8x32xi1>
    %355 = vector.broadcast %cst_96 : f32 to vector<8x32xf32>
    %356 = arith.select %354, %344, %355 : vector<8x32xi1>, vector<8x32xf32>
    %357 = arith.index_cast %c4_i32 : i32 to index
    %c0_97 = arith.constant 0 : index
    %c0_98 = arith.constant 0 : index
    %358 = vector.load %arg15[%357, %c0_97, %c0_98] : memref<8x8x32xf32, #tpu.memory_space<vmem>>, vector<1x8x32xf32>
    %359 = vector.shape_cast %358 : vector<1x8x32xf32> to vector<8x32xf32>
    %360 = vector.shape_cast %356 : vector<8x32xf32> to vector<1x8x32xf32>
    tpu.vector_store %arg15[%357, %c0_97, %c0_98], %360 {strides = array<i32>} : memref<8x8x32xf32, #tpu.memory_space<vmem>>, vector<1x8x32xf32>,
    %c7_i32_99 = arith.constant 7 : i32
    %361 = arith.subi %c7_i32_99, %c4_i32 : i32
    %362 = arith.index_cast %361 : i32 to index
    %c0_100 = arith.constant 0 : index
    %c0_101 = arith.constant 0 : index
    %363 = vector.load %arg14[%362, %c0_100, %c0_101] : memref<8x8x128xf32, #tpu.memory_space<vmem>>, vector<1x8x128xf32>
    %364 = vector.shape_cast %363 : vector<1x8x128xf32> to vector<8x128xf32>
    %c0_102 = arith.constant 0 : index
    %c0_103 = arith.constant 0 : index
    %365 = vector.load %arg6[%c0_102, %c0_103] : memref<32x128xf32, #tpu.memory_space<vmem>>, vector<32x128xf32>
    %cst_104 = arith.constant dense<0.000000e+00> : vector<8x128xf32>
    %366 = tpu.matmul %311, %365, %cst_104 {dimension_numbers = #tpu.dot_dimension_numbers<[1], [0], [0], [1], [0, 0, 1, 1], [], []>} : vector<8x32xf32>, vector<32x128xf32>, vector<8x128xf32> -> vector<8x128xf32>
    %367 = arith.addf %364, %366 : vector<8x128xf32>
    %368 = vector.extract_strided_slice %367 {offsets = [0, 0], sizes = [8, 96], strides = [1, 1]} : vector<8x128xf32> to vector<8x96xf32>
    %369 = arith.negf %368 : vector<8x96xf32>
    %370 = math.exp %369 : vector<8x96xf32>
    %cst_105 = arith.constant 1.000000e+00 : f32
    %371 = vector.broadcast %cst_105 : f32 to vector<8x96xf32>
    %372 = arith.addf %371, %370 : vector<8x96xf32>
    %373 = arith.divf %371, %372 : vector<8x96xf32>
    %374 = vector.extract_strided_slice %367 {offsets = [0, 96], sizes = [8, 32], strides = [1, 1]} : vector<8x128xf32> to vector<8x32xf32>
    %375 = math.tanh %374 : vector<8x32xf32>
    %376 = vector.extract_strided_slice %373 {offsets = [0, 0], sizes = [8, 32], strides = [1, 1]} : vector<8x96xf32> to vector<8x32xf32>
    %377 = vector.extract_strided_slice %373 {offsets = [0, 32], sizes = [8, 32], strides = [1, 1]} : vector<8x96xf32> to vector<8x32xf32>
    %378 = vector.extract_strided_slice %373 {offsets = [0, 64], sizes = [8, 32], strides = [1, 1]} : vector<8x96xf32> to vector<8x32xf32>
    %379 = arith.mulf %377, %314 : vector<8x32xf32>
    %380 = arith.mulf %376, %375 : vector<8x32xf32>
    %381 = arith.addf %379, %380 : vector<8x32xf32>
    %382 = math.tanh %381 : vector<8x32xf32>
    %383 = arith.mulf %378, %382 : vector<8x32xf32>
    %384 = vector.broadcast %361 : i32 to vector<8x1xi32>
    %385 = arith.cmpi slt, %384, %13 : vector<8x1xi32>
    %386 = vector.shape_cast %385 : vector<8x1xi1> to vector<8x1xi1>
    %387 = vector.broadcast %386 : vector<8x1xi1> to vector<8x32xi1>
    %388 = arith.select %387, %383, %311 : vector<8x32xi1>, vector<8x32xf32>
    %389 = vector.shape_cast %385 : vector<8x1xi1> to vector<8x1xi1>
    %390 = vector.broadcast %389 : vector<8x1xi1> to vector<8x32xi1>
    %391 = arith.select %390, %381, %314 : vector<8x32xi1>, vector<8x32xf32>
    %cst_106 = arith.constant 0.000000e+00 : f32
    %392 = vector.shape_cast %385 : vector<8x1xi1> to vector<8x1xi1>
    %393 = vector.broadcast %392 : vector<8x1xi1> to vector<8x32xi1>
    %394 = vector.broadcast %cst_106 : f32 to vector<8x32xf32>
    %395 = arith.select %393, %383, %394 : vector<8x32xi1>, vector<8x32xf32>
    %396 = arith.index_cast %361 : i32 to index
    %c0_107 = arith.constant 0 : index
    %c0_108 = arith.constant 0 : index
    %397 = vector.load %arg16[%396, %c0_107, %c0_108] : memref<8x8x32xf32, #tpu.memory_space<vmem>>, vector<1x8x32xf32>
    %398 = vector.shape_cast %397 : vector<1x8x32xf32> to vector<8x32xf32>
    %399 = vector.shape_cast %395 : vector<8x32xf32> to vector<1x8x32xf32>
    tpu.vector_store %arg16[%396, %c0_107, %c0_108], %399 {strides = array<i32>} : memref<8x8x32xf32, #tpu.memory_space<vmem>>, vector<1x8x32xf32>,
    %c5_i32 = arith.constant 5 : i32
    %400 = arith.index_cast %c5_i32 : i32 to index
    %c0_109 = arith.constant 0 : index
    %c0_110 = arith.constant 0 : index
    %401 = vector.load %arg13[%400, %c0_109, %c0_110] : memref<8x8x128xf32, #tpu.memory_space<vmem>>, vector<1x8x128xf32>
    %402 = vector.shape_cast %401 : vector<1x8x128xf32> to vector<8x128xf32>
    %c0_111 = arith.constant 0 : index
    %c0_112 = arith.constant 0 : index
    %403 = vector.load %arg5[%c0_111, %c0_112] : memref<32x128xf32, #tpu.memory_space<vmem>>, vector<32x128xf32>
    %cst_113 = arith.constant dense<0.000000e+00> : vector<8x128xf32>
    %404 = tpu.matmul %349, %403, %cst_113 {dimension_numbers = #tpu.dot_dimension_numbers<[1], [0], [0], [1], [0, 0, 1, 1], [], []>} : vector<8x32xf32>, vector<32x128xf32>, vector<8x128xf32> -> vector<8x128xf32>
    %405 = arith.addf %402, %404 : vector<8x128xf32>
    %406 = vector.extract_strided_slice %405 {offsets = [0, 0], sizes = [8, 96], strides = [1, 1]} : vector<8x128xf32> to vector<8x96xf32>
    %407 = arith.negf %406 : vector<8x96xf32>
    %408 = math.exp %407 : vector<8x96xf32>
    %cst_114 = arith.constant 1.000000e+00 : f32
    %409 = vector.broadcast %cst_114 : f32 to vector<8x96xf32>
    %410 = arith.addf %409, %408 : vector<8x96xf32>
    %411 = arith.divf %409, %410 : vector<8x96xf32>
    %412 = vector.extract_strided_slice %405 {offsets = [0, 96], sizes = [8, 32], strides = [1, 1]} : vector<8x128xf32> to vector<8x32xf32>
    %413 = math.tanh %412 : vector<8x32xf32>
    %414 = vector.extract_strided_slice %411 {offsets = [0, 0], sizes = [8, 32], strides = [1, 1]} : vector<8x96xf32> to vector<8x32xf32>
    %415 = vector.extract_strided_slice %411 {offsets = [0, 32], sizes = [8, 32], strides = [1, 1]} : vector<8x96xf32> to vector<8x32xf32>
    %416 = vector.extract_strided_slice %411 {offsets = [0, 64], sizes = [8, 32], strides = [1, 1]} : vector<8x96xf32> to vector<8x32xf32>
    %417 = arith.mulf %415, %352 : vector<8x32xf32>
    %418 = arith.mulf %414, %413 : vector<8x32xf32>
    %419 = arith.addf %417, %418 : vector<8x32xf32>
    %420 = math.tanh %419 : vector<8x32xf32>
    %421 = arith.mulf %416, %420 : vector<8x32xf32>
    %422 = vector.broadcast %c5_i32 : i32 to vector<8x1xi32>
    %423 = arith.cmpi slt, %422, %13 : vector<8x1xi32>
    %424 = vector.shape_cast %423 : vector<8x1xi1> to vector<8x1xi1>
    %425 = vector.broadcast %424 : vector<8x1xi1> to vector<8x32xi1>
    %426 = arith.select %425, %421, %349 : vector<8x32xi1>, vector<8x32xf32>
    %427 = vector.shape_cast %423 : vector<8x1xi1> to vector<8x1xi1>
    %428 = vector.broadcast %427 : vector<8x1xi1> to vector<8x32xi1>
    %429 = arith.select %428, %419, %352 : vector<8x32xi1>, vector<8x32xf32>
    %cst_115 = arith.constant 0.000000e+00 : f32
    %430 = vector.shape_cast %423 : vector<8x1xi1> to vector<8x1xi1>
    %431 = vector.broadcast %430 : vector<8x1xi1> to vector<8x32xi1>
    %432 = vector.broadcast %cst_115 : f32 to vector<8x32xf32>
    %433 = arith.select %431, %421, %432 : vector<8x32xi1>, vector<8x32xf32>
    %434 = arith.index_cast %c5_i32 : i32 to index
    %c0_116 = arith.constant 0 : index
    %c0_117 = arith.constant 0 : index
    %435 = vector.load %arg15[%434, %c0_116, %c0_117] : memref<8x8x32xf32, #tpu.memory_space<vmem>>, vector<1x8x32xf32>
    %436 = vector.shape_cast %435 : vector<1x8x32xf32> to vector<8x32xf32>
    %437 = vector.shape_cast %433 : vector<8x32xf32> to vector<1x8x32xf32>
    tpu.vector_store %arg15[%434, %c0_116, %c0_117], %437 {strides = array<i32>} : memref<8x8x32xf32, #tpu.memory_space<vmem>>, vector<1x8x32xf32>,
    %c7_i32_118 = arith.constant 7 : i32
    %438 = arith.subi %c7_i32_118, %c5_i32 : i32
    %439 = arith.index_cast %438 : i32 to index
    %c0_119 = arith.constant 0 : index
    %c0_120 = arith.constant 0 : index
    %440 = vector.load %arg14[%439, %c0_119, %c0_120] : memref<8x8x128xf32, #tpu.memory_space<vmem>>, vector<1x8x128xf32>
    %441 = vector.shape_cast %440 : vector<1x8x128xf32> to vector<8x128xf32>
    %c0_121 = arith.constant 0 : index
    %c0_122 = arith.constant 0 : index
    %442 = vector.load %arg6[%c0_121, %c0_122] : memref<32x128xf32, #tpu.memory_space<vmem>>, vector<32x128xf32>
    %cst_123 = arith.constant dense<0.000000e+00> : vector<8x128xf32>
    %443 = tpu.matmul %388, %442, %cst_123 {dimension_numbers = #tpu.dot_dimension_numbers<[1], [0], [0], [1], [0, 0, 1, 1], [], []>} : vector<8x32xf32>, vector<32x128xf32>, vector<8x128xf32> -> vector<8x128xf32>
    %444 = arith.addf %441, %443 : vector<8x128xf32>
    %445 = vector.extract_strided_slice %444 {offsets = [0, 0], sizes = [8, 96], strides = [1, 1]} : vector<8x128xf32> to vector<8x96xf32>
    %446 = arith.negf %445 : vector<8x96xf32>
    %447 = math.exp %446 : vector<8x96xf32>
    %cst_124 = arith.constant 1.000000e+00 : f32
    %448 = vector.broadcast %cst_124 : f32 to vector<8x96xf32>
    %449 = arith.addf %448, %447 : vector<8x96xf32>
    %450 = arith.divf %448, %449 : vector<8x96xf32>
    %451 = vector.extract_strided_slice %444 {offsets = [0, 96], sizes = [8, 32], strides = [1, 1]} : vector<8x128xf32> to vector<8x32xf32>
    %452 = math.tanh %451 : vector<8x32xf32>
    %453 = vector.extract_strided_slice %450 {offsets = [0, 0], sizes = [8, 32], strides = [1, 1]} : vector<8x96xf32> to vector<8x32xf32>
    %454 = vector.extract_strided_slice %450 {offsets = [0, 32], sizes = [8, 32], strides = [1, 1]} : vector<8x96xf32> to vector<8x32xf32>
    %455 = vector.extract_strided_slice %450 {offsets = [0, 64], sizes = [8, 32], strides = [1, 1]} : vector<8x96xf32> to vector<8x32xf32>
    %456 = arith.mulf %454, %391 : vector<8x32xf32>
    %457 = arith.mulf %453, %452 : vector<8x32xf32>
    %458 = arith.addf %456, %457 : vector<8x32xf32>
    %459 = math.tanh %458 : vector<8x32xf32>
    %460 = arith.mulf %455, %459 : vector<8x32xf32>
    %461 = vector.broadcast %438 : i32 to vector<8x1xi32>
    %462 = arith.cmpi slt, %461, %13 : vector<8x1xi32>
    %463 = vector.shape_cast %462 : vector<8x1xi1> to vector<8x1xi1>
    %464 = vector.broadcast %463 : vector<8x1xi1> to vector<8x32xi1>
    %465 = arith.select %464, %460, %388 : vector<8x32xi1>, vector<8x32xf32>
    %466 = vector.shape_cast %462 : vector<8x1xi1> to vector<8x1xi1>
    %467 = vector.broadcast %466 : vector<8x1xi1> to vector<8x32xi1>
    %468 = arith.select %467, %458, %391 : vector<8x32xi1>, vector<8x32xf32>
    %cst_125 = arith.constant 0.000000e+00 : f32
    %469 = vector.shape_cast %462 : vector<8x1xi1> to vector<8x1xi1>
    %470 = vector.broadcast %469 : vector<8x1xi1> to vector<8x32xi1>
    %471 = vector.broadcast %cst_125 : f32 to vector<8x32xf32>
    %472 = arith.select %470, %460, %471 : vector<8x32xi1>, vector<8x32xf32>
    %473 = arith.index_cast %438 : i32 to index
    %c0_126 = arith.constant 0 : index
    %c0_127 = arith.constant 0 : index
    %474 = vector.load %arg16[%473, %c0_126, %c0_127] : memref<8x8x32xf32, #tpu.memory_space<vmem>>, vector<1x8x32xf32>
    %475 = vector.shape_cast %474 : vector<1x8x32xf32> to vector<8x32xf32>
    %476 = vector.shape_cast %472 : vector<8x32xf32> to vector<1x8x32xf32>
    tpu.vector_store %arg16[%473, %c0_126, %c0_127], %476 {strides = array<i32>} : memref<8x8x32xf32, #tpu.memory_space<vmem>>, vector<1x8x32xf32>,
    %c6_i32 = arith.constant 6 : i32
    %477 = arith.index_cast %c6_i32 : i32 to index
    %c0_128 = arith.constant 0 : index
    %c0_129 = arith.constant 0 : index
    %478 = vector.load %arg13[%477, %c0_128, %c0_129] : memref<8x8x128xf32, #tpu.memory_space<vmem>>, vector<1x8x128xf32>
    %479 = vector.shape_cast %478 : vector<1x8x128xf32> to vector<8x128xf32>
    %c0_130 = arith.constant 0 : index
    %c0_131 = arith.constant 0 : index
    %480 = vector.load %arg5[%c0_130, %c0_131] : memref<32x128xf32, #tpu.memory_space<vmem>>, vector<32x128xf32>
    %cst_132 = arith.constant dense<0.000000e+00> : vector<8x128xf32>
    %481 = tpu.matmul %426, %480, %cst_132 {dimension_numbers = #tpu.dot_dimension_numbers<[1], [0], [0], [1], [0, 0, 1, 1], [], []>} : vector<8x32xf32>, vector<32x128xf32>, vector<8x128xf32> -> vector<8x128xf32>
    %482 = arith.addf %479, %481 : vector<8x128xf32>
    %483 = vector.extract_strided_slice %482 {offsets = [0, 0], sizes = [8, 96], strides = [1, 1]} : vector<8x128xf32> to vector<8x96xf32>
    %484 = arith.negf %483 : vector<8x96xf32>
    %485 = math.exp %484 : vector<8x96xf32>
    %cst_133 = arith.constant 1.000000e+00 : f32
    %486 = vector.broadcast %cst_133 : f32 to vector<8x96xf32>
    %487 = arith.addf %486, %485 : vector<8x96xf32>
    %488 = arith.divf %486, %487 : vector<8x96xf32>
    %489 = vector.extract_strided_slice %482 {offsets = [0, 96], sizes = [8, 32], strides = [1, 1]} : vector<8x128xf32> to vector<8x32xf32>
    %490 = math.tanh %489 : vector<8x32xf32>
    %491 = vector.extract_strided_slice %488 {offsets = [0, 0], sizes = [8, 32], strides = [1, 1]} : vector<8x96xf32> to vector<8x32xf32>
    %492 = vector.extract_strided_slice %488 {offsets = [0, 32], sizes = [8, 32], strides = [1, 1]} : vector<8x96xf32> to vector<8x32xf32>
    %493 = vector.extract_strided_slice %488 {offsets = [0, 64], sizes = [8, 32], strides = [1, 1]} : vector<8x96xf32> to vector<8x32xf32>
    %494 = arith.mulf %492, %429 : vector<8x32xf32>
    %495 = arith.mulf %491, %490 : vector<8x32xf32>
    %496 = arith.addf %494, %495 : vector<8x32xf32>
    %497 = math.tanh %496 : vector<8x32xf32>
    %498 = arith.mulf %493, %497 : vector<8x32xf32>
    %499 = vector.broadcast %c6_i32 : i32 to vector<8x1xi32>
    %500 = arith.cmpi slt, %499, %13 : vector<8x1xi32>
    %501 = vector.shape_cast %500 : vector<8x1xi1> to vector<8x1xi1>
    %502 = vector.broadcast %501 : vector<8x1xi1> to vector<8x32xi1>
    %503 = arith.select %502, %498, %426 : vector<8x32xi1>, vector<8x32xf32>
    %504 = vector.shape_cast %500 : vector<8x1xi1> to vector<8x1xi1>
    %505 = vector.broadcast %504 : vector<8x1xi1> to vector<8x32xi1>
    %506 = arith.select %505, %496, %429 : vector<8x32xi1>, vector<8x32xf32>
    %cst_134 = arith.constant 0.000000e+00 : f32
    %507 = vector.shape_cast %500 : vector<8x1xi1> to vector<8x1xi1>
    %508 = vector.broadcast %507 : vector<8x1xi1> to vector<8x32xi1>
    %509 = vector.broadcast %cst_134 : f32 to vector<8x32xf32>
    %510 = arith.select %508, %498, %509 : vector<8x32xi1>, vector<8x32xf32>
    %511 = arith.index_cast %c6_i32 : i32 to index
    %c0_135 = arith.constant 0 : index
    %c0_136 = arith.constant 0 : index
    %512 = vector.load %arg15[%511, %c0_135, %c0_136] : memref<8x8x32xf32, #tpu.memory_space<vmem>>, vector<1x8x32xf32>
    %513 = vector.shape_cast %512 : vector<1x8x32xf32> to vector<8x32xf32>
    %514 = vector.shape_cast %510 : vector<8x32xf32> to vector<1x8x32xf32>
    tpu.vector_store %arg15[%511, %c0_135, %c0_136], %514 {strides = array<i32>} : memref<8x8x32xf32, #tpu.memory_space<vmem>>, vector<1x8x32xf32>,
    %c7_i32_137 = arith.constant 7 : i32
    %515 = arith.subi %c7_i32_137, %c6_i32 : i32
    %516 = arith.index_cast %515 : i32 to index
    %c0_138 = arith.constant 0 : index
    %c0_139 = arith.constant 0 : index
    %517 = vector.load %arg14[%516, %c0_138, %c0_139] : memref<8x8x128xf32, #tpu.memory_space<vmem>>, vector<1x8x128xf32>
    %518 = vector.shape_cast %517 : vector<1x8x128xf32> to vector<8x128xf32>
    %c0_140 = arith.constant 0 : index
    %c0_141 = arith.constant 0 : index
    %519 = vector.load %arg6[%c0_140, %c0_141] : memref<32x128xf32, #tpu.memory_space<vmem>>, vector<32x128xf32>
    %cst_142 = arith.constant dense<0.000000e+00> : vector<8x128xf32>
    %520 = tpu.matmul %465, %519, %cst_142 {dimension_numbers = #tpu.dot_dimension_numbers<[1], [0], [0], [1], [0, 0, 1, 1], [], []>} : vector<8x32xf32>, vector<32x128xf32>, vector<8x128xf32> -> vector<8x128xf32>
    %521 = arith.addf %518, %520 : vector<8x128xf32>
    %522 = vector.extract_strided_slice %521 {offsets = [0, 0], sizes = [8, 96], strides = [1, 1]} : vector<8x128xf32> to vector<8x96xf32>
    %523 = arith.negf %522 : vector<8x96xf32>
    %524 = math.exp %523 : vector<8x96xf32>
    %cst_143 = arith.constant 1.000000e+00 : f32
    %525 = vector.broadcast %cst_143 : f32 to vector<8x96xf32>
    %526 = arith.addf %525, %524 : vector<8x96xf32>
    %527 = arith.divf %525, %526 : vector<8x96xf32>
    %528 = vector.extract_strided_slice %521 {offsets = [0, 96], sizes = [8, 32], strides = [1, 1]} : vector<8x128xf32> to vector<8x32xf32>
    %529 = math.tanh %528 : vector<8x32xf32>
    %530 = vector.extract_strided_slice %527 {offsets = [0, 0], sizes = [8, 32], strides = [1, 1]} : vector<8x96xf32> to vector<8x32xf32>
    %531 = vector.extract_strided_slice %527 {offsets = [0, 32], sizes = [8, 32], strides = [1, 1]} : vector<8x96xf32> to vector<8x32xf32>
    %532 = vector.extract_strided_slice %527 {offsets = [0, 64], sizes = [8, 32], strides = [1, 1]} : vector<8x96xf32> to vector<8x32xf32>
    %533 = arith.mulf %531, %468 : vector<8x32xf32>
    %534 = arith.mulf %530, %529 : vector<8x32xf32>
    %535 = arith.addf %533, %534 : vector<8x32xf32>
    %536 = math.tanh %535 : vector<8x32xf32>
    %537 = arith.mulf %532, %536 : vector<8x32xf32>
    %538 = vector.broadcast %515 : i32 to vector<8x1xi32>
    %539 = arith.cmpi slt, %538, %13 : vector<8x1xi32>
    %540 = vector.shape_cast %539 : vector<8x1xi1> to vector<8x1xi1>
    %541 = vector.broadcast %540 : vector<8x1xi1> to vector<8x32xi1>
    %542 = arith.select %541, %537, %465 : vector<8x32xi1>, vector<8x32xf32>
    %543 = vector.shape_cast %539 : vector<8x1xi1> to vector<8x1xi1>
    %544 = vector.broadcast %543 : vector<8x1xi1> to vector<8x32xi1>
    %545 = arith.select %544, %535, %468 : vector<8x32xi1>, vector<8x32xf32>
    %cst_144 = arith.constant 0.000000e+00 : f32
    %546 = vector.shape_cast %539 : vector<8x1xi1> to vector<8x1xi1>
    %547 = vector.broadcast %546 : vector<8x1xi1> to vector<8x32xi1>
    %548 = vector.broadcast %cst_144 : f32 to vector<8x32xf32>
    %549 = arith.select %547, %537, %548 : vector<8x32xi1>, vector<8x32xf32>
    %550 = arith.index_cast %515 : i32 to index
    %c0_145 = arith.constant 0 : index
    %c0_146 = arith.constant 0 : index
    %551 = vector.load %arg16[%550, %c0_145, %c0_146] : memref<8x8x32xf32, #tpu.memory_space<vmem>>, vector<1x8x32xf32>
    %552 = vector.shape_cast %551 : vector<1x8x32xf32> to vector<8x32xf32>
    %553 = vector.shape_cast %549 : vector<8x32xf32> to vector<1x8x32xf32>
    tpu.vector_store %arg16[%550, %c0_145, %c0_146], %553 {strides = array<i32>} : memref<8x8x32xf32, #tpu.memory_space<vmem>>, vector<1x8x32xf32>,
    %c7_i32_147 = arith.constant 7 : i32
    %554 = arith.index_cast %c7_i32_147 : i32 to index
    %c0_148 = arith.constant 0 : index
    %c0_149 = arith.constant 0 : index
    %555 = vector.load %arg13[%554, %c0_148, %c0_149] : memref<8x8x128xf32, #tpu.memory_space<vmem>>, vector<1x8x128xf32>
    %556 = vector.shape_cast %555 : vector<1x8x128xf32> to vector<8x128xf32>
    %c0_150 = arith.constant 0 : index
    %c0_151 = arith.constant 0 : index
    %557 = vector.load %arg5[%c0_150, %c0_151] : memref<32x128xf32, #tpu.memory_space<vmem>>, vector<32x128xf32>
    %cst_152 = arith.constant dense<0.000000e+00> : vector<8x128xf32>
    %558 = tpu.matmul %503, %557, %cst_152 {dimension_numbers = #tpu.dot_dimension_numbers<[1], [0], [0], [1], [0, 0, 1, 1], [], []>} : vector<8x32xf32>, vector<32x128xf32>, vector<8x128xf32> -> vector<8x128xf32>
    %559 = arith.addf %556, %558 : vector<8x128xf32>
    %560 = vector.extract_strided_slice %559 {offsets = [0, 0], sizes = [8, 96], strides = [1, 1]} : vector<8x128xf32> to vector<8x96xf32>
    %561 = arith.negf %560 : vector<8x96xf32>
    %562 = math.exp %561 : vector<8x96xf32>
    %cst_153 = arith.constant 1.000000e+00 : f32
    %563 = vector.broadcast %cst_153 : f32 to vector<8x96xf32>
    %564 = arith.addf %563, %562 : vector<8x96xf32>
    %565 = arith.divf %563, %564 : vector<8x96xf32>
    %566 = vector.extract_strided_slice %559 {offsets = [0, 96], sizes = [8, 32], strides = [1, 1]} : vector<8x128xf32> to vector<8x32xf32>
    %567 = math.tanh %566 : vector<8x32xf32>
    %568 = vector.extract_strided_slice %565 {offsets = [0, 0], sizes = [8, 32], strides = [1, 1]} : vector<8x96xf32> to vector<8x32xf32>
    %569 = vector.extract_strided_slice %565 {offsets = [0, 32], sizes = [8, 32], strides = [1, 1]} : vector<8x96xf32> to vector<8x32xf32>
    %570 = vector.extract_strided_slice %565 {offsets = [0, 64], sizes = [8, 32], strides = [1, 1]} : vector<8x96xf32> to vector<8x32xf32>
    %571 = arith.mulf %569, %506 : vector<8x32xf32>
    %572 = arith.mulf %568, %567 : vector<8x32xf32>
    %573 = arith.addf %571, %572 : vector<8x32xf32>
    %574 = math.tanh %573 : vector<8x32xf32>
    %575 = arith.mulf %570, %574 : vector<8x32xf32>
    %576 = vector.broadcast %c7_i32_147 : i32 to vector<8x1xi32>
    %577 = arith.cmpi slt, %576, %13 : vector<8x1xi32>
    %578 = vector.shape_cast %577 : vector<8x1xi1> to vector<8x1xi1>
    %579 = vector.broadcast %578 : vector<8x1xi1> to vector<8x32xi1>
    %580 = arith.select %579, %575, %503 : vector<8x32xi1>, vector<8x32xf32>
    %581 = vector.shape_cast %577 : vector<8x1xi1> to vector<8x1xi1>
    %582 = vector.broadcast %581 : vector<8x1xi1> to vector<8x32xi1>
    %583 = arith.select %582, %573, %506 : vector<8x32xi1>, vector<8x32xf32>
    %cst_154 = arith.constant 0.000000e+00 : f32
    %584 = vector.shape_cast %577 : vector<8x1xi1> to vector<8x1xi1>
    %585 = vector.broadcast %584 : vector<8x1xi1> to vector<8x32xi1>
    %586 = vector.broadcast %cst_154 : f32 to vector<8x32xf32>
    %587 = arith.select %585, %575, %586 : vector<8x32xi1>, vector<8x32xf32>
    %588 = arith.index_cast %c7_i32_147 : i32 to index
    %c0_155 = arith.constant 0 : index
    %c0_156 = arith.constant 0 : index
    %589 = vector.load %arg15[%588, %c0_155, %c0_156] : memref<8x8x32xf32, #tpu.memory_space<vmem>>, vector<1x8x32xf32>
    %590 = vector.shape_cast %589 : vector<1x8x32xf32> to vector<8x32xf32>
    %591 = vector.shape_cast %587 : vector<8x32xf32> to vector<1x8x32xf32>
    tpu.vector_store %arg15[%588, %c0_155, %c0_156], %591 {strides = array<i32>} : memref<8x8x32xf32, #tpu.memory_space<vmem>>, vector<1x8x32xf32>,
    %c7_i32_157 = arith.constant 7 : i32
    %592 = arith.subi %c7_i32_157, %c7_i32_147 : i32
    %593 = arith.index_cast %592 : i32 to index
    %c0_158 = arith.constant 0 : index
    %c0_159 = arith.constant 0 : index
    %594 = vector.load %arg14[%593, %c0_158, %c0_159] : memref<8x8x128xf32, #tpu.memory_space<vmem>>, vector<1x8x128xf32>
    %595 = vector.shape_cast %594 : vector<1x8x128xf32> to vector<8x128xf32>
    %c0_160 = arith.constant 0 : index
    %c0_161 = arith.constant 0 : index
    %596 = vector.load %arg6[%c0_160, %c0_161] : memref<32x128xf32, #tpu.memory_space<vmem>>, vector<32x128xf32>
    %cst_162 = arith.constant dense<0.000000e+00> : vector<8x128xf32>
    %597 = tpu.matmul %542, %596, %cst_162 {dimension_numbers = #tpu.dot_dimension_numbers<[1], [0], [0], [1], [0, 0, 1, 1], [], []>} : vector<8x32xf32>, vector<32x128xf32>, vector<8x128xf32> -> vector<8x128xf32>
    %598 = arith.addf %595, %597 : vector<8x128xf32>
    %599 = vector.extract_strided_slice %598 {offsets = [0, 0], sizes = [8, 96], strides = [1, 1]} : vector<8x128xf32> to vector<8x96xf32>
    %600 = arith.negf %599 : vector<8x96xf32>
    %601 = math.exp %600 : vector<8x96xf32>
    %cst_163 = arith.constant 1.000000e+00 : f32
    %602 = vector.broadcast %cst_163 : f32 to vector<8x96xf32>
    %603 = arith.addf %602, %601 : vector<8x96xf32>
    %604 = arith.divf %602, %603 : vector<8x96xf32>
    %605 = vector.extract_strided_slice %598 {offsets = [0, 96], sizes = [8, 32], strides = [1, 1]} : vector<8x128xf32> to vector<8x32xf32>
    %606 = math.tanh %605 : vector<8x32xf32>
    %607 = vector.extract_strided_slice %604 {offsets = [0, 0], sizes = [8, 32], strides = [1, 1]} : vector<8x96xf32> to vector<8x32xf32>
    %608 = vector.extract_strided_slice %604 {offsets = [0, 32], sizes = [8, 32], strides = [1, 1]} : vector<8x96xf32> to vector<8x32xf32>
    %609 = vector.extract_strided_slice %604 {offsets = [0, 64], sizes = [8, 32], strides = [1, 1]} : vector<8x96xf32> to vector<8x32xf32>
    %610 = arith.mulf %608, %545 : vector<8x32xf32>
    %611 = arith.mulf %607, %606 : vector<8x32xf32>
    %612 = arith.addf %610, %611 : vector<8x32xf32>
    %613 = math.tanh %612 : vector<8x32xf32>
    %614 = arith.mulf %609, %613 : vector<8x32xf32>
    %615 = vector.broadcast %592 : i32 to vector<8x1xi32>
    %616 = arith.cmpi slt, %615, %13 : vector<8x1xi32>
    %617 = vector.shape_cast %616 : vector<8x1xi1> to vector<8x1xi1>
    %618 = vector.broadcast %617 : vector<8x1xi1> to vector<8x32xi1>
    %619 = arith.select %618, %614, %542 : vector<8x32xi1>, vector<8x32xf32>
    %620 = vector.shape_cast %616 : vector<8x1xi1> to vector<8x1xi1>
    %621 = vector.broadcast %620 : vector<8x1xi1> to vector<8x32xi1>
    %622 = arith.select %621, %612, %545 : vector<8x32xi1>, vector<8x32xf32>
    %cst_164 = arith.constant 0.000000e+00 : f32
    %623 = vector.shape_cast %616 : vector<8x1xi1> to vector<8x1xi1>
    %624 = vector.broadcast %623 : vector<8x1xi1> to vector<8x32xi1>
    %625 = vector.broadcast %cst_164 : f32 to vector<8x32xf32>
    %626 = arith.select %624, %614, %625 : vector<8x32xi1>, vector<8x32xf32>
    %627 = arith.index_cast %592 : i32 to index
    %c0_165 = arith.constant 0 : index
    %c0_166 = arith.constant 0 : index
    %628 = vector.load %arg16[%627, %c0_165, %c0_166] : memref<8x8x32xf32, #tpu.memory_space<vmem>>, vector<1x8x32xf32>
    %629 = vector.shape_cast %628 : vector<1x8x32xf32> to vector<8x32xf32>
    %630 = vector.shape_cast %626 : vector<8x32xf32> to vector<1x8x32xf32>
    tpu.vector_store %arg16[%627, %c0_165, %c0_166], %630 {strides = array<i32>} : memref<8x8x32xf32, #tpu.memory_space<vmem>>, vector<1x8x32xf32>,
    %c8_i32 = arith.constant 8 : i32
    %c0_167 = arith.constant 0 : index
    %c0_168 = arith.constant 0 : index
    %c0_169 = arith.constant 0 : index
    %631 = vector.load %arg15[%c0_167, %c0_168, %c0_169] : memref<8x8x32xf32, #tpu.memory_space<vmem>>, vector<8x8x32xf32>
    %632 = vector.shape_cast %631 : vector<8x8x32xf32> to vector<64x32xf32>
    %c0_170 = arith.constant 0 : index
    %c0_171 = arith.constant 0 : index
    %c0_172 = arith.constant 0 : index
    %633 = vector.load %arg16[%c0_170, %c0_171, %c0_172] : memref<8x8x32xf32, #tpu.memory_space<vmem>>, vector<8x8x32xf32>
    %634 = vector.shape_cast %633 : vector<8x8x32xf32> to vector<64x32xf32>
    %c0_173 = arith.constant 0 : index
    %c0_174 = arith.constant 0 : index
    %635 = vector.load %arg7[%c0_173, %c0_174] : memref<32x32xf32, #tpu.memory_space<vmem>>, vector<32x32xf32>
    %cst_175 = arith.constant dense<0.000000e+00> : vector<64x32xf32>
    %636 = tpu.matmul %632, %635, %cst_175 {dimension_numbers = #tpu.dot_dimension_numbers<[1], [0], [0], [1], [0, 0, 1, 1], [], []>} : vector<64x32xf32>, vector<32x32xf32>, vector<64x32xf32> -> vector<64x32xf32>
    %c0_176 = arith.constant 0 : index
    %c0_177 = arith.constant 0 : index
    %637 = vector.load %arg8[%c0_176, %c0_177] : memref<32x32xf32, #tpu.memory_space<vmem>>, vector<32x32xf32>
    %cst_178 = arith.constant dense<0.000000e+00> : vector<64x32xf32>
    %638 = tpu.matmul %634, %637, %cst_178 {dimension_numbers = #tpu.dot_dimension_numbers<[1], [0], [0], [1], [0, 0, 1, 1], [], []>} : vector<64x32xf32>, vector<32x32xf32>, vector<64x32xf32> -> vector<64x32xf32>
    %639 = arith.addf %636, %638 : vector<64x32xf32>
    %c0_179 = arith.constant 0 : index
    %c0_180 = arith.constant 0 : index
    %640 = vector.load %arg9[%c0_179, %c0_180] : memref<1x32xf32, #tpu.memory_space<vmem>>, vector<1x32xf32>
    %641 = vector.broadcast %640 : vector<1x32xf32> to vector<64x32xf32>
    %642 = arith.addf %639, %641 : vector<64x32xf32>
    %cst_181 = arith.constant 0.000000e+00 : f32
    %643 = vector.broadcast %cst_181 : f32 to vector<64x32xf32>
    %644 = arith.maximumf %642, %643 : vector<64x32xf32>
    %c0_182 = arith.constant 0 : index
    %c0_183 = arith.constant 0 : index
    %645 = vector.load %arg10[%c0_182, %c0_183] : memref<32x128xf32, #tpu.memory_space<vmem>>, vector<32x128xf32>
    %cst_184 = arith.constant dense<0.000000e+00> : vector<64x128xf32>
    %646 = tpu.matmul %644, %645, %cst_184 {dimension_numbers = #tpu.dot_dimension_numbers<[1], [0], [0], [1], [0, 0, 1, 1], [], []>} : vector<64x32xf32>, vector<32x128xf32>, vector<64x128xf32> -> vector<64x128xf32>
    %c0_185 = arith.constant 0 : index
    %c0_186 = arith.constant 0 : index
    %647 = vector.load %arg11[%c0_185, %c0_186] : memref<1x128xf32, #tpu.memory_space<vmem>>, vector<1x128xf32>
    %648 = vector.broadcast %647 : vector<1x128xf32> to vector<64x128xf32>
    %649 = arith.addf %646, %648 : vector<64x128xf32>
    %650 = vector.shape_cast %649 : vector<64x128xf32> to vector<8x8x128xf32>
    %c0_187 = arith.constant 0 : index
    %c0_188 = arith.constant 0 : index
    %c0_189 = arith.constant 0 : index
    %651 = vector.load %arg12[%c0_187, %c0_188, %c0_189] : memref<8x8x128xf32, #tpu.memory_space<vmem>>, vector<8x8x128xf32>
    tpu.vector_store %arg12[%c0_187, %c0_188, %c0_189], %650 {strides = array<i32>} : memref<8x8x128xf32, #tpu.memory_space<vmem>>, vector<8x8x128xf32>,
    return
  }
  func.func @transform_0(%arg0: i32) -> (i32, i32) {
    %c0_i32 = arith.constant 0 : i32
    %c0_i32_0 = arith.constant 0 : i32
    return %arg0, %c0_i32 : i32, i32
  }
  func.func @transform_1(%arg0: i32) -> (i32, i32, i32) {
    %c0_i32 = arith.constant 0 : i32
    %c0_i32_0 = arith.constant 0 : i32
    %c0_i32_1 = arith.constant 0 : i32
    return %c0_i32, %arg0, %c0_i32_0 : i32, i32, i32
  }
  func.func @transform_2(%arg0: i32) -> (i32, i32) {
    %c0_i32 = arith.constant 0 : i32
    %c0_i32_0 = arith.constant 0 : i32
    %c0_i32_1 = arith.constant 0 : i32
    return %c0_i32, %c0_i32_0 : i32, i32
  }
  func.func @transform_3(%arg0: i32) -> (i32, i32) {
    %c0_i32 = arith.constant 0 : i32
    %c0_i32_0 = arith.constant 0 : i32
    %c0_i32_1 = arith.constant 0 : i32
    return %c0_i32, %c0_i32_0 : i32, i32
  }
  func.func @transform_4(%arg0: i32) -> (i32, i32) {
    %c0_i32 = arith.constant 0 : i32
    %c0_i32_0 = arith.constant 0 : i32
    %c0_i32_1 = arith.constant 0 : i32
    return %c0_i32, %c0_i32_0 : i32, i32
  }
  func.func @transform_5(%arg0: i32) -> (i32, i32) {
    %c0_i32 = arith.constant 0 : i32
    %c0_i32_0 = arith.constant 0 : i32
    %c0_i32_1 = arith.constant 0 : i32
    return %c0_i32, %c0_i32_0 : i32, i32
  }
  func.func @transform_6(%arg0: i32) -> (i32, i32) {
    %c0_i32 = arith.constant 0 : i32
    %c0_i32_0 = arith.constant 0 : i32
    %c0_i32_1 = arith.constant 0 : i32
    return %c0_i32, %c0_i32_0 : i32, i32
  }
  func.func @transform_7(%arg0: i32) -> (i32, i32) {
    %c0_i32 = arith.constant 0 : i32
    %c0_i32_0 = arith.constant 0 : i32
    %c0_i32_1 = arith.constant 0 : i32
    return %c0_i32, %c0_i32_0 : i32, i32
  }
  func.func @transform_8(%arg0: i32) -> (i32, i32) {
    %c0_i32 = arith.constant 0 : i32
    %c0_i32_0 = arith.constant 0 : i32
    %c0_i32_1 = arith.constant 0 : i32
    return %c0_i32, %c0_i32_0 : i32, i32
  }
  func.func @transform_9(%arg0: i32) -> (i32, i32) {
    %c0_i32 = arith.constant 0 : i32
    %c0_i32_0 = arith.constant 0 : i32
    %c0_i32_1 = arith.constant 0 : i32
    return %c0_i32, %c0_i32_0 : i32, i32
  }
  func.func @transform_10(%arg0: i32) -> (i32, i32) {
    %c0_i32 = arith.constant 0 : i32
    %c0_i32_0 = arith.constant 0 : i32
    %c0_i32_1 = arith.constant 0 : i32
    return %c0_i32, %c0_i32_0 : i32, i32
  }
  func.func @transform_11(%arg0: i32) -> (i32, i32, i32) {
    %c0_i32 = arith.constant 0 : i32
    %c0_i32_0 = arith.constant 0 : i32
    %c0_i32_1 = arith.constant 0 : i32
    return %c0_i32, %arg0, %c0_i32_0 : i32, i32, i32
  }
}

</mosaic_0001>

<llo_original>
// kernel: tpu_custom_call.1
$region0: #{tpu_custom_call.1}
  #allocation0 [shape = 'u32[]', space=smem, size = 0x4, offset = 0x4, fixed_abs, tag = 'smem constant byte address 0x4 - core index']
  #allocation1 [shape = 'u32[144,128]{1,0:T(1,128)}', space=vmem, size = 0x12000, scoped, tag = 'internal scratch']
  #allocation2 [shape = 'f32[8,8,128]{2,1,0:T(8,128)}', space=vmem, size = 0x8000, scoped, tag = 'scratch operand']
  #allocation3 [shape = 'f32[8,8,128]{2,1,0:T(8,128)}', space=vmem, size = 0x8000, scoped, tag = 'scratch operand']
  #allocation4 [shape = 'f32[8,8,32]{2,1,0:T(8,128)}', space=vmem, size = 0x8000, scoped, tag = 'scratch operand']
  #allocation5 [shape = 'f32[8,8,32]{2,1,0:T(8,128)}', space=vmem, size = 0x8000, scoped, tag = 'scratch operand']
  %s0 = inlined_call_operand.vmem [shape: s32[8,1], index: 0, kind: input, shape index: {}]
  %s1 = inlined_call_operand.hbm [shape: f32[8,8,32], index: 1, kind: input, shape index: {}]
  %s2 = inlined_call_operand.hbm [shape: f32[32,256], index: 2, kind: input, shape index: {}]
  %s3 = inlined_call_operand.vmem [shape: f32[1,256], index: 3, kind: input, shape index: {}]
  %s4 = inlined_call_operand.hbm [shape: f32[32,128], index: 4, kind: input, shape index: {}]
  %s5 = inlined_call_operand.hbm [shape: f32[32,128], index: 5, kind: input, shape index: {}]
  %s6 = inlined_call_operand.hbm [shape: f32[32,32], index: 6, kind: input, shape index: {}]
  %s7 = inlined_call_operand.hbm [shape: f32[32,32], index: 7, kind: input, shape index: {}]
  %s8 = inlined_call_operand.vmem [shape: f32[1,32], index: 8, kind: input, shape index: {}]
  %s9 = inlined_call_operand.hbm [shape: f32[32,128], index: 9, kind: input, shape index: {}]
  %s10 = inlined_call_operand.vmem [shape: f32[1,128], index: 10, kind: input, shape index: {}]
  %s11 = inlined_call_operand.hbm [shape: f32[8,8,128], index: 11, kind: output, shape index: {}]
  %s12 = sld [smem:[#allocation0]]
  $region82: #{tpu_custom_call.1} parent=0
    _
  %s14 = ssub.s32 1, %s12
  %s15 = scalar_select 0, %s14, %s12
  $region1: #{tpu_custom_call.1} parent=0
    #allocation6 [shape = 'u8[32768]{0}', space=vmem, size = 0x8000, scoped, tag = 'input window, operand 1, single buffered']
    #allocation7 [shape = 's32[1]{0}', space=sflag, size = 0x4, scoped, tag = 'scoped memory for tpu_custom_call.1']
    #allocation8 [shape = 's32[1]{0}', space=sflag, size = 0x4, scoped, tag = 'scoped memory for tpu_custom_call.1']
    #allocation9 [shape = 'u8[32768]{0}', space=vmem, size = 0x8000, scoped, tag = 'input window, operand 2, single buffered']
    #allocation10 [shape = 's32[1]{0}', space=sflag, size = 0x4, scoped, tag = 'scoped memory for tpu_custom_call.1']
    #allocation11 [shape = 'u8[16384]{0}', space=vmem, size = 0x4000, scoped, tag = 'input window, operand 4, single buffered']
    #allocation12 [shape = 'u8[16384]{0}', space=vmem, size = 0x4000, scoped, tag = 'input window, operand 5, single buffered']
    #allocation13 [shape = 's32[1]{0}', space=sflag, size = 0x4, scoped, tag = 'scoped memory for tpu_custom_call.1']
    #allocation14 [shape = 'u8[16384]{0}', space=vmem, size = 0x4000, scoped, tag = 'input window, operand 6, single buffered']
    #allocation15 [shape = 'u8[16384]{0}', space=vmem, size = 0x4000, scoped, tag = 'input window, operand 7, single buffered']
    #allocation16 [shape = 's32[1]{0}', space=sflag, size = 0x4, scoped, tag = 'scoped memory for tpu_custom_call.1']
    #allocation17 [shape = 'u8[16384]{0}', space=vmem, size = 0x4000, scoped, tag = 'input window, operand 9, single buffered']
    #allocation18 [shape = 'u8[32768]{0}', space=vmem, size = 0x8000, scoped, tag = 'output window, operand 0, single buffered']
    %16 = vsyncpa [#allocation7], 0
    %17 = vsyncpa [#allocation10], 0
    %18 = vsyncpa [#allocation13], 0
    %19 = vsyncpa [#allocation16], 0
    %20 = vsyncpa [#allocation8], 0
    // Predicated region
    $region2: #{tpu_custom_call.1} parent=1 // pred_check
      _
    $region3: #{tpu_custom_call.1} parent=1 // pred_check_branch
      %22 = sbr.rel (0) target = $region5
    $region4: #{tpu_custom_call.1} parent=1 // pred_region
      _
    $region5: #{tpu_custom_call.1} parent=1 // pred_fallthru
      _
    // Predicated region
    $region6: #{tpu_custom_call.1} parent=1 // pred_check
      _
    $region7: #{tpu_custom_call.1} parent=1 // pred_check_branch
      %24 = sbr.rel (0) target = $region9
    $region8: #{tpu_custom_call.1} parent=1 // pred_region
      %s26 = ssub.s32 1024, 1024
      %27 = vsyncadd [#allocation7], %s26
      %s28 = sshll.u32 [#allocation6], 4
      %s29 = int_to_ptr.vmem [resolvable:$true] %s28
      %34 = dma.hbm_to_vmem [thread:$0]  %s1, 1024, %s29, [#allocation7], 128, 128, 8
    $region9: #{tpu_custom_call.1} parent=1 // pred_fallthru
      _
    // Predicated region
    $region10: #{tpu_custom_call.1} parent=1 // pred_check
      _
    $region11: #{tpu_custom_call.1} parent=1 // pred_check_branch
      %36 = sbr.rel (0) target = $region13
    $region12: #{tpu_custom_call.1} parent=1 // pred_region
      %s38 = ssub.s32 1024, 1024
      %39 = vsyncadd [#allocation10], %s38
      %s40 = sshll.u32 [#allocation9], 4
      %s41 = int_to_ptr.vmem [resolvable:$true] %s40
      %46 = dma.hbm_to_vmem [thread:$0]  %s2, 1024, %s41, [#allocation10], 256, 256, 16
    $region13: #{tpu_custom_call.1} parent=1 // pred_fallthru
      _
    // Predicated region
    $region14: #{tpu_custom_call.1} parent=1 // pred_check
      _
    $region15: #{tpu_custom_call.1} parent=1 // pred_check_branch
      %48 = sbr.rel (0) target = $region17
    $region16: #{tpu_custom_call.1} parent=1 // pred_region
      _
    $region17: #{tpu_custom_call.1} parent=1 // pred_fallthru
      _
    // Predicated region
    $region18: #{tpu_custom_call.1} parent=1 // pred_check
      _
    $region19: #{tpu_custom_call.1} parent=1 // pred_check_branch
      %50 = sbr.rel (0) target = $region21
    $region20: #{tpu_custom_call.1} parent=1 // pred_region
      %s52 = ssub.s32 512, 512
      %53 = vsyncadd [#allocation10], %s52
      %s54 = sshll.u32 [#allocation11], 4
      %s55 = int_to_ptr.vmem [resolvable:$true] %s54
      %60 = dma.hbm_to_vmem [thread:$0]  %s4, 512, %s55, [#allocation10], 128, 128, 8
    $region21: #{tpu_custom_call.1} parent=1 // pred_fallthru
      _
    // Predicated region
    $region22: #{tpu_custom_call.1} parent=1 // pred_check
      _
    $region23: #{tpu_custom_call.1} parent=1 // pred_check_branch
      %62 = sbr.rel (0) target = $region25
    $region24: #{tpu_custom_call.1} parent=1 // pred_region
      %s64 = ssub.s32 512, 512
      %65 = vsyncadd [#allocation13], %s64
      %s66 = sshll.u32 [#allocation12], 4
      %s67 = int_to_ptr.vmem [resolvable:$true] %s66
      %72 = dma.hbm_to_vmem [thread:$0]  %s5, 512, %s67, [#allocation13], 128, 128, 8
    $region25: #{tpu_custom_call.1} parent=1 // pred_fallthru
      _
    // Predicated region
    $region26: #{tpu_custom_call.1} parent=1 // pred_check
      _
    $region27: #{tpu_custom_call.1} parent=1 // pred_check_branch
      %74 = sbr.rel (0) target = $region29
    $region28: #{tpu_custom_call.1} parent=1 // pred_region
      %s76 = ssub.s32 512, 512
      %77 = vsyncadd [#allocation13], %s76
      %s78 = sshll.u32 [#allocation14], 4
      %s79 = int_to_ptr.vmem [resolvable:$true] %s78
      %84 = dma.hbm_to_vmem [thread:$0]  %s6, 512, %s79, [#allocation13], 128, 128, 8
    $region29: #{tpu_custom_call.1} parent=1 // pred_fallthru
      _
    // Predicated region
    $region30: #{tpu_custom_call.1} parent=1 // pred_check
      _
    $region31: #{tpu_custom_call.1} parent=1 // pred_check_branch
      %86 = sbr.rel (0) target = $region33
    $region32: #{tpu_custom_call.1} parent=1 // pred_region
      %s88 = ssub.s32 512, 512
      %89 = vsyncadd [#allocation16], %s88
      %s90 = sshll.u32 [#allocation15], 4
      %s91 = int_to_ptr.vmem [resolvable:$true] %s90
      %96 = dma.hbm_to_vmem [thread:$0]  %s7, 512, %s91, [#allocation16], 128, 128, 8
    $region33: #{tpu_custom_call.1} parent=1 // pred_fallthru
      _
    // Predicated region
    $region34: #{tpu_custom_call.1} parent=1 // pred_check
      _
    $region35: #{tpu_custom_call.1} parent=1 // pred_check_branch
      %98 = sbr.rel (0) target = $region37
    $region36: #{tpu_custom_call.1} parent=1 // pred_region
      _
    $region37: #{tpu_custom_call.1} parent=1 // pred_fallthru
      _
    // Predicated region
    $region38: #{tpu_custom_call.1} parent=1 // pred_check
      _
    $region39: #{tpu_custom_call.1} parent=1 // pred_check_branch
      %100 = sbr.rel (0) target = $region41
    $region40: #{tpu_custom_call.1} parent=1 // pred_region
      %s102 = ssub.s32 512, 512
      %103 = vsyncadd [#allocation16], %s102
      %s104 = sshll.u32 [#allocation17], 4
      %s105 = int_to_ptr.vmem [resolvable:$true] %s104
      %110 = dma.hbm_to_vmem [thread:$0]  %s9, 512, %s105, [#allocation16], 128, 128, 8
    $region41: #{tpu_custom_call.1} parent=1 // pred_fallthru
      _
    // Predicated region
    $region42: #{tpu_custom_call.1} parent=1 // pred_check
      _
    $region43: #{tpu_custom_call.1} parent=1 // pred_check_branch
      %112 = sbr.rel (0) target = $region45
    $region44: #{tpu_custom_call.1} parent=1 // pred_region
      _
    $region45: #{tpu_custom_call.1} parent=1 // pred_fallthru
      _
    // Predicated region
    $region46: #{tpu_custom_call.1} parent=1 // pred_check
      _
    $region47: #{tpu_custom_call.1} parent=1 // pred_check_branch
      %114 = sbr.rel (0) target = $region49
    $region48: #{tpu_custom_call.1} parent=1 // pred_region
      %115 = dma.done [#allocation7], 1024
    $region49: #{tpu_custom_call.1} parent=1 // pred_fallthru
      _
    // Predicated region
    $region50: #{tpu_custom_call.1} parent=1 // pred_check
      _
    $region51: #{tpu_custom_call.1} parent=1 // pred_check_branch
      %117 = sbr.rel (0) target = $region53
    $region52: #{tpu_custom_call.1} parent=1 // pred_region
      %118 = dma.done [#allocation10], 1024
    $region53: #{tpu_custom_call.1} parent=1 // pred_fallthru
      _
    // Predicated region
    $region54: #{tpu_custom_call.1} parent=1 // pred_check
      _
    $region55: #{tpu_custom_call.1} parent=1 // pred_check_branch
      %120 = sbr.rel (0) target = $region57
    $region56: #{tpu_custom_call.1} parent=1 // pred_region
      %121 = dma.done [#allocation10], 512
    $region57: #{tpu_custom_call.1} parent=1 // pred_fallthru
      _
    // Predicated region
    $region58: #{tpu_custom_call.1} parent=1 // pred_check
      _
    $region59: #{tpu_custom_call.1} parent=1 // pred_check_branch
      %123 = sbr.rel (0) target = $region61
    $region60: #{tpu_custom_call.1} parent=1 // pred_region
      %124 = dma.done [#allocation13], 512
    $region61: #{tpu_custom_call.1} parent=1 // pred_fallthru
      _
    // Predicated region
    $region62: #{tpu_custom_call.1} parent=1 // pred_check
      _
    $region63: #{tpu_custom_call.1} parent=1 // pred_check_branch
      %126 = sbr.rel (0) target = $region65
    $region64: #{tpu_custom_call.1} parent=1 // pred_region
      %127 = dma.done [#allocation13], 512
    $region65: #{tpu_custom_call.1} parent=1 // pred_fallthru
      _
    // Predicated region
    $region66: #{tpu_custom_call.1} parent=1 // pred_check
      _
    $region67: #{tpu_custom_call.1} parent=1 // pred_check_branch
      %129 = sbr.rel (0) target = $region69
    $region68: #{tpu_custom_call.1} parent=1 // pred_region
      %130 = dma.done [#allocation16], 512
    $region69: #{tpu_custom_call.1} parent=1 // pred_fallthru
      _
    // Predicated region
    $region70: #{tpu_custom_call.1} parent=1 // pred_check
      _
    $region71: #{tpu_custom_call.1} parent=1 // pred_check_branch
      %132 = sbr.rel (0) target = $region73
    $region72: #{tpu_custom_call.1} parent=1 // pred_region
      %133 = dma.done [#allocation16], 512
    $region73: #{tpu_custom_call.1} parent=1 // pred_fallthru
      _
    %v134 = vld [vmem:[#allocation6] sm:$0xff]
    %v135 = vld [vmem:[#allocation6 + $0x8] sm:$0xff]
    %v136 = vld [vmem:[#allocation6 + $0x10] sm:$0xff]
    %v137 = vld [vmem:[#allocation6 + $0x18] sm:$0xff]
    %v138 = vld [vmem:[#allocation6 + $0x20] sm:$0xff]
    %v139 = vld [vmem:[#allocation6 + $0x28] sm:$0xff]
    %v140 = vld [vmem:[#allocation6 + $0x30] sm:$0xff]
    %v141 = vld [vmem:[#allocation6 + $0x38] sm:$0xff]
    %v142 = vld [vmem:[#allocation9] sm:$0xff]
    %v143 = vld [vmem:[#allocation9 + $0x8] sm:$0xff]
    %v144 = vld [vmem:[#allocation9 + $0x10] sm:$0xff]
    %v145 = vld [vmem:[#allocation9 + $0x18] sm:$0xff]
    %v146 = vld [vmem:[#allocation9 + $0x20] sm:$0xff]
    %v147 = vld [vmem:[#allocation9 + $0x28] sm:$0xff]
    %v148 = vld [vmem:[#allocation9 + $0x30] sm:$0xff]
    %v149 = vld [vmem:[#allocation9 + $0x38] sm:$0xff]
    %v150 = vld [vmem:[%s3] sm:$0x3]
    %v152 = vlaneseq
    %v153 = vshrl.u32 %v152, 7
    %v154 = vsub.s32 0, %v153
    %v155 = vrot.slane %v150, %v154
    %v156 = vlaneseq
    %v157 = vshrl.u32 %v156, 7
    %v158 = vsub.s32 1, %v157
    %v159 = vrot.slane %v150, %v158
    %vm162 = vcmask 261120
    %v164 = vsel %vm162, %v134, 0
    %v167 = vsel %vm162, %v135, 0
    %v170 = vsel %vm162, %v136, 0
    %v173 = vsel %vm162, %v137, 0
    %v176 = vsel %vm162, %v138, 0
    %v179 = vsel %vm162, %v139, 0
    %v182 = vsel %vm162, %v140, 0
    %v185 = vsel %vm162, %v141, 0
    %187 = vmatprep.subr.mxu0 0.0
    %188 = vmatpush1.msra.mxu0 0.0
    %189 = vmatprep.subr.mxu0 0.0
    %190 = vmatpush1.msra.mxu0 0.0
    %191 = vmatprep.subr.mxu0 0.0
    %192 = vmatpush1.msra.mxu0 0.0
    %193 = vmatprep.subr.mxu0 0.0
    %194 = vmatpush1.msra.mxu0 0.0
    %195 = vmatprep.subr.mxu0 0.0
    %196 = vmatpush1.msra.mxu0 0.0
    %197 = vmatprep.subr.mxu0 0.0
    %198 = vmatpush1.msra.mxu0 0.0
    %199 = vmatprep.subr.mxu0 0.0
    %200 = vmatpush1.msra.mxu0 0.0
    %201 = vmatprep.subr.mxu0 0.0
    %202 = vmatpush1.msra.mxu0 0.0
    %203 = vmatprep.subr.mxu0 0.0
    %204 = vmatpush1.msra.mxu0 0.0
    %205 = vmatprep.subr.mxu0 0.0
    %206 = vmatpush1.msra.mxu0 0.0
    %207 = vmatprep.subr.mxu0 0.0
    %208 = vmatpush1.msra.mxu0 0.0
    %209 = vmatprep.subr.mxu0 0.0
    %210 = vmatpush1.msra.mxu0 0.0
    %211 = vmatprep.subr.mxu0 %v149
    %212 = vmatpush1.msra.mxu0 %v148
    %213 = vmatprep.subr.mxu0 %v147
    %214 = vmatpush1.msra.mxu0 %v146
    %215 = vmatprep.subr.mxu0 %v145
    %216 = vmatpush1.msra.mxu0 %v144
    %217 = vmatprep.subr.mxu0 %v143
    %218 = vmatpush1.msra.mxu0 %v142
    %219 = vmatprep.subr.mxu0 0.0
    %220 = vmatpush2.msra.mxu0 0.0
    %221 = vmatprep.subr.mxu0 0.0
    %222 = vmatpush2.msra.mxu0 0.0
    %223 = vmatprep.subr.mxu0 0.0
    %224 = vmatpush2.msra.mxu0 0.0
    %225 = vmatprep.subr.mxu0 0.0
    %226 = vmatpush2.msra.mxu0 0.0
    %227 = vmatprep.subr.mxu0 0.0
    %228 = vmatpush2.msra.mxu0 0.0
    %229 = vmatprep.subr.mxu0 0.0
    %230 = vmatpush2.msra.mxu0 0.0
    %231 = vmatprep.subr.mxu0 0.0
    %232 = vmatpush2.msra.mxu0 0.0
    %233 = vmatprep.subr.mxu0 0.0
    %234 = vmatpush2.msra.mxu0 0.0
    %235 = vmatprep.subr.mxu0 0.0
    %236 = vmatpush2.msra.mxu0 0.0
    %237 = vmatprep.subr.mxu0 0.0
    %238 = vmatpush2.msra.mxu0 0.0
    %239 = vmatprep.subr.mxu0 0.0
    %240 = vmatpush2.msra.mxu0 0.0
    %241 = vmatprep.subr.mxu0 0.0
    %242 = vmatpush2.msra.mxu0 0.0
    %243 = vmatprep.subr.mxu0 0.0
    %244 = vmatpush2.msra.mxu0 0.0
    %245 = vmatprep.subr.mxu0 0.0
    %246 = vmatpush2.msra.mxu0 0.0
    %247 = vmatprep.subr.mxu0 0.0
    %248 = vmatpush2.msra.mxu0 0.0
    %249 = vmatprep.subr.mxu0 0.0
    %250 = vmatpush2.msra.mxu0 0.0
    %251 = vmatprep.mubr.f32.mxu0 0.0
    %252 = vmatmul.mubr.f32.gmra.mxu0 %v164
    %v253 = vpop.f32.mrf.mxu0
    %v254 = vadd.f32 %v155, %v253
    %v255 = vpop.f32.mrf.mxu0
    %v256 = vadd.f32 %v159, %v255
    %257 = vmatprep.mubr.f32.mxu0 0.0
    %258 = vmatmul.mubr.f32.gmra.mxu0 %v167
    %v259 = vpop.f32.mrf.mxu0
    %v260 = vadd.f32 %v155, %v259
    %v261 = vpop.f32.mrf.mxu0
    %v262 = vadd.f32 %v159, %v261
    %263 = vmatprep.mubr.f32.mxu0 0.0
    %264 = vmatmul.mubr.f32.gmra.mxu0 %v170
    %v265 = vpop.f32.mrf.mxu0
    %v266 = vadd.f32 %v155, %v265
    %v267 = vpop.f32.mrf.mxu0
    %v268 = vadd.f32 %v159, %v267
    %269 = vmatprep.mubr.f32.mxu0 0.0
    %270 = vmatmul.mubr.f32.gmra.mxu0 %v173
    %v271 = vpop.f32.mrf.mxu0
    %v272 = vadd.f32 %v155, %v271
    %v273 = vpop.f32.mrf.mxu0
    %v274 = vadd.f32 %v159, %v273
    %275 = vmatprep.mubr.f32.mxu0 0.0
    %276 = vmatmul.mubr.f32.gmra.mxu0 %v176
    %v277 = vpop.f32.mrf.mxu0
    %v278 = vadd.f32 %v155, %v277
    %v279 = vpop.f32.mrf.mxu0
    %v280 = vadd.f32 %v159, %v279
    %281 = vmatprep.mubr.f32.mxu0 0.0
    %282 = vmatmul.mubr.f32.gmra.mxu0 %v179
    %v283 = vpop.f32.mrf.mxu0
    %v284 = vadd.f32 %v155, %v283
    %v285 = vpop.f32.mrf.mxu0
    %v286 = vadd.f32 %v159, %v285
    %287 = vmatprep.mubr.f32.mxu0 0.0
    %288 = vmatmul.mubr.f32.gmra.mxu0 %v182
    %v289 = vpop.f32.mrf.mxu0
    %v290 = vadd.f32 %v155, %v289
    %v291 = vpop.f32.mrf.mxu0
    %v292 = vadd.f32 %v159, %v291
    %293 = vmatprep.mubr.f32.mxu0 0.0
    %294 = vmatmul.mubr.f32.gmra.mxu0 %v185
    %v295 = vpop.f32.mrf.mxu0
    %v296 = vadd.f32 %v155, %v295
    %v297 = vpop.f32.mrf.mxu0
    %v298 = vadd.f32 %v159, %v297
    %299 = vdwg.mxu0
    %300 = vst [vmem:[#allocation2] sm:$0xff] %v254
    %301 = vst [vmem:[#allocation2 + $0x8] sm:$0xff] %v260
    %302 = vst [vmem:[#allocation2 + $0x10] sm:$0xff] %v266
    %303 = vst [vmem:[#allocation2 + $0x18] sm:$0xff] %v272
    %304 = vst [vmem:[#allocation2 + $0x20] sm:$0xff] %v278
    %305 = vst [vmem:[#allocation2 + $0x28] sm:$0xff] %v284
    %306 = vst [vmem:[#allocation2 + $0x30] sm:$0xff] %v290
    %307 = vst [vmem:[#allocation2 + $0x38] sm:$0xff] %v296
    %308 = vst [vmem:[#allocation3] sm:$0xff] %v256
    %309 = vst [vmem:[#allocation3 + $0x8] sm:$0xff] %v262
    %310 = vst [vmem:[#allocation3 + $0x10] sm:$0xff] %v268
    %311 = vst [vmem:[#allocation3 + $0x18] sm:$0xff] %v274
    %312 = vst [vmem:[#allocation3 + $0x20] sm:$0xff] %v280
    %313 = vst [vmem:[#allocation3 + $0x28] sm:$0xff] %v286
    %314 = vst [vmem:[#allocation3 + $0x30] sm:$0xff] %v292
    %315 = vst [vmem:[#allocation3 + $0x38] sm:$0xff] %v298
    %v316 = vld [vmem:[%s0] sm:$0xff]
    %v317 = vld [vmem:[#allocation2] sm:$0xff]
    %v318 = vld [vmem:[#allocation11] sm:$0xff]
    %v319 = vld [vmem:[#allocation11 + $0x8] sm:$0xff]
    %v320 = vld [vmem:[#allocation11 + $0x10] sm:$0xff]
    %v321 = vld [vmem:[#allocation11 + $0x18] sm:$0xff]
    %v323 = vsel %vm162, 0.0, 0
    %325 = vmatprep.subr.mxu0 0.0
    %326 = vmatpush1.msra.mxu0 0.0
    %327 = vmatprep.subr.mxu0 0.0
    %328 = vmatpush1.msra.mxu0 0.0
    %329 = vmatprep.subr.mxu0 0.0
    %330 = vmatpush1.msra.mxu0 0.0
    %331 = vmatprep.subr.mxu0 0.0
    %332 = vmatpush1.msra.mxu0 0.0
    %333 = vmatprep.subr.mxu0 0.0
    %334 = vmatpush1.msra.mxu0 0.0
    %335 = vmatprep.subr.mxu0 0.0
    %336 = vmatpush1.msra.mxu0 0.0
    %337 = vmatprep.subr.mxu0 0.0
    %338 = vmatpush1.msra.mxu0 0.0
    %339 = vmatprep.subr.mxu0 0.0
    %340 = vmatpush1.msra.mxu0 0.0
    %341 = vmatprep.subr.mxu0 0.0
    %342 = vmatpush1.msra.mxu0 0.0
    %343 = vmatprep.subr.mxu0 0.0
    %344 = vmatpush1.msra.mxu0 0.0
    %345 = vmatprep.subr.mxu0 0.0
    %346 = vmatpush1.msra.mxu0 0.0
    %347 = vmatprep.subr.mxu0 0.0
    %348 = vmatpush1.msra.mxu0 0.0
    %349 = vmatprep.subr.mxu0 0.0
    %350 = vmatpush1.msra.mxu0 %v321
    %351 = vmatprep.subr.mxu0 0.0
    %352 = vmatpush1.msra.mxu0 %v320
    %353 = vmatprep.subr.mxu0 0.0
    %354 = vmatpush1.msra.mxu0 %v319
    %355 = vmatprep.subr.mxu0 0.0
    %356 = vmatpush1.msra.mxu0 %v318
    %357 = vmatprep.subr.mxu0 0.0
    %358 = vmatpush2.msra.mxu0 0.0
    %359 = vmatprep.subr.mxu0 0.0
    %360 = vmatpush2.msra.mxu0 0.0
    %361 = vmatprep.subr.mxu0 0.0
    %362 = vmatpush2.msra.mxu0 0.0
    %363 = vmatprep.subr.mxu0 0.0
    %364 = vmatpush2.msra.mxu0 0.0
    %365 = vmatprep.subr.mxu0 0.0
    %366 = vmatpush2.msra.mxu0 0.0
    %367 = vmatprep.subr.mxu0 0.0
    %368 = vmatpush2.msra.mxu0 0.0
    %369 = vmatprep.subr.mxu0 0.0
    %370 = vmatpush2.msra.mxu0 0.0
    %371 = vmatprep.subr.mxu0 0.0
    %372 = vmatpush2.msra.mxu0 0.0
    %373 = vmatprep.subr.mxu0 0.0
    %374 = vmatpush2.msra.mxu0 0.0
    %375 = vmatprep.subr.mxu0 0.0
    %376 = vmatpush2.msra.mxu0 0.0
    %377 = vmatprep.subr.mxu0 0.0
    %378 = vmatpush2.msra.mxu0 0.0
    %379 = vmatprep.subr.mxu0 0.0
    %380 = vmatpush2.msra.mxu0 0.0
    %381 = vmatprep.subr.mxu0 0.0
    %382 = vmatpush2.msra.mxu0 0.0
    %383 = vmatprep.subr.mxu0 0.0
    %384 = vmatpush2.msra.mxu0 0.0
    %385 = vmatprep.subr.mxu0 0.0
    %386 = vmatpush2.msra.mxu0 0.0
    %387 = vmatprep.subr.mxu0 0.0
    %388 = vmatpush2.msra.mxu0 0.0
    %389 = vmatprep.mubr.f32.mxu0 0.0
    %390 = vmatmul.mubr.f32.gmra.mxu0 %v323
    %v391 = vpop.f32.mrf.mxu0
    %v392 = vadd.f32 0.0, %v391
    %v393 = vpop.f32.mrf.mxu0
    %394 = vdwg.mxu0
    %v395 = vadd.f32 %v317, %v392
    %v396 = vxor.u32 %v395, 2147483648
    %v397 = vmul.f32 %v396, 1.442695
    %v398 = vpow.pop %v397
    %v399 = vadd.f32 %v398, 1.0
    %v400 = vrcp.pop %v399
    %v401 = vmul.f32 1.0, %v400
    %v402 = vtanh.pop %v395
    %v403 = vmul.f32 %v401, 0.0
    %405 = vrot.lane.b32.xlu0 %v402, 32
    %v406 = vpop.permute.xlu0 %405
    %v408 = vmul.f32 %v401, %v406
    %410 = vrot.lane.b32.xlu0 %v408, 32
    %v411 = vpop.permute.xlu0 %410
    %v413 = vadd.f32 %v403, %v411
    %v414 = vtanh.pop %v413
    %416 = vrot.lane.b32.xlu0 %v414, 32
    %v417 = vpop.permute.xlu0 %416
    %v419 = vmul.f32 %v401, %v417
    %vm420 = vcmp.gt.s32.totalorder %v316, 0
    %v421 = vsel %vm420, 1, 0
    %422 = vset.pattern.permute.xlu0 0
    %423 = vperm.xlu0 %422, %v421
    %v424 = vpop.permute.xlu0 %423
    %vm425 = vcmp.eq.s32.totalorder %v424, 1
    %v426 = vsel %vm425, %v419, 0.0
    %v427 = vsel %vm425, %v413, 0.0
    %429 = vrot.lane.b32.xlu0 %v426, 64
    %v430 = vpop.permute.xlu0 %429
    %432 = vst.msk [vmem:[#allocation4] sm:$0xff] %vm162, %v430
    %s433 = scalar_lea.vmem [#allocation3], 56
    %v434 = vld [vmem:[%s433] sm:$0xff]
    %v435 = vld [vmem:[#allocation12] sm:$0xff]
    %v436 = vld [vmem:[#allocation12 + $0x8] sm:$0xff]
    %v437 = vld [vmem:[#allocation12 + $0x10] sm:$0xff]
    %v438 = vld [vmem:[#allocation12 + $0x18] sm:$0xff]
    %439 = vmatprep.subr.mxu0 0.0
    %440 = vmatpush1.msra.mxu0 0.0
    %441 = vmatprep.subr.mxu0 0.0
    %442 = vmatpush1.msra.mxu0 0.0
    %443 = vmatprep.subr.mxu0 0.0
    %444 = vmatpush1.msra.mxu0 0.0
    %445 = vmatprep.subr.mxu0 0.0
    %446 = vmatpush1.msra.mxu0 0.0
    %447 = vmatprep.subr.mxu0 0.0
    %448 = vmatpush1.msra.mxu0 0.0
    %449 = vmatprep.subr.mxu0 0.0
    %450 = vmatpush1.msra.mxu0 0.0
    %451 = vmatprep.subr.mxu0 0.0
    %452 = vmatpush1.msra.mxu0 0.0
    %453 = vmatprep.subr.mxu0 0.0
    %454 = vmatpush1.msra.mxu0 0.0
    %455 = vmatprep.subr.mxu0 0.0
    %456 = vmatpush1.msra.mxu0 0.0
    %457 = vmatprep.subr.mxu0 0.0
    %458 = vmatpush1.msra.mxu0 0.0
    %459 = vmatprep.subr.mxu0 0.0
    %460 = vmatpush1.msra.mxu0 0.0
    %461 = vmatprep.subr.mxu0 0.0
    %462 = vmatpush1.msra.mxu0 0.0
    %463 = vmatprep.subr.mxu0 0.0
    %464 = vmatpush1.msra.mxu0 %v438
    %465 = vmatprep.subr.mxu0 0.0
    %466 = vmatpush1.msra.mxu0 %v437
    %467 = vmatprep.subr.mxu0 0.0
    %468 = vmatpush1.msra.mxu0 %v436
    %469 = vmatprep.subr.mxu0 0.0
    %470 = vmatpush1.msra.mxu0 %v435
    %471 = vmatprep.subr.mxu0 0.0
    %472 = vmatpush2.msra.mxu0 0.0
    %473 = vmatprep.subr.mxu0 0.0
    %474 = vmatpush2.msra.mxu0 0.0
    %475 = vmatprep.subr.mxu0 0.0
    %476 = vmatpush2.msra.mxu0 0.0
    %477 = vmatprep.subr.mxu0 0.0
    %478 = vmatpush2.msra.mxu0 0.0
    %479 = vmatprep.subr.mxu0 0.0
    %480 = vmatpush2.msra.mxu0 0.0
    %481 = vmatprep.subr.mxu0 0.0
    %482 = vmatpush2.msra.mxu0 0.0
    %483 = vmatprep.subr.mxu0 0.0
    %484 = vmatpush2.msra.mxu0 0.0
    %485 = vmatprep.subr.mxu0 0.0
    %486 = vmatpush2.msra.mxu0 0.0
    %487 = vmatprep.subr.mxu0 0.0
    %488 = vmatpush2.msra.mxu0 0.0
    %489 = vmatprep.subr.mxu0 0.0
    %490 = vmatpush2.msra.mxu0 0.0
    %491 = vmatprep.subr.mxu0 0.0
    %492 = vmatpush2.msra.mxu0 0.0
    %493 = vmatprep.subr.mxu0 0.0
    %494 = vmatpush2.msra.mxu0 0.0
    %495 = vmatprep.subr.mxu0 0.0
    %496 = vmatpush2.msra.mxu0 0.0
    %497 = vmatprep.subr.mxu0 0.0
    %498 = vmatpush2.msra.mxu0 0.0
    %499 = vmatprep.subr.mxu0 0.0
    %500 = vmatpush2.msra.mxu0 0.0
    %501 = vmatprep.subr.mxu0 0.0
    %502 = vmatpush2.msra.mxu0 0.0
    %503 = vmatprep.mubr.f32.mxu0 0.0
    %504 = vmatmul.mubr.f32.gmra.mxu0 %v323
    %v505 = vpop.f32.mrf.mxu0
    %v506 = vadd.f32 0.0, %v505
    %v507 = vpop.f32.mrf.mxu0
    %508 = vdwg.mxu0
    %v509 = vadd.f32 %v434, %v506
    %v510 = vxor.u32 %v509, 2147483648
    %v511 = vmul.f32 %v510, 1.442695
    %v512 = vpow.pop %v511
    %v513 = vadd.f32 %v512, 1.0
    %v514 = vrcp.pop %v513
    %v515 = vmul.f32 1.0, %v514
    %v516 = vtanh.pop %v509
    %v517 = vmul.f32 %v515, 0.0
    %519 = vrot.lane.b32.xlu0 %v516, 32
    %v520 = vpop.permute.xlu0 %519
    %v522 = vmul.f32 %v515, %v520
    %524 = vrot.lane.b32.xlu0 %v522, 32
    %v525 = vpop.permute.xlu0 %524
    %v527 = vadd.f32 %v517, %v525
    %v528 = vtanh.pop %v527
    %530 = vrot.lane.b32.xlu0 %v528, 32
    %v531 = vpop.permute.xlu0 %530
    %v533 = vmul.f32 %v515, %v531
    %vm534 = vcmp.gt.s32.totalorder %v316, 7
    %v535 = vsel %vm534, 1, 0
    %536 = vset.pattern.permute.xlu0 0
    %537 = vperm.xlu0 %536, %v535
    %v538 = vpop.permute.xlu0 %537
    %vm539 = vcmp.eq.s32.totalorder %v538, 1
    %v540 = vsel %vm539, %v533, 0.0
    %v541 = vsel %vm539, %v527, 0.0
    %543 = vrot.lane.b32.xlu0 %v540, 64
    %v544 = vpop.permute.xlu0 %543
    %s546 = scalar_lea.vmem [#allocation5], 56
    %547 = vst.msk [vmem:[%s546] sm:$0xff] %vm162, %v544
    %s548 = scalar_lea.vmem [#allocation2], 8
    %v549 = vld [vmem:[%s548] sm:$0xff]
    %v550 = vld [vmem:[#allocation11] sm:$0xff]
    %v551 = vld [vmem:[#allocation11 + $0x8] sm:$0xff]
    %v552 = vld [vmem:[#allocation11 + $0x10] sm:$0xff]
    %v553 = vld [vmem:[#allocation11 + $0x18] sm:$0xff]
    %v554 = vsel %vm162, %v430, 0
    %556 = vmatprep.subr.mxu0 0.0
    %557 = vmatpush1.msra.mxu0 0.0
    %558 = vmatprep.subr.mxu0 0.0
    %559 = vmatpush1.msra.mxu0 0.0
    %560 = vmatprep.subr.mxu0 0.0
    %561 = vmatpush1.msra.mxu0 0.0
    %562 = vmatprep.subr.mxu0 0.0
    %563 = vmatpush1.msra.mxu0 0.0
    %564 = vmatprep.subr.mxu0 0.0
    %565 = vmatpush1.msra.mxu0 0.0
    %566 = vmatprep.subr.mxu0 0.0
    %567 = vmatpush1.msra.mxu0 0.0
    %568 = vmatprep.subr.mxu0 0.0
    %569 = vmatpush1.msra.mxu0 0.0
    %570 = vmatprep.subr.mxu0 0.0
    %571 = vmatpush1.msra.mxu0 0.0
    %572 = vmatprep.subr.mxu0 0.0
    %573 = vmatpush1.msra.mxu0 0.0
    %574 = vmatprep.subr.mxu0 0.0
    %575 = vmatpush1.msra.mxu0 0.0
    %576 = vmatprep.subr.mxu0 0.0
    %577 = vmatpush1.msra.mxu0 0.0
    %578 = vmatprep.subr.mxu0 0.0
    %579 = vmatpush1.msra.mxu0 0.0
    %580 = vmatprep.subr.mxu0 0.0
    %581 = vmatpush1.msra.mxu0 %v553
    %582 = vmatprep.subr.mxu0 0.0
    %583 = vmatpush1.msra.mxu0 %v552
    %584 = vmatprep.subr.mxu0 0.0
    %585 = vmatpush1.msra.mxu0 %v551
    %586 = vmatprep.subr.mxu0 0.0
    %587 = vmatpush1.msra.mxu0 %v550
    %588 = vmatprep.subr.mxu0 0.0
    %589 = vmatpush2.msra.mxu0 0.0
    %590 = vmatprep.subr.mxu0 0.0
    %591 = vmatpush2.msra.mxu0 0.0
    %592 = vmatprep.subr.mxu0 0.0
    %593 = vmatpush2.msra.mxu0 0.0
    %594 = vmatprep.subr.mxu0 0.0
    %595 = vmatpush2.msra.mxu0 0.0
    %596 = vmatprep.subr.mxu0 0.0
    %597 = vmatpush2.msra.mxu0 0.0
    %598 = vmatprep.subr.mxu0 0.0
    %599 = vmatpush2.msra.mxu0 0.0
    %600 = vmatprep.subr.mxu0 0.0
    %601 = vmatpush2.msra.mxu0 0.0
    %602 = vmatprep.subr.mxu0 0.0
    %603 = vmatpush2.msra.mxu0 0.0
    %604 = vmatprep.subr.mxu0 0.0
    %605 = vmatpush2.msra.mxu0 0.0
    %606 = vmatprep.subr.mxu0 0.0
    %607 = vmatpush2.msra.mxu0 0.0
    %608 = vmatprep.subr.mxu0 0.0
    %609 = vmatpush2.msra.mxu0 0.0
    %610 = vmatprep.subr.mxu0 0.0
    %611 = vmatpush2.msra.mxu0 0.0
    %612 = vmatprep.subr.mxu0 0.0
    %613 = vmatpush2.msra.mxu0 0.0
    %614 = vmatprep.subr.mxu0 0.0
    %615 = vmatpush2.msra.mxu0 0.0
    %616 = vmatprep.subr.mxu0 0.0
    %617 = vmatpush2.msra.mxu0 0.0
    %618 = vmatprep.subr.mxu0 0.0
    %619 = vmatpush2.msra.mxu0 0.0
    %620 = vmatprep.mubr.f32.mxu0 0.0
    %621 = vmatmul.mubr.f32.gmra.mxu0 %v554
    %v622 = vpop.f32.mrf.mxu0
    %v623 = vadd.f32 0.0, %v622
    %v624 = vpop.f32.mrf.mxu0
    %625 = vdwg.mxu0
    %v626 = vadd.f32 %v549, %v623
    %v627 = vxor.u32 %v626, 2147483648
    %v628 = vmul.f32 %v627, 1.442695
    %v629 = vpow.pop %v628
    %v630 = vadd.f32 %v629, 1.0
    %v631 = vrcp.pop %v630
    %v632 = vmul.f32 1.0, %v631
    %v633 = vtanh.pop %v626
    %v634 = vmul.f32 %v632, %v427
    %636 = vrot.lane.b32.xlu0 %v633, 32
    %v637 = vpop.permute.xlu0 %636
    %v639 = vmul.f32 %v632, %v637
    %641 = vrot.lane.b32.xlu0 %v639, 32
    %v642 = vpop.permute.xlu0 %641
    %v644 = vadd.f32 %v634, %v642
    %v645 = vtanh.pop %v644
    %647 = vrot.lane.b32.xlu0 %v645, 32
    %v648 = vpop.permute.xlu0 %647
    %v650 = vmul.f32 %v632, %v648
    %vm651 = vcmp.gt.s32.totalorder %v316, 1
    %v652 = vsel %vm651, 1, 0
    %653 = vset.pattern.permute.xlu0 0
    %654 = vperm.xlu0 %653, %v652
    %v655 = vpop.permute.xlu0 %654
    %vm656 = vcmp.eq.s32.totalorder %v655, 1
    %v657 = vsel %vm656, %v650, %v426
    %v658 = vsel %vm656, %v644, %v427
    %v659 = vsel %vm656, %v650, 0.0
    %661 = vrot.lane.b32.xlu0 %v659, 64
    %v662 = vpop.permute.xlu0 %661
    %s664 = scalar_lea.vmem [#allocation4], 8
    %665 = vst.msk [vmem:[%s664] sm:$0xff] %vm162, %v662
    %s666 = scalar_lea.vmem [#allocation3], 48
    %v667 = vld [vmem:[%s666] sm:$0xff]
    %v668 = vld [vmem:[#allocation12] sm:$0xff]
    %v669 = vld [vmem:[#allocation12 + $0x8] sm:$0xff]
    %v670 = vld [vmem:[#allocation12 + $0x10] sm:$0xff]
    %v671 = vld [vmem:[#allocation12 + $0x18] sm:$0xff]
    %v672 = vsel %vm162, %v544, 0
    %674 = vmatprep.subr.mxu0 0.0
    %675 = vmatpush1.msra.mxu0 0.0
    %676 = vmatprep.subr.mxu0 0.0
    %677 = vmatpush1.msra.mxu0 0.0
    %678 = vmatprep.subr.mxu0 0.0
    %679 = vmatpush1.msra.mxu0 0.0
    %680 = vmatprep.subr.mxu0 0.0
    %681 = vmatpush1.msra.mxu0 0.0
    %682 = vmatprep.subr.mxu0 0.0
    %683 = vmatpush1.msra.mxu0 0.0
    %684 = vmatprep.subr.mxu0 0.0
    %685 = vmatpush1.msra.mxu0 0.0
    %686 = vmatprep.subr.mxu0 0.0
    %687 = vmatpush1.msra.mxu0 0.0
    %688 = vmatprep.subr.mxu0 0.0
    %689 = vmatpush1.msra.mxu0 0.0
    %690 = vmatprep.subr.mxu0 0.0
    %691 = vmatpush1.msra.mxu0 0.0
    %692 = vmatprep.subr.mxu0 0.0
    %693 = vmatpush1.msra.mxu0 0.0
    %694 = vmatprep.subr.mxu0 0.0
    %695 = vmatpush1.msra.mxu0 0.0
    %696 = vmatprep.subr.mxu0 0.0
    %697 = vmatpush1.msra.mxu0 0.0
    %698 = vmatprep.subr.mxu0 0.0
    %699 = vmatpush1.msra.mxu0 %v671
    %700 = vmatprep.subr.mxu0 0.0
    %701 = vmatpush1.msra.mxu0 %v670
    %702 = vmatprep.subr.mxu0 0.0
    %703 = vmatpush1.msra.mxu0 %v669
    %704 = vmatprep.subr.mxu0 0.0
    %705 = vmatpush1.msra.mxu0 %v668
    %706 = vmatprep.subr.mxu0 0.0
    %707 = vmatpush2.msra.mxu0 0.0
    %708 = vmatprep.subr.mxu0 0.0
    %709 = vmatpush2.msra.mxu0 0.0
    %710 = vmatprep.subr.mxu0 0.0
    %711 = vmatpush2.msra.mxu0 0.0
    %712 = vmatprep.subr.mxu0 0.0
    %713 = vmatpush2.msra.mxu0 0.0
    %714 = vmatprep.subr.mxu0 0.0
    %715 = vmatpush2.msra.mxu0 0.0
    %716 = vmatprep.subr.mxu0 0.0
    %717 = vmatpush2.msra.mxu0 0.0
    %718 = vmatprep.subr.mxu0 0.0
    %719 = vmatpush2.msra.mxu0 0.0
    %720 = vmatprep.subr.mxu0 0.0
    %721 = vmatpush2.msra.mxu0 0.0
    %722 = vmatprep.subr.mxu0 0.0
    %723 = vmatpush2.msra.mxu0 0.0
    %724 = vmatprep.subr.mxu0 0.0
    %725 = vmatpush2.msra.mxu0 0.0
    %726 = vmatprep.subr.mxu0 0.0
    %727 = vmatpush2.msra.mxu0 0.0
    %728 = vmatprep.subr.mxu0 0.0
    %729 = vmatpush2.msra.mxu0 0.0
    %730 = vmatprep.subr.mxu0 0.0
    %731 = vmatpush2.msra.mxu0 0.0
    %732 = vmatprep.subr.mxu0 0.0
    %733 = vmatpush2.msra.mxu0 0.0
    %734 = vmatprep.subr.mxu0 0.0
    %735 = vmatpush2.msra.mxu0 0.0
    %736 = vmatprep.subr.mxu0 0.0
    %737 = vmatpush2.msra.mxu0 0.0
    %738 = vmatprep.mubr.f32.mxu0 0.0
    %739 = vmatmul.mubr.f32.gmra.mxu0 %v672
    %v740 = vpop.f32.mrf.mxu0
    %v741 = vadd.f32 0.0, %v740
    %v742 = vpop.f32.mrf.mxu0
    %743 = vdwg.mxu0
    %v744 = vadd.f32 %v667, %v741
    %v745 = vxor.u32 %v744, 2147483648
    %v746 = vmul.f32 %v745, 1.442695
    %v747 = vpow.pop %v746
    %v748 = vadd.f32 %v747, 1.0
    %v749 = vrcp.pop %v748
    %v750 = vmul.f32 1.0, %v749
    %v751 = vtanh.pop %v744
    %v752 = vmul.f32 %v750, %v541
    %754 = vrot.lane.b32.xlu0 %v751, 32
    %v755 = vpop.permute.xlu0 %754
    %v757 = vmul.f32 %v750, %v755
    %759 = vrot.lane.b32.xlu0 %v757, 32
    %v760 = vpop.permute.xlu0 %759
    %v762 = vadd.f32 %v752, %v760
    %v763 = vtanh.pop %v762
    %765 = vrot.lane.b32.xlu0 %v763, 32
    %v766 = vpop.permute.xlu0 %765
    %v768 = vmul.f32 %v750, %v766
    %vm769 = vcmp.gt.s32.totalorder %v316, 6
    %v770 = vsel %vm769, 1, 0
    %771 = vset.pattern.permute.xlu0 0
    %772 = vperm.xlu0 %771, %v770
    %v773 = vpop.permute.xlu0 %772
    %vm774 = vcmp.eq.s32.totalorder %v773, 1
    %v775 = vsel %vm774, %v768, %v540
    %v776 = vsel %vm774, %v762, %v541
    %v777 = vsel %vm774, %v768, 0.0
    %779 = vrot.lane.b32.xlu0 %v777, 64
    %v780 = vpop.permute.xlu0 %779
    %s782 = scalar_lea.vmem [#allocation5], 48
    %783 = vst.msk [vmem:[%s782] sm:$0xff] %vm162, %v780
    %s784 = scalar_lea.vmem [#allocation2], 16
    %v785 = vld [vmem:[%s784] sm:$0xff]
    %v786 = vld [vmem:[#allocation11] sm:$0xff]
    %v787 = vld [vmem:[#allocation11 + $0x8] sm:$0xff]
    %v788 = vld [vmem:[#allocation11 + $0x10] sm:$0xff]
    %v789 = vld [vmem:[#allocation11 + $0x18] sm:$0xff]
    %791 = vrot.lane.b32.xlu0 %v657, 64
    %v792 = vpop.permute.xlu0 %791
    %v793 = vsel %vm162, %v792, 0
    %795 = vmatprep.subr.mxu0 0.0
    %796 = vmatpush1.msra.mxu0 0.0
    %797 = vmatprep.subr.mxu0 0.0
    %798 = vmatpush1.msra.mxu0 0.0
    %799 = vmatprep.subr.mxu0 0.0
    %800 = vmatpush1.msra.mxu0 0.0
    %801 = vmatprep.subr.mxu0 0.0
    %802 = vmatpush1.msra.mxu0 0.0
    %803 = vmatprep.subr.mxu0 0.0
    %804 = vmatpush1.msra.mxu0 0.0
    %805 = vmatprep.subr.mxu0 0.0
    %806 = vmatpush1.msra.mxu0 0.0
    %807 = vmatprep.subr.mxu0 0.0
    %808 = vmatpush1.msra.mxu0 0.0
    %809 = vmatprep.subr.mxu0 0.0
    %810 = vmatpush1.msra.mxu0 0.0
    %811 = vmatprep.subr.mxu0 0.0
    %812 = vmatpush1.msra.mxu0 0.0
    %813 = vmatprep.subr.mxu0 0.0
    %814 = vmatpush1.msra.mxu0 0.0
    %815 = vmatprep.subr.mxu0 0.0
    %816 = vmatpush1.msra.mxu0 0.0
    %817 = vmatprep.subr.mxu0 0.0
    %818 = vmatpush1.msra.mxu0 0.0
    %819 = vmatprep.subr.mxu0 0.0
    %820 = vmatpush1.msra.mxu0 %v789
    %821 = vmatprep.subr.mxu0 0.0
    %822 = vmatpush1.msra.mxu0 %v788
    %823 = vmatprep.subr.mxu0 0.0
    %824 = vmatpush1.msra.mxu0 %v787
    %825 = vmatprep.subr.mxu0 0.0
    %826 = vmatpush1.msra.mxu0 %v786
    %827 = vmatprep.subr.mxu0 0.0
    %828 = vmatpush2.msra.mxu0 0.0
    %829 = vmatprep.subr.mxu0 0.0
    %830 = vmatpush2.msra.mxu0 0.0
    %831 = vmatprep.subr.mxu0 0.0
    %832 = vmatpush2.msra.mxu0 0.0
    %833 = vmatprep.subr.mxu0 0.0
    %834 = vmatpush2.msra.mxu0 0.0
    %835 = vmatprep.subr.mxu0 0.0
    %836 = vmatpush2.msra.mxu0 0.0
    %837 = vmatprep.subr.mxu0 0.0
    %838 = vmatpush2.msra.mxu0 0.0
    %839 = vmatprep.subr.mxu0 0.0
    %840 = vmatpush2.msra.mxu0 0.0
    %841 = vmatprep.subr.mxu0 0.0
    %842 = vmatpush2.msra.mxu0 0.0
    %843 = vmatprep.subr.mxu0 0.0
    %844 = vmatpush2.msra.mxu0 0.0
    %845 = vmatprep.subr.mxu0 0.0
    %846 = vmatpush2.msra.mxu0 0.0
    %847 = vmatprep.subr.mxu0 0.0
    %848 = vmatpush2.msra.mxu0 0.0
    %849 = vmatprep.subr.mxu0 0.0
    %850 = vmatpush2.msra.mxu0 0.0
    %851 = vmatprep.subr.mxu0 0.0
    %852 = vmatpush2.msra.mxu0 0.0
    %853 = vmatprep.subr.mxu0 0.0
    %854 = vmatpush2.msra.mxu0 0.0
    %855 = vmatprep.subr.mxu0 0.0
    %856 = vmatpush2.msra.mxu0 0.0
    %857 = vmatprep.subr.mxu0 0.0
    %858 = vmatpush2.msra.mxu0 0.0
    %859 = vmatprep.mubr.f32.mxu0 0.0
    %860 = vmatmul.mubr.f32.gmra.mxu0 %v793
    %v861 = vpop.f32.mrf.mxu0
    %v862 = vadd.f32 0.0, %v861
    %v863 = vpop.f32.mrf.mxu0
    %864 = vdwg.mxu0
    %v865 = vadd.f32 %v785, %v862
    %v866 = vxor.u32 %v865, 2147483648
    %v867 = vmul.f32 %v866, 1.442695
    %v868 = vpow.pop %v867
    %v869 = vadd.f32 %v868, 1.0
    %v870 = vrcp.pop %v869
    %v871 = vmul.f32 1.0, %v870
    %v872 = vtanh.pop %v865
    %v873 = vmul.f32 %v871, %v658
    %875 = vrot.lane.b32.xlu0 %v872, 32
    %v876 = vpop.permute.xlu0 %875
    %v878 = vmul.f32 %v871, %v876
    %880 = vrot.lane.b32.xlu0 %v878, 32
    %v881 = vpop.permute.xlu0 %880
    %v883 = vadd.f32 %v873, %v881
    %v884 = vtanh.pop %v883
    %886 = vrot.lane.b32.xlu0 %v884, 32
    %v887 = vpop.permute.xlu0 %886
    %v889 = vmul.f32 %v871, %v887
    %vm890 = vcmp.gt.s32.totalorder %v316, 2
    %v891 = vsel %vm890, 1, 0
    %892 = vset.pattern.permute.xlu0 0
    %893 = vperm.xlu0 %892, %v891
    %v894 = vpop.permute.xlu0 %893
    %vm895 = vcmp.eq.s32.totalorder %v894, 1
    %v896 = vsel %vm895, %v889, %v657
    %v897 = vsel %vm895, %v883, %v658
    %v898 = vsel %vm895, %v889, 0.0
    %900 = vrot.lane.b32.xlu0 %v898, 64
    %v901 = vpop.permute.xlu0 %900
    %s903 = scalar_lea.vmem [#allocation4], 16
    %904 = vst.msk [vmem:[%s903] sm:$0xff] %vm162, %v901
    %s905 = scalar_lea.vmem [#allocation3], 40
    %v906 = vld [vmem:[%s905] sm:$0xff]
    %v907 = vld [vmem:[#allocation12] sm:$0xff]
    %v908 = vld [vmem:[#allocation12 + $0x8] sm:$0xff]
    %v909 = vld [vmem:[#allocation12 + $0x10] sm:$0xff]
    %v910 = vld [vmem:[#allocation12 + $0x18] sm:$0xff]
    %912 = vrot.lane.b32.xlu0 %v775, 64
    %v913 = vpop.permute.xlu0 %912
    %v914 = vsel %vm162, %v913, 0
    %916 = vmatprep.subr.mxu0 0.0
    %917 = vmatpush1.msra.mxu0 0.0
    %918 = vmatprep.subr.mxu0 0.0
    %919 = vmatpush1.msra.mxu0 0.0
    %920 = vmatprep.subr.mxu0 0.0
    %921 = vmatpush1.msra.mxu0 0.0
    %922 = vmatprep.subr.mxu0 0.0
    %923 = vmatpush1.msra.mxu0 0.0
    %924 = vmatprep.subr.mxu0 0.0
    %925 = vmatpush1.msra.mxu0 0.0
    %926 = vmatprep.subr.mxu0 0.0
    %927 = vmatpush1.msra.mxu0 0.0
    %928 = vmatprep.subr.mxu0 0.0
    %929 = vmatpush1.msra.mxu0 0.0
    %930 = vmatprep.subr.mxu0 0.0
    %931 = vmatpush1.msra.mxu0 0.0
    %932 = vmatprep.subr.mxu0 0.0
    %933 = vmatpush1.msra.mxu0 0.0
    %934 = vmatprep.subr.mxu0 0.0
    %935 = vmatpush1.msra.mxu0 0.0
    %936 = vmatprep.subr.mxu0 0.0
    %937 = vmatpush1.msra.mxu0 0.0
    %938 = vmatprep.subr.mxu0 0.0
    %939 = vmatpush1.msra.mxu0 0.0
    %940 = vmatprep.subr.mxu0 0.0
    %941 = vmatpush1.msra.mxu0 %v910
    %942 = vmatprep.subr.mxu0 0.0
    %943 = vmatpush1.msra.mxu0 %v909
    %944 = vmatprep.subr.mxu0 0.0
    %945 = vmatpush1.msra.mxu0 %v908
    %946 = vmatprep.subr.mxu0 0.0
    %947 = vmatpush1.msra.mxu0 %v907
    %948 = vmatprep.subr.mxu0 0.0
    %949 = vmatpush2.msra.mxu0 0.0
    %950 = vmatprep.subr.mxu0 0.0
    %951 = vmatpush2.msra.mxu0 0.0
    %952 = vmatprep.subr.mxu0 0.0
    %953 = vmatpush2.msra.mxu0 0.0
    %954 = vmatprep.subr.mxu0 0.0
    %955 = vmatpush2.msra.mxu0 0.0
    %956 = vmatprep.subr.mxu0 0.0
    %957 = vmatpush2.msra.mxu0 0.0
    %958 = vmatprep.subr.mxu0 0.0
    %959 = vmatpush2.msra.mxu0 0.0
    %960 = vmatprep.subr.mxu0 0.0
    %961 = vmatpush2.msra.mxu0 0.0
    %962 = vmatprep.subr.mxu0 0.0
    %963 = vmatpush2.msra.mxu0 0.0
    %964 = vmatprep.subr.mxu0 0.0
    %965 = vmatpush2.msra.mxu0 0.0
    %966 = vmatprep.subr.mxu0 0.0
    %967 = vmatpush2.msra.mxu0 0.0
    %968 = vmatprep.subr.mxu0 0.0
    %969 = vmatpush2.msra.mxu0 0.0
    %970 = vmatprep.subr.mxu0 0.0
    %971 = vmatpush2.msra.mxu0 0.0
    %972 = vmatprep.subr.mxu0 0.0
    %973 = vmatpush2.msra.mxu0 0.0
    %974 = vmatprep.subr.mxu0 0.0
    %975 = vmatpush2.msra.mxu0 0.0
    %976 = vmatprep.subr.mxu0 0.0
    %977 = vmatpush2.msra.mxu0 0.0
    %978 = vmatprep.subr.mxu0 0.0
    %979 = vmatpush2.msra.mxu0 0.0
    %980 = vmatprep.mubr.f32.mxu0 0.0
    %981 = vmatmul.mubr.f32.gmra.mxu0 %v914
    %v982 = vpop.f32.mrf.mxu0
    %v983 = vadd.f32 0.0, %v982
    %v984 = vpop.f32.mrf.mxu0
    %985 = vdwg.mxu0
    %v986 = vadd.f32 %v906, %v983
    %v987 = vxor.u32 %v986, 2147483648
    %v988 = vmul.f32 %v987, 1.442695
    %v989 = vpow.pop %v988
    %v990 = vadd.f32 %v989, 1.0
    %v991 = vrcp.pop %v990
    %v992 = vmul.f32 1.0, %v991
    %v993 = vtanh.pop %v986
    %v994 = vmul.f32 %v992, %v776
    %996 = vrot.lane.b32.xlu0 %v993, 32
    %v997 = vpop.permute.xlu0 %996
    %v999 = vmul.f32 %v992, %v997
    %1001 = vrot.lane.b32.xlu0 %v999, 32
    %v1002 = vpop.permute.xlu0 %1001
    %v1004 = vadd.f32 %v994, %v1002
    %v1005 = vtanh.pop %v1004
    %1007 = vrot.lane.b32.xlu0 %v1005, 32
    %v1008 = vpop.permute.xlu0 %1007
    %v1010 = vmul.f32 %v992, %v1008
    %vm1011 = vcmp.gt.s32.totalorder %v316, 5
    %v1012 = vsel %vm1011, 1, 0
    %1013 = vset.pattern.permute.xlu0 0
    %1014 = vperm.xlu0 %1013, %v1012
    %v1015 = vpop.permute.xlu0 %1014
    %vm1016 = vcmp.eq.s32.totalorder %v1015, 1
    %v1017 = vsel %vm1016, %v1010, %v775
    %v1018 = vsel %vm1016, %v1004, %v776
    %v1019 = vsel %vm1016, %v1010, 0.0
    %1021 = vrot.lane.b32.xlu0 %v1019, 64
    %v1022 = vpop.permute.xlu0 %1021
    %s1024 = scalar_lea.vmem [#allocation5], 40
    %1025 = vst.msk [vmem:[%s1024] sm:$0xff] %vm162, %v1022
    %s1026 = scalar_lea.vmem [#allocation2], 24
    %v1027 = vld [vmem:[%s1026] sm:$0xff]
    %v1028 = vld [vmem:[#allocation11] sm:$0xff]
    %v1029 = vld [vmem:[#allocation11 + $0x8] sm:$0xff]
    %v1030 = vld [vmem:[#allocation11 + $0x10] sm:$0xff]
    %v1031 = vld [vmem:[#allocation11 + $0x18] sm:$0xff]
    %1033 = vrot.lane.b32.xlu0 %v896, 64
    %v1034 = vpop.permute.xlu0 %1033
    %v1035 = vsel %vm162, %v1034, 0
    %1037 = vmatprep.subr.mxu0 0.0
    %1038 = vmatpush1.msra.mxu0 0.0
    %1039 = vmatprep.subr.mxu0 0.0
    %1040 = vmatpush1.msra.mxu0 0.0
    %1041 = vmatprep.subr.mxu0 0.0
    %1042 = vmatpush1.msra.mxu0 0.0
    %1043 = vmatprep.subr.mxu0 0.0
    %1044 = vmatpush1.msra.mxu0 0.0
    %1045 = vmatprep.subr.mxu0 0.0
    %1046 = vmatpush1.msra.mxu0 0.0
    %1047 = vmatprep.subr.mxu0 0.0
    %1048 = vmatpush1.msra.mxu0 0.0
    %1049 = vmatprep.subr.mxu0 0.0
    %1050 = vmatpush1.msra.mxu0 0.0
    %1051 = vmatprep.subr.mxu0 0.0
    %1052 = vmatpush1.msra.mxu0 0.0
    %1053 = vmatprep.subr.mxu0 0.0
    %1054 = vmatpush1.msra.mxu0 0.0
    %1055 = vmatprep.subr.mxu0 0.0
    %1056 = vmatpush1.msra.mxu0 0.0
    %1057 = vmatprep.subr.mxu0 0.0
    %1058 = vmatpush1.msra.mxu0 0.0
    %1059 = vmatprep.subr.mxu0 0.0
    %1060 = vmatpush1.msra.mxu0 0.0
    %1061 = vmatprep.subr.mxu0 0.0
    %1062 = vmatpush1.msra.mxu0 %v1031
    %1063 = vmatprep.subr.mxu0 0.0
    %1064 = vmatpush1.msra.mxu0 %v1030
    %1065 = vmatprep.subr.mxu0 0.0
    %1066 = vmatpush1.msra.mxu0 %v1029
    %1067 = vmatprep.subr.mxu0 0.0
    %1068 = vmatpush1.msra.mxu0 %v1028
    %1069 = vmatprep.subr.mxu0 0.0
    %1070 = vmatpush2.msra.mxu0 0.0
    %1071 = vmatprep.subr.mxu0 0.0
    %1072 = vmatpush2.msra.mxu0 0.0
    %1073 = vmatprep.subr.mxu0 0.0
    %1074 = vmatpush2.msra.mxu0 0.0
    %1075 = vmatprep.subr.mxu0 0.0
    %1076 = vmatpush2.msra.mxu0 0.0
    %1077 = vmatprep.subr.mxu0 0.0
    %1078 = vmatpush2.msra.mxu0 0.0
    %1079 = vmatprep.subr.mxu0 0.0
    %1080 = vmatpush2.msra.mxu0 0.0
    %1081 = vmatprep.subr.mxu0 0.0
    %1082 = vmatpush2.msra.mxu0 0.0
    %1083 = vmatprep.subr.mxu0 0.0
    %1084 = vmatpush2.msra.mxu0 0.0
    %1085 = vmatprep.subr.mxu0 0.0
    %1086 = vmatpush2.msra.mxu0 0.0
    %1087 = vmatprep.subr.mxu0 0.0
    %1088 = vmatpush2.msra.mxu0 0.0
    %1089 = vmatprep.subr.mxu0 0.0
    %1090 = vmatpush2.msra.mxu0 0.0
    %1091 = vmatprep.subr.mxu0 0.0
    %1092 = vmatpush2.msra.mxu0 0.0
    %1093 = vmatprep.subr.mxu0 0.0
    %1094 = vmatpush2.msra.mxu0 0.0
    %1095 = vmatprep.subr.mxu0 0.0
    %1096 = vmatpush2.msra.mxu0 0.0
    %1097 = vmatprep.subr.mxu0 0.0
    %1098 = vmatpush2.msra.mxu0 0.0
    %1099 = vmatprep.subr.mxu0 0.0
    %1100 = vmatpush2.msra.mxu0 0.0
    %1101 = vmatprep.mubr.f32.mxu0 0.0
    %1102 = vmatmul.mubr.f32.gmra.mxu0 %v1035
    %v1103 = vpop.f32.mrf.mxu0
    %v1104 = vadd.f32 0.0, %v1103
    %v1105 = vpop.f32.mrf.mxu0
    %1106 = vdwg.mxu0
    %v1107 = vadd.f32 %v1027, %v1104
    %v1108 = vxor.u32 %v1107, 2147483648
    %v1109 = vmul.f32 %v1108, 1.442695
    %v1110 = vpow.pop %v1109
    %v1111 = vadd.f32 %v1110, 1.0
    %v1112 = vrcp.pop %v1111
    %v1113 = vmul.f32 1.0, %v1112
    %v1114 = vtanh.pop %v1107
    %v1115 = vmul.f32 %v1113, %v897
    %1117 = vrot.lane.b32.xlu0 %v1114, 32
    %v1118 = vpop.permute.xlu0 %1117
    %v1120 = vmul.f32 %v1113, %v1118
    %1122 = vrot.lane.b32.xlu0 %v1120, 32
    %v1123 = vpop.permute.xlu0 %1122
    %v1125 = vadd.f32 %v1115, %v1123
    %v1126 = vtanh.pop %v1125
    %1128 = vrot.lane.b32.xlu0 %v1126, 32
    %v1129 = vpop.permute.xlu0 %1128
    %v1131 = vmul.f32 %v1113, %v1129
    %vm1132 = vcmp.gt.s32.totalorder %v316, 3
    %v1133 = vsel %vm1132, 1, 0
    %1134 = vset.pattern.permute.xlu0 0
    %1135 = vperm.xlu0 %1134, %v1133
    %v1136 = vpop.permute.xlu0 %1135
    %vm1137 = vcmp.eq.s32.totalorder %v1136, 1
    %v1138 = vsel %vm1137, %v1131, %v896
    %v1139 = vsel %vm1137, %v1125, %v897
    %v1140 = vsel %vm1137, %v1131, 0.0
    %1142 = vrot.lane.b32.xlu0 %v1140, 64
    %v1143 = vpop.permute.xlu0 %1142
    %s1145 = scalar_lea.vmem [#allocation4], 24
    %1146 = vst.msk [vmem:[%s1145] sm:$0xff] %vm162, %v1143
    %s1147 = scalar_lea.vmem [#allocation3], 32
    %v1148 = vld [vmem:[%s1147] sm:$0xff]
    %v1149 = vld [vmem:[#allocation12] sm:$0xff]
    %v1150 = vld [vmem:[#allocation12 + $0x8] sm:$0xff]
    %v1151 = vld [vmem:[#allocation12 + $0x10] sm:$0xff]
    %v1152 = vld [vmem:[#allocation12 + $0x18] sm:$0xff]
    %1154 = vrot.lane.b32.xlu0 %v1017, 64
    %v1155 = vpop.permute.xlu0 %1154
    %v1156 = vsel %vm162, %v1155, 0
    %1158 = vmatprep.subr.mxu0 0.0
    %1159 = vmatpush1.msra.mxu0 0.0
    %1160 = vmatprep.subr.mxu0 0.0
    %1161 = vmatpush1.msra.mxu0 0.0
    %1162 = vmatprep.subr.mxu0 0.0
    %1163 = vmatpush1.msra.mxu0 0.0
    %1164 = vmatprep.subr.mxu0 0.0
    %1165 = vmatpush1.msra.mxu0 0.0
    %1166 = vmatprep.subr.mxu0 0.0
    %1167 = vmatpush1.msra.mxu0 0.0
    %1168 = vmatprep.subr.mxu0 0.0
    %1169 = vmatpush1.msra.mxu0 0.0
    %1170 = vmatprep.subr.mxu0 0.0
    %1171 = vmatpush1.msra.mxu0 0.0
    %1172 = vmatprep.subr.mxu0 0.0
    %1173 = vmatpush1.msra.mxu0 0.0
    %1174 = vmatprep.subr.mxu0 0.0
    %1175 = vmatpush1.msra.mxu0 0.0
    %1176 = vmatprep.subr.mxu0 0.0
    %1177 = vmatpush1.msra.mxu0 0.0
    %1178 = vmatprep.subr.mxu0 0.0
    %1179 = vmatpush1.msra.mxu0 0.0
    %1180 = vmatprep.subr.mxu0 0.0
    %1181 = vmatpush1.msra.mxu0 0.0
    %1182 = vmatprep.subr.mxu0 0.0
    %1183 = vmatpush1.msra.mxu0 %v1152
    %1184 = vmatprep.subr.mxu0 0.0
    %1185 = vmatpush1.msra.mxu0 %v1151
    %1186 = vmatprep.subr.mxu0 0.0
    %1187 = vmatpush1.msra.mxu0 %v1150
    %1188 = vmatprep.subr.mxu0 0.0
    %1189 = vmatpush1.msra.mxu0 %v1149
    %1190 = vmatprep.subr.mxu0 0.0
    %1191 = vmatpush2.msra.mxu0 0.0
    %1192 = vmatprep.subr.mxu0 0.0
    %1193 = vmatpush2.msra.mxu0 0.0
    %1194 = vmatprep.subr.mxu0 0.0
    %1195 = vmatpush2.msra.mxu0 0.0
    %1196 = vmatprep.subr.mxu0 0.0
    %1197 = vmatpush2.msra.mxu0 0.0
    %1198 = vmatprep.subr.mxu0 0.0
    %1199 = vmatpush2.msra.mxu0 0.0
    %1200 = vmatprep.subr.mxu0 0.0
    %1201 = vmatpush2.msra.mxu0 0.0
    %1202 = vmatprep.subr.mxu0 0.0
    %1203 = vmatpush2.msra.mxu0 0.0
    %1204 = vmatprep.subr.mxu0 0.0
    %1205 = vmatpush2.msra.mxu0 0.0
    %1206 = vmatprep.subr.mxu0 0.0
    %1207 = vmatpush2.msra.mxu0 0.0
    %1208 = vmatprep.subr.mxu0 0.0
    %1209 = vmatpush2.msra.mxu0 0.0
    %1210 = vmatprep.subr.mxu0 0.0
    %1211 = vmatpush2.msra.mxu0 0.0
    %1212 = vmatprep.subr.mxu0 0.0
    %1213 = vmatpush2.msra.mxu0 0.0
    %1214 = vmatprep.subr.mxu0 0.0
    %1215 = vmatpush2.msra.mxu0 0.0
    %1216 = vmatprep.subr.mxu0 0.0
    %1217 = vmatpush2.msra.mxu0 0.0
    %1218 = vmatprep.subr.mxu0 0.0
    %1219 = vmatpush2.msra.mxu0 0.0
    %1220 = vmatprep.subr.mxu0 0.0
    %1221 = vmatpush2.msra.mxu0 0.0
    %1222 = vmatprep.mubr.f32.mxu0 0.0
    %1223 = vmatmul.mubr.f32.gmra.mxu0 %v1156
    %v1224 = vpop.f32.mrf.mxu0
    %v1225 = vadd.f32 0.0, %v1224
    %v1226 = vpop.f32.mrf.mxu0
    %1227 = vdwg.mxu0
    %v1228 = vadd.f32 %v1148, %v1225
    %v1229 = vxor.u32 %v1228, 2147483648
    %v1230 = vmul.f32 %v1229, 1.442695
    %v1231 = vpow.pop %v1230
    %v1232 = vadd.f32 %v1231, 1.0
    %v1233 = vrcp.pop %v1232
    %v1234 = vmul.f32 1.0, %v1233
    %v1235 = vtanh.pop %v1228
    %v1236 = vmul.f32 %v1234, %v1018
    %1238 = vrot.lane.b32.xlu0 %v1235, 32
    %v1239 = vpop.permute.xlu0 %1238
    %v1241 = vmul.f32 %v1234, %v1239
    %1243 = vrot.lane.b32.xlu0 %v1241, 32
    %v1244 = vpop.permute.xlu0 %1243
    %v1246 = vadd.f32 %v1236, %v1244
    %v1247 = vtanh.pop %v1246
    %1249 = vrot.lane.b32.xlu0 %v1247, 32
    %v1250 = vpop.permute.xlu0 %1249
    %v1252 = vmul.f32 %v1234, %v1250
    %vm1253 = vcmp.gt.s32.totalorder %v316, 4
    %v1254 = vsel %vm1253, 1, 0
    %1255 = vset.pattern.permute.xlu0 0
    %1256 = vperm.xlu0 %1255, %v1254
    %v1257 = vpop.permute.xlu0 %1256
    %vm1258 = vcmp.eq.s32.totalorder %v1257, 1
    %v1259 = vsel %vm1258, %v1252, %v1017
    %v1260 = vsel %vm1258, %v1246, %v1018
    %v1261 = vsel %vm1258, %v1252, 0.0
    %1263 = vrot.lane.b32.xlu0 %v1261, 64
    %v1264 = vpop.permute.xlu0 %1263
    %s1266 = scalar_lea.vmem [#allocation5], 32
    %1267 = vst.msk [vmem:[%s1266] sm:$0xff] %vm162, %v1264
    %s1268 = scalar_lea.vmem [#allocation2], 32
    %v1269 = vld [vmem:[%s1268] sm:$0xff]
    %v1270 = vld [vmem:[#allocation11] sm:$0xff]
    %v1271 = vld [vmem:[#allocation11 + $0x8] sm:$0xff]
    %v1272 = vld [vmem:[#allocation11 + $0x10] sm:$0xff]
    %v1273 = vld [vmem:[#allocation11 + $0x18] sm:$0xff]
    %1275 = vrot.lane.b32.xlu0 %v1138, 64
    %v1276 = vpop.permute.xlu0 %1275
    %v1277 = vsel %vm162, %v1276, 0
    %1279 = vmatprep.subr.mxu0 0.0
    %1280 = vmatpush1.msra.mxu0 0.0
    %1281 = vmatprep.subr.mxu0 0.0
    %1282 = vmatpush1.msra.mxu0 0.0
    %1283 = vmatprep.subr.mxu0 0.0
    %1284 = vmatpush1.msra.mxu0 0.0
    %1285 = vmatprep.subr.mxu0 0.0
    %1286 = vmatpush1.msra.mxu0 0.0
    %1287 = vmatprep.subr.mxu0 0.0
    %1288 = vmatpush1.msra.mxu0 0.0
    %1289 = vmatprep.subr.mxu0 0.0
    %1290 = vmatpush1.msra.mxu0 0.0
    %1291 = vmatprep.subr.mxu0 0.0
    %1292 = vmatpush1.msra.mxu0 0.0
    %1293 = vmatprep.subr.mxu0 0.0
    %1294 = vmatpush1.msra.mxu0 0.0
    %1295 = vmatprep.subr.mxu0 0.0
    %1296 = vmatpush1.msra.mxu0 0.0
    %1297 = vmatprep.subr.mxu0 0.0
    %1298 = vmatpush1.msra.mxu0 0.0
    %1299 = vmatprep.subr.mxu0 0.0
    %1300 = vmatpush1.msra.mxu0 0.0
    %1301 = vmatprep.subr.mxu0 0.0
    %1302 = vmatpush1.msra.mxu0 0.0
    %1303 = vmatprep.subr.mxu0 0.0
    %1304 = vmatpush1.msra.mxu0 %v1273
    %1305 = vmatprep.subr.mxu0 0.0
    %1306 = vmatpush1.msra.mxu0 %v1272
    %1307 = vmatprep.subr.mxu0 0.0
    %1308 = vmatpush1.msra.mxu0 %v1271
    %1309 = vmatprep.subr.mxu0 0.0
    %1310 = vmatpush1.msra.mxu0 %v1270
    %1311 = vmatprep.subr.mxu0 0.0
    %1312 = vmatpush2.msra.mxu0 0.0
    %1313 = vmatprep.subr.mxu0 0.0
    %1314 = vmatpush2.msra.mxu0 0.0
    %1315 = vmatprep.subr.mxu0 0.0
    %1316 = vmatpush2.msra.mxu0 0.0
    %1317 = vmatprep.subr.mxu0 0.0
    %1318 = vmatpush2.msra.mxu0 0.0
    %1319 = vmatprep.subr.mxu0 0.0
    %1320 = vmatpush2.msra.mxu0 0.0
    %1321 = vmatprep.subr.mxu0 0.0
    %1322 = vmatpush2.msra.mxu0 0.0
    %1323 = vmatprep.subr.mxu0 0.0
    %1324 = vmatpush2.msra.mxu0 0.0
    %1325 = vmatprep.subr.mxu0 0.0
    %1326 = vmatpush2.msra.mxu0 0.0
    %1327 = vmatprep.subr.mxu0 0.0
    %1328 = vmatpush2.msra.mxu0 0.0
    %1329 = vmatprep.subr.mxu0 0.0
    %1330 = vmatpush2.msra.mxu0 0.0
    %1331 = vmatprep.subr.mxu0 0.0
    %1332 = vmatpush2.msra.mxu0 0.0
    %1333 = vmatprep.subr.mxu0 0.0
    %1334 = vmatpush2.msra.mxu0 0.0
    %1335 = vmatprep.subr.mxu0 0.0
    %1336 = vmatpush2.msra.mxu0 0.0
    %1337 = vmatprep.subr.mxu0 0.0
    %1338 = vmatpush2.msra.mxu0 0.0
    %1339 = vmatprep.subr.mxu0 0.0
    %1340 = vmatpush2.msra.mxu0 0.0
    %1341 = vmatprep.subr.mxu0 0.0
    %1342 = vmatpush2.msra.mxu0 0.0
    %1343 = vmatprep.mubr.f32.mxu0 0.0
    %1344 = vmatmul.mubr.f32.gmra.mxu0 %v1277
    %v1345 = vpop.f32.mrf.mxu0
    %v1346 = vadd.f32 0.0, %v1345
    %v1347 = vpop.f32.mrf.mxu0
    %1348 = vdwg.mxu0
    %v1349 = vadd.f32 %v1269, %v1346
    %v1350 = vxor.u32 %v1349, 2147483648
    %v1351 = vmul.f32 %v1350, 1.442695
    %v1352 = vpow.pop %v1351
    %v1353 = vadd.f32 %v1352, 1.0
    %v1354 = vrcp.pop %v1353
    %v1355 = vmul.f32 1.0, %v1354
    %v1356 = vtanh.pop %v1349
    %v1357 = vmul.f32 %v1355, %v1139
    %1359 = vrot.lane.b32.xlu0 %v1356, 32
    %v1360 = vpop.permute.xlu0 %1359
    %v1362 = vmul.f32 %v1355, %v1360
    %1364 = vrot.lane.b32.xlu0 %v1362, 32
    %v1365 = vpop.permute.xlu0 %1364
    %v1367 = vadd.f32 %v1357, %v1365
    %v1368 = vtanh.pop %v1367
    %1370 = vrot.lane.b32.xlu0 %v1368, 32
    %v1371 = vpop.permute.xlu0 %1370
    %v1373 = vmul.f32 %v1355, %v1371
    %v1374 = vsel %vm1258, %v1373, %v1138
    %v1375 = vsel %vm1258, %v1367, %v1139
    %v1376 = vsel %vm1258, %v1373, 0.0
    %1378 = vrot.lane.b32.xlu0 %v1376, 64
    %v1379 = vpop.permute.xlu0 %1378
    %s1381 = scalar_lea.vmem [#allocation4], 32
    %1382 = vst.msk [vmem:[%s1381] sm:$0xff] %vm162, %v1379
    %s1383 = scalar_lea.vmem [#allocation3], 24
    %v1384 = vld [vmem:[%s1383] sm:$0xff]
    %v1385 = vld [vmem:[#allocation12] sm:$0xff]
    %v1386 = vld [vmem:[#allocation12 + $0x8] sm:$0xff]
    %v1387 = vld [vmem:[#allocation12 + $0x10] sm:$0xff]
    %v1388 = vld [vmem:[#allocation12 + $0x18] sm:$0xff]
    %1390 = vrot.lane.b32.xlu0 %v1259, 64
    %v1391 = vpop.permute.xlu0 %1390
    %v1392 = vsel %vm162, %v1391, 0
    %1394 = vmatprep.subr.mxu0 0.0
    %1395 = vmatpush1.msra.mxu0 0.0
    %1396 = vmatprep.subr.mxu0 0.0
    %1397 = vmatpush1.msra.mxu0 0.0
    %1398 = vmatprep.subr.mxu0 0.0
    %1399 = vmatpush1.msra.mxu0 0.0
    %1400 = vmatprep.subr.mxu0 0.0
    %1401 = vmatpush1.msra.mxu0 0.0
    %1402 = vmatprep.subr.mxu0 0.0
    %1403 = vmatpush1.msra.mxu0 0.0
    %1404 = vmatprep.subr.mxu0 0.0
    %1405 = vmatpush1.msra.mxu0 0.0
    %1406 = vmatprep.subr.mxu0 0.0
    %1407 = vmatpush1.msra.mxu0 0.0
    %1408 = vmatprep.subr.mxu0 0.0
    %1409 = vmatpush1.msra.mxu0 0.0
    %1410 = vmatprep.subr.mxu0 0.0
    %1411 = vmatpush1.msra.mxu0 0.0
    %1412 = vmatprep.subr.mxu0 0.0
    %1413 = vmatpush1.msra.mxu0 0.0
    %1414 = vmatprep.subr.mxu0 0.0
    %1415 = vmatpush1.msra.mxu0 0.0
    %1416 = vmatprep.subr.mxu0 0.0
    %1417 = vmatpush1.msra.mxu0 0.0
    %1418 = vmatprep.subr.mxu0 0.0
    %1419 = vmatpush1.msra.mxu0 %v1388
    %1420 = vmatprep.subr.mxu0 0.0
    %1421 = vmatpush1.msra.mxu0 %v1387
    %1422 = vmatprep.subr.mxu0 0.0
    %1423 = vmatpush1.msra.mxu0 %v1386
    %1424 = vmatprep.subr.mxu0 0.0
    %1425 = vmatpush1.msra.mxu0 %v1385
    %1426 = vmatprep.subr.mxu0 0.0
    %1427 = vmatpush2.msra.mxu0 0.0
    %1428 = vmatprep.subr.mxu0 0.0
    %1429 = vmatpush2.msra.mxu0 0.0
    %1430 = vmatprep.subr.mxu0 0.0
    %1431 = vmatpush2.msra.mxu0 0.0
    %1432 = vmatprep.subr.mxu0 0.0
    %1433 = vmatpush2.msra.mxu0 0.0
    %1434 = vmatprep.subr.mxu0 0.0
    %1435 = vmatpush2.msra.mxu0 0.0
    %1436 = vmatprep.subr.mxu0 0.0
    %1437 = vmatpush2.msra.mxu0 0.0
    %1438 = vmatprep.subr.mxu0 0.0
    %1439 = vmatpush2.msra.mxu0 0.0
    %1440 = vmatprep.subr.mxu0 0.0
    %1441 = vmatpush2.msra.mxu0 0.0
    %1442 = vmatprep.subr.mxu0 0.0
    %1443 = vmatpush2.msra.mxu0 0.0
    %1444 = vmatprep.subr.mxu0 0.0
    %1445 = vmatpush2.msra.mxu0 0.0
    %1446 = vmatprep.subr.mxu0 0.0
    %1447 = vmatpush2.msra.mxu0 0.0
    %1448 = vmatprep.subr.mxu0 0.0
    %1449 = vmatpush2.msra.mxu0 0.0
    %1450 = vmatprep.subr.mxu0 0.0
    %1451 = vmatpush2.msra.mxu0 0.0
    %1452 = vmatprep.subr.mxu0 0.0
    %1453 = vmatpush2.msra.mxu0 0.0
    %1454 = vmatprep.subr.mxu0 0.0
    %1455 = vmatpush2.msra.mxu0 0.0
    %1456 = vmatprep.subr.mxu0 0.0
    %1457 = vmatpush2.msra.mxu0 0.0
    %1458 = vmatprep.mubr.f32.mxu0 0.0
    %1459 = vmatmul.mubr.f32.gmra.mxu0 %v1392
    %v1460 = vpop.f32.mrf.mxu0
    %v1461 = vadd.f32 0.0, %v1460
    %v1462 = vpop.f32.mrf.mxu0
    %1463 = vdwg.mxu0
    %v1464 = vadd.f32 %v1384, %v1461
    %v1465 = vxor.u32 %v1464, 2147483648
    %v1466 = vmul.f32 %v1465, 1.442695
    %v1467 = vpow.pop %v1466
    %v1468 = vadd.f32 %v1467, 1.0
    %v1469 = vrcp.pop %v1468
    %v1470 = vmul.f32 1.0, %v1469
    %v1471 = vtanh.pop %v1464
    %v1472 = vmul.f32 %v1470, %v1260
    %1474 = vrot.lane.b32.xlu0 %v1471, 32
    %v1475 = vpop.permute.xlu0 %1474
    %v1477 = vmul.f32 %v1470, %v1475
    %1479 = vrot.lane.b32.xlu0 %v1477, 32
    %v1480 = vpop.permute.xlu0 %1479
    %v1482 = vadd.f32 %v1472, %v1480
    %v1483 = vtanh.pop %v1482
    %1485 = vrot.lane.b32.xlu0 %v1483, 32
    %v1486 = vpop.permute.xlu0 %1485
    %v1488 = vmul.f32 %v1470, %v1486
    %v1489 = vsel %vm1137, %v1488, %v1259
    %v1490 = vsel %vm1137, %v1482, %v1260
    %v1491 = vsel %vm1137, %v1488, 0.0
    %1493 = vrot.lane.b32.xlu0 %v1491, 64
    %v1494 = vpop.permute.xlu0 %1493
    %s1496 = scalar_lea.vmem [#allocation5], 24
    %1497 = vst.msk [vmem:[%s1496] sm:$0xff] %vm162, %v1494
    %s1498 = scalar_lea.vmem [#allocation2], 40
    %v1499 = vld [vmem:[%s1498] sm:$0xff]
    %v1500 = vld [vmem:[#allocation11] sm:$0xff]
    %v1501 = vld [vmem:[#allocation11 + $0x8] sm:$0xff]
    %v1502 = vld [vmem:[#allocation11 + $0x10] sm:$0xff]
    %v1503 = vld [vmem:[#allocation11 + $0x18] sm:$0xff]
    %1505 = vrot.lane.b32.xlu0 %v1374, 64
    %v1506 = vpop.permute.xlu0 %1505
    %v1507 = vsel %vm162, %v1506, 0
    %1509 = vmatprep.subr.mxu0 0.0
    %1510 = vmatpush1.msra.mxu0 0.0
    %1511 = vmatprep.subr.mxu0 0.0
    %1512 = vmatpush1.msra.mxu0 0.0
    %1513 = vmatprep.subr.mxu0 0.0
    %1514 = vmatpush1.msra.mxu0 0.0
    %1515 = vmatprep.subr.mxu0 0.0
    %1516 = vmatpush1.msra.mxu0 0.0
    %1517 = vmatprep.subr.mxu0 0.0
    %1518 = vmatpush1.msra.mxu0 0.0
    %1519 = vmatprep.subr.mxu0 0.0
    %1520 = vmatpush1.msra.mxu0 0.0
    %1521 = vmatprep.subr.mxu0 0.0
    %1522 = vmatpush1.msra.mxu0 0.0
    %1523 = vmatprep.subr.mxu0 0.0
    %1524 = vmatpush1.msra.mxu0 0.0
    %1525 = vmatprep.subr.mxu0 0.0
    %1526 = vmatpush1.msra.mxu0 0.0
    %1527 = vmatprep.subr.mxu0 0.0
    %1528 = vmatpush1.msra.mxu0 0.0
    %1529 = vmatprep.subr.mxu0 0.0
    %1530 = vmatpush1.msra.mxu0 0.0
    %1531 = vmatprep.subr.mxu0 0.0
    %1532 = vmatpush1.msra.mxu0 0.0
    %1533 = vmatprep.subr.mxu0 0.0
    %1534 = vmatpush1.msra.mxu0 %v1503
    %1535 = vmatprep.subr.mxu0 0.0
    %1536 = vmatpush1.msra.mxu0 %v1502
    %1537 = vmatprep.subr.mxu0 0.0
    %1538 = vmatpush1.msra.mxu0 %v1501
    %1539 = vmatprep.subr.mxu0 0.0
    %1540 = vmatpush1.msra.mxu0 %v1500
    %1541 = vmatprep.subr.mxu0 0.0
    %1542 = vmatpush2.msra.mxu0 0.0
    %1543 = vmatprep.subr.mxu0 0.0
    %1544 = vmatpush2.msra.mxu0 0.0
    %1545 = vmatprep.subr.mxu0 0.0
    %1546 = vmatpush2.msra.mxu0 0.0
    %1547 = vmatprep.subr.mxu0 0.0
    %1548 = vmatpush2.msra.mxu0 0.0
    %1549 = vmatprep.subr.mxu0 0.0
    %1550 = vmatpush2.msra.mxu0 0.0
    %1551 = vmatprep.subr.mxu0 0.0
    %1552 = vmatpush2.msra.mxu0 0.0
    %1553 = vmatprep.subr.mxu0 0.0
    %1554 = vmatpush2.msra.mxu0 0.0
    %1555 = vmatprep.subr.mxu0 0.0
    %1556 = vmatpush2.msra.mxu0 0.0
    %1557 = vmatprep.subr.mxu0 0.0
    %1558 = vmatpush2.msra.mxu0 0.0
    %1559 = vmatprep.subr.mxu0 0.0
    %1560 = vmatpush2.msra.mxu0 0.0
    %1561 = vmatprep.subr.mxu0 0.0
    %1562 = vmatpush2.msra.mxu0 0.0
    %1563 = vmatprep.subr.mxu0 0.0
    %1564 = vmatpush2.msra.mxu0 0.0
    %1565 = vmatprep.subr.mxu0 0.0
    %1566 = vmatpush2.msra.mxu0 0.0
    %1567 = vmatprep.subr.mxu0 0.0
    %1568 = vmatpush2.msra.mxu0 0.0
    %1569 = vmatprep.subr.mxu0 0.0
    %1570 = vmatpush2.msra.mxu0 0.0
    %1571 = vmatprep.subr.mxu0 0.0
    %1572 = vmatpush2.msra.mxu0 0.0
    %1573 = vmatprep.mubr.f32.mxu0 0.0
    %1574 = vmatmul.mubr.f32.gmra.mxu0 %v1507
    %v1575 = vpop.f32.mrf.mxu0
    %v1576 = vadd.f32 0.0, %v1575
    %v1577 = vpop.f32.mrf.mxu0
    %1578 = vdwg.mxu0
    %v1579 = vadd.f32 %v1499, %v1576
    %v1580 = vxor.u32 %v1579, 2147483648
    %v1581 = vmul.f32 %v1580, 1.442695
    %v1582 = vpow.pop %v1581
    %v1583 = vadd.f32 %v1582, 1.0
    %v1584 = vrcp.pop %v1583
    %v1585 = vmul.f32 1.0, %v1584
    %v1586 = vtanh.pop %v1579
    %v1587 = vmul.f32 %v1585, %v1375
    %1589 = vrot.lane.b32.xlu0 %v1586, 32
    %v1590 = vpop.permute.xlu0 %1589
    %v1592 = vmul.f32 %v1585, %v1590
    %1594 = vrot.lane.b32.xlu0 %v1592, 32
    %v1595 = vpop.permute.xlu0 %1594
    %v1597 = vadd.f32 %v1587, %v1595
    %v1598 = vtanh.pop %v1597
    %1600 = vrot.lane.b32.xlu0 %v1598, 32
    %v1601 = vpop.permute.xlu0 %1600
    %v1603 = vmul.f32 %v1585, %v1601
    %v1604 = vsel %vm1016, %v1603, %v1374
    %v1605 = vsel %vm1016, %v1597, %v1375
    %v1606 = vsel %vm1016, %v1603, 0.0
    %1608 = vrot.lane.b32.xlu0 %v1606, 64
    %v1609 = vpop.permute.xlu0 %1608
    %s1611 = scalar_lea.vmem [#allocation4], 40
    %1612 = vst.msk [vmem:[%s1611] sm:$0xff] %vm162, %v1609
    %s1613 = scalar_lea.vmem [#allocation3], 16
    %v1614 = vld [vmem:[%s1613] sm:$0xff]
    %v1615 = vld [vmem:[#allocation12] sm:$0xff]
    %v1616 = vld [vmem:[#allocation12 + $0x8] sm:$0xff]
    %v1617 = vld [vmem:[#allocation12 + $0x10] sm:$0xff]
    %v1618 = vld [vmem:[#allocation12 + $0x18] sm:$0xff]
    %1620 = vrot.lane.b32.xlu0 %v1489, 64
    %v1621 = vpop.permute.xlu0 %1620
    %v1622 = vsel %vm162, %v1621, 0
    %1624 = vmatprep.subr.mxu0 0.0
    %1625 = vmatpush1.msra.mxu0 0.0
    %1626 = vmatprep.subr.mxu0 0.0
    %1627 = vmatpush1.msra.mxu0 0.0
    %1628 = vmatprep.subr.mxu0 0.0
    %1629 = vmatpush1.msra.mxu0 0.0
    %1630 = vmatprep.subr.mxu0 0.0
    %1631 = vmatpush1.msra.mxu0 0.0
    %1632 = vmatprep.subr.mxu0 0.0
    %1633 = vmatpush1.msra.mxu0 0.0
    %1634 = vmatprep.subr.mxu0 0.0
    %1635 = vmatpush1.msra.mxu0 0.0
    %1636 = vmatprep.subr.mxu0 0.0
    %1637 = vmatpush1.msra.mxu0 0.0
    %1638 = vmatprep.subr.mxu0 0.0
    %1639 = vmatpush1.msra.mxu0 0.0
    %1640 = vmatprep.subr.mxu0 0.0
    %1641 = vmatpush1.msra.mxu0 0.0
    %1642 = vmatprep.subr.mxu0 0.0
    %1643 = vmatpush1.msra.mxu0 0.0
    %1644 = vmatprep.subr.mxu0 0.0
    %1645 = vmatpush1.msra.mxu0 0.0
    %1646 = vmatprep.subr.mxu0 0.0
    %1647 = vmatpush1.msra.mxu0 0.0
    %1648 = vmatprep.subr.mxu0 0.0
    %1649 = vmatpush1.msra.mxu0 %v1618
    %1650 = vmatprep.subr.mxu0 0.0
    %1651 = vmatpush1.msra.mxu0 %v1617
    %1652 = vmatprep.subr.mxu0 0.0
    %1653 = vmatpush1.msra.mxu0 %v1616
    %1654 = vmatprep.subr.mxu0 0.0
    %1655 = vmatpush1.msra.mxu0 %v1615
    %1656 = vmatprep.subr.mxu0 0.0
    %1657 = vmatpush2.msra.mxu0 0.0
    %1658 = vmatprep.subr.mxu0 0.0
    %1659 = vmatpush2.msra.mxu0 0.0
    %1660 = vmatprep.subr.mxu0 0.0
    %1661 = vmatpush2.msra.mxu0 0.0
    %1662 = vmatprep.subr.mxu0 0.0
    %1663 = vmatpush2.msra.mxu0 0.0
    %1664 = vmatprep.subr.mxu0 0.0
    %1665 = vmatpush2.msra.mxu0 0.0
    %1666 = vmatprep.subr.mxu0 0.0
    %1667 = vmatpush2.msra.mxu0 0.0
    %1668 = vmatprep.subr.mxu0 0.0
    %1669 = vmatpush2.msra.mxu0 0.0
    %1670 = vmatprep.subr.mxu0 0.0
    %1671 = vmatpush2.msra.mxu0 0.0
    %1672 = vmatprep.subr.mxu0 0.0
    %1673 = vmatpush2.msra.mxu0 0.0
    %1674 = vmatprep.subr.mxu0 0.0
    %1675 = vmatpush2.msra.mxu0 0.0
    %1676 = vmatprep.subr.mxu0 0.0
    %1677 = vmatpush2.msra.mxu0 0.0
    %1678 = vmatprep.subr.mxu0 0.0
    %1679 = vmatpush2.msra.mxu0 0.0
    %1680 = vmatprep.subr.mxu0 0.0
    %1681 = vmatpush2.msra.mxu0 0.0
    %1682 = vmatprep.subr.mxu0 0.0
    %1683 = vmatpush2.msra.mxu0 0.0
    %1684 = vmatprep.subr.mxu0 0.0
    %1685 = vmatpush2.msra.mxu0 0.0
    %1686 = vmatprep.subr.mxu0 0.0
    %1687 = vmatpush2.msra.mxu0 0.0
    %1688 = vmatprep.mubr.f32.mxu0 0.0
    %1689 = vmatmul.mubr.f32.gmra.mxu0 %v1622
    %v1690 = vpop.f32.mrf.mxu0
    %v1691 = vadd.f32 0.0, %v1690
    %v1692 = vpop.f32.mrf.mxu0
    %1693 = vdwg.mxu0
    %v1694 = vadd.f32 %v1614, %v1691
    %v1695 = vxor.u32 %v1694, 2147483648
    %v1696 = vmul.f32 %v1695, 1.442695
    %v1697 = vpow.pop %v1696
    %v1698 = vadd.f32 %v1697, 1.0
    %v1699 = vrcp.pop %v1698
    %v1700 = vmul.f32 1.0, %v1699
    %v1701 = vtanh.pop %v1694
    %v1702 = vmul.f32 %v1700, %v1490
    %1704 = vrot.lane.b32.xlu0 %v1701, 32
    %v1705 = vpop.permute.xlu0 %1704
    %v1707 = vmul.f32 %v1700, %v1705
    %1709 = vrot.lane.b32.xlu0 %v1707, 32
    %v1710 = vpop.permute.xlu0 %1709
    %v1712 = vadd.f32 %v1702, %v1710
    %v1713 = vtanh.pop %v1712
    %1715 = vrot.lane.b32.xlu0 %v1713, 32
    %v1716 = vpop.permute.xlu0 %1715
    %v1718 = vmul.f32 %v1700, %v1716
    %v1719 = vsel %vm895, %v1718, %v1489
    %v1720 = vsel %vm895, %v1712, %v1490
    %v1721 = vsel %vm895, %v1718, 0.0
    %1723 = vrot.lane.b32.xlu0 %v1721, 64
    %v1724 = vpop.permute.xlu0 %1723
    %s1726 = scalar_lea.vmem [#allocation5], 16
    %1727 = vst.msk [vmem:[%s1726] sm:$0xff] %vm162, %v1724
    %s1728 = scalar_lea.vmem [#allocation2], 48
    %v1729 = vld [vmem:[%s1728] sm:$0xff]
    %v1730 = vld [vmem:[#allocation11] sm:$0xff]
    %v1731 = vld [vmem:[#allocation11 + $0x8] sm:$0xff]
    %v1732 = vld [vmem:[#allocation11 + $0x10] sm:$0xff]
    %v1733 = vld [vmem:[#allocation11 + $0x18] sm:$0xff]
    %1735 = vrot.lane.b32.xlu0 %v1604, 64
    %v1736 = vpop.permute.xlu0 %1735
    %v1737 = vsel %vm162, %v1736, 0
    %1739 = vmatprep.subr.mxu0 0.0
    %1740 = vmatpush1.msra.mxu0 0.0
    %1741 = vmatprep.subr.mxu0 0.0
    %1742 = vmatpush1.msra.mxu0 0.0
    %1743 = vmatprep.subr.mxu0 0.0
    %1744 = vmatpush1.msra.mxu0 0.0
    %1745 = vmatprep.subr.mxu0 0.0
    %1746 = vmatpush1.msra.mxu0 0.0
    %1747 = vmatprep.subr.mxu0 0.0
    %1748 = vmatpush1.msra.mxu0 0.0
    %1749 = vmatprep.subr.mxu0 0.0
    %1750 = vmatpush1.msra.mxu0 0.0
    %1751 = vmatprep.subr.mxu0 0.0
    %1752 = vmatpush1.msra.mxu0 0.0
    %1753 = vmatprep.subr.mxu0 0.0
    %1754 = vmatpush1.msra.mxu0 0.0
    %1755 = vmatprep.subr.mxu0 0.0
    %1756 = vmatpush1.msra.mxu0 0.0
    %1757 = vmatprep.subr.mxu0 0.0
    %1758 = vmatpush1.msra.mxu0 0.0
    %1759 = vmatprep.subr.mxu0 0.0
    %1760 = vmatpush1.msra.mxu0 0.0
    %1761 = vmatprep.subr.mxu0 0.0
    %1762 = vmatpush1.msra.mxu0 0.0
    %1763 = vmatprep.subr.mxu0 0.0
    %1764 = vmatpush1.msra.mxu0 %v1733
    %1765 = vmatprep.subr.mxu0 0.0
    %1766 = vmatpush1.msra.mxu0 %v1732
    %1767 = vmatprep.subr.mxu0 0.0
    %1768 = vmatpush1.msra.mxu0 %v1731
    %1769 = vmatprep.subr.mxu0 0.0
    %1770 = vmatpush1.msra.mxu0 %v1730
    %1771 = vmatprep.subr.mxu0 0.0
    %1772 = vmatpush2.msra.mxu0 0.0
    %1773 = vmatprep.subr.mxu0 0.0
    %1774 = vmatpush2.msra.mxu0 0.0
    %1775 = vmatprep.subr.mxu0 0.0
    %1776 = vmatpush2.msra.mxu0 0.0
    %1777 = vmatprep.subr.mxu0 0.0
    %1778 = vmatpush2.msra.mxu0 0.0
    %1779 = vmatprep.subr.mxu0 0.0
    %1780 = vmatpush2.msra.mxu0 0.0
    %1781 = vmatprep.subr.mxu0 0.0
    %1782 = vmatpush2.msra.mxu0 0.0
    %1783 = vmatprep.subr.mxu0 0.0
    %1784 = vmatpush2.msra.mxu0 0.0
    %1785 = vmatprep.subr.mxu0 0.0
    %1786 = vmatpush2.msra.mxu0 0.0
    %1787 = vmatprep.subr.mxu0 0.0
    %1788 = vmatpush2.msra.mxu0 0.0
    %1789 = vmatprep.subr.mxu0 0.0
    %1790 = vmatpush2.msra.mxu0 0.0
    %1791 = vmatprep.subr.mxu0 0.0
    %1792 = vmatpush2.msra.mxu0 0.0
    %1793 = vmatprep.subr.mxu0 0.0
    %1794 = vmatpush2.msra.mxu0 0.0
    %1795 = vmatprep.subr.mxu0 0.0
    %1796 = vmatpush2.msra.mxu0 0.0
    %1797 = vmatprep.subr.mxu0 0.0
    %1798 = vmatpush2.msra.mxu0 0.0
    %1799 = vmatprep.subr.mxu0 0.0
    %1800 = vmatpush2.msra.mxu0 0.0
    %1801 = vmatprep.subr.mxu0 0.0
    %1802 = vmatpush2.msra.mxu0 0.0
    %1803 = vmatprep.mubr.f32.mxu0 0.0
    %1804 = vmatmul.mubr.f32.gmra.mxu0 %v1737
    %v1805 = vpop.f32.mrf.mxu0
    %v1806 = vadd.f32 0.0, %v1805
    %v1807 = vpop.f32.mrf.mxu0
    %1808 = vdwg.mxu0
    %v1809 = vadd.f32 %v1729, %v1806
    %v1810 = vxor.u32 %v1809, 2147483648
    %v1811 = vmul.f32 %v1810, 1.442695
    %v1812 = vpow.pop %v1811
    %v1813 = vadd.f32 %v1812, 1.0
    %v1814 = vrcp.pop %v1813
    %v1815 = vmul.f32 1.0, %v1814
    %v1816 = vtanh.pop %v1809
    %v1817 = vmul.f32 %v1815, %v1605
    %1819 = vrot.lane.b32.xlu0 %v1816, 32
    %v1820 = vpop.permute.xlu0 %1819
    %v1822 = vmul.f32 %v1815, %v1820
    %1824 = vrot.lane.b32.xlu0 %v1822, 32
    %v1825 = vpop.permute.xlu0 %1824
    %v1827 = vadd.f32 %v1817, %v1825
    %v1828 = vtanh.pop %v1827
    %1830 = vrot.lane.b32.xlu0 %v1828, 32
    %v1831 = vpop.permute.xlu0 %1830
    %v1833 = vmul.f32 %v1815, %v1831
    %v1834 = vsel %vm774, %v1833, %v1604
    %v1835 = vsel %vm774, %v1827, %v1605
    %v1836 = vsel %vm774, %v1833, 0.0
    %1838 = vrot.lane.b32.xlu0 %v1836, 64
    %v1839 = vpop.permute.xlu0 %1838
    %s1841 = scalar_lea.vmem [#allocation4], 48
    %1842 = vst.msk [vmem:[%s1841] sm:$0xff] %vm162, %v1839
    %s1843 = scalar_lea.vmem [#allocation3], 8
    %v1844 = vld [vmem:[%s1843] sm:$0xff]
    %v1845 = vld [vmem:[#allocation12] sm:$0xff]
    %v1846 = vld [vmem:[#allocation12 + $0x8] sm:$0xff]
    %v1847 = vld [vmem:[#allocation12 + $0x10] sm:$0xff]
    %v1848 = vld [vmem:[#allocation12 + $0x18] sm:$0xff]
    %1850 = vrot.lane.b32.xlu0 %v1719, 64
    %v1851 = vpop.permute.xlu0 %1850
    %v1852 = vsel %vm162, %v1851, 0
    %1854 = vmatprep.subr.mxu0 0.0
    %1855 = vmatpush1.msra.mxu0 0.0
    %1856 = vmatprep.subr.mxu0 0.0
    %1857 = vmatpush1.msra.mxu0 0.0
    %1858 = vmatprep.subr.mxu0 0.0
    %1859 = vmatpush1.msra.mxu0 0.0
    %1860 = vmatprep.subr.mxu0 0.0
    %1861 = vmatpush1.msra.mxu0 0.0
    %1862 = vmatprep.subr.mxu0 0.0
    %1863 = vmatpush1.msra.mxu0 0.0
    %1864 = vmatprep.subr.mxu0 0.0
    %1865 = vmatpush1.msra.mxu0 0.0
    %1866 = vmatprep.subr.mxu0 0.0
    %1867 = vmatpush1.msra.mxu0 0.0
    %1868 = vmatprep.subr.mxu0 0.0
    %1869 = vmatpush1.msra.mxu0 0.0
    %1870 = vmatprep.subr.mxu0 0.0
    %1871 = vmatpush1.msra.mxu0 0.0
    %1872 = vmatprep.subr.mxu0 0.0
    %1873 = vmatpush1.msra.mxu0 0.0
    %1874 = vmatprep.subr.mxu0 0.0
    %1875 = vmatpush1.msra.mxu0 0.0
    %1876 = vmatprep.subr.mxu0 0.0
    %1877 = vmatpush1.msra.mxu0 0.0
    %1878 = vmatprep.subr.mxu0 0.0
    %1879 = vmatpush1.msra.mxu0 %v1848
    %1880 = vmatprep.subr.mxu0 0.0
    %1881 = vmatpush1.msra.mxu0 %v1847
    %1882 = vmatprep.subr.mxu0 0.0
    %1883 = vmatpush1.msra.mxu0 %v1846
    %1884 = vmatprep.subr.mxu0 0.0
    %1885 = vmatpush1.msra.mxu0 %v1845
    %1886 = vmatprep.subr.mxu0 0.0
    %1887 = vmatpush2.msra.mxu0 0.0
    %1888 = vmatprep.subr.mxu0 0.0
    %1889 = vmatpush2.msra.mxu0 0.0
    %1890 = vmatprep.subr.mxu0 0.0
    %1891 = vmatpush2.msra.mxu0 0.0
    %1892 = vmatprep.subr.mxu0 0.0
    %1893 = vmatpush2.msra.mxu0 0.0
    %1894 = vmatprep.subr.mxu0 0.0
    %1895 = vmatpush2.msra.mxu0 0.0
    %1896 = vmatprep.subr.mxu0 0.0
    %1897 = vmatpush2.msra.mxu0 0.0
    %1898 = vmatprep.subr.mxu0 0.0
    %1899 = vmatpush2.msra.mxu0 0.0
    %1900 = vmatprep.subr.mxu0 0.0
    %1901 = vmatpush2.msra.mxu0 0.0
    %1902 = vmatprep.subr.mxu0 0.0
    %1903 = vmatpush2.msra.mxu0 0.0
    %1904 = vmatprep.subr.mxu0 0.0
    %1905 = vmatpush2.msra.mxu0 0.0
    %1906 = vmatprep.subr.mxu0 0.0
    %1907 = vmatpush2.msra.mxu0 0.0
    %1908 = vmatprep.subr.mxu0 0.0
    %1909 = vmatpush2.msra.mxu0 0.0
    %1910 = vmatprep.subr.mxu0 0.0
    %1911 = vmatpush2.msra.mxu0 0.0
    %1912 = vmatprep.subr.mxu0 0.0
    %1913 = vmatpush2.msra.mxu0 0.0
    %1914 = vmatprep.subr.mxu0 0.0
    %1915 = vmatpush2.msra.mxu0 0.0
    %1916 = vmatprep.subr.mxu0 0.0
    %1917 = vmatpush2.msra.mxu0 0.0
    %1918 = vmatprep.mubr.f32.mxu0 0.0
    %1919 = vmatmul.mubr.f32.gmra.mxu0 %v1852
    %v1920 = vpop.f32.mrf.mxu0
    %v1921 = vadd.f32 0.0, %v1920
    %v1922 = vpop.f32.mrf.mxu0
    %1923 = vdwg.mxu0
    %v1924 = vadd.f32 %v1844, %v1921
    %v1925 = vxor.u32 %v1924, 2147483648
    %v1926 = vmul.f32 %v1925, 1.442695
    %v1927 = vpow.pop %v1926
    %v1928 = vadd.f32 %v1927, 1.0
    %v1929 = vrcp.pop %v1928
    %v1930 = vmul.f32 1.0, %v1929
    %v1931 = vtanh.pop %v1924
    %v1932 = vmul.f32 %v1930, %v1720
    %1934 = vrot.lane.b32.xlu0 %v1931, 32
    %v1935 = vpop.permute.xlu0 %1934
    %v1937 = vmul.f32 %v1930, %v1935
    %1939 = vrot.lane.b32.xlu0 %v1937, 32
    %v1940 = vpop.permute.xlu0 %1939
    %v1942 = vadd.f32 %v1932, %v1940
    %v1943 = vtanh.pop %v1942
    %1945 = vrot.lane.b32.xlu0 %v1943, 32
    %v1946 = vpop.permute.xlu0 %1945
    %v1948 = vmul.f32 %v1930, %v1946
    %v1949 = vsel %vm656, %v1948, %v1719
    %v1950 = vsel %vm656, %v1942, %v1720
    %v1951 = vsel %vm656, %v1948, 0.0
    %1953 = vrot.lane.b32.xlu0 %v1951, 64
    %v1954 = vpop.permute.xlu0 %1953
    %s1956 = scalar_lea.vmem [#allocation5], 8
    %1957 = vst.msk [vmem:[%s1956] sm:$0xff] %vm162, %v1954
    %s1958 = scalar_lea.vmem [#allocation2], 56
    %v1959 = vld [vmem:[%s1958] sm:$0xff]
    %v1960 = vld [vmem:[#allocation11] sm:$0xff]
    %v1961 = vld [vmem:[#allocation11 + $0x8] sm:$0xff]
    %v1962 = vld [vmem:[#allocation11 + $0x10] sm:$0xff]
    %v1963 = vld [vmem:[#allocation11 + $0x18] sm:$0xff]
    %1965 = vrot.lane.b32.xlu0 %v1834, 64
    %v1966 = vpop.permute.xlu0 %1965
    %v1967 = vsel %vm162, %v1966, 0
    %1969 = vmatprep.subr.mxu0 0.0
    %1970 = vmatpush1.msra.mxu0 0.0
    %1971 = vmatprep.subr.mxu0 0.0
    %1972 = vmatpush1.msra.mxu0 0.0
    %1973 = vmatprep.subr.mxu0 0.0
    %1974 = vmatpush1.msra.mxu0 0.0
    %1975 = vmatprep.subr.mxu0 0.0
    %1976 = vmatpush1.msra.mxu0 0.0
    %1977 = vmatprep.subr.mxu0 0.0
    %1978 = vmatpush1.msra.mxu0 0.0
    %1979 = vmatprep.subr.mxu0 0.0
    %1980 = vmatpush1.msra.mxu0 0.0
    %1981 = vmatprep.subr.mxu0 0.0
    %1982 = vmatpush1.msra.mxu0 0.0
    %1983 = vmatprep.subr.mxu0 0.0
    %1984 = vmatpush1.msra.mxu0 0.0
    %1985 = vmatprep.subr.mxu0 0.0
    %1986 = vmatpush1.msra.mxu0 0.0
    %1987 = vmatprep.subr.mxu0 0.0
    %1988 = vmatpush1.msra.mxu0 0.0
    %1989 = vmatprep.subr.mxu0 0.0
    %1990 = vmatpush1.msra.mxu0 0.0
    %1991 = vmatprep.subr.mxu0 0.0
    %1992 = vmatpush1.msra.mxu0 0.0
    %1993 = vmatprep.subr.mxu0 0.0
    %1994 = vmatpush1.msra.mxu0 %v1963
    %1995 = vmatprep.subr.mxu0 0.0
    %1996 = vmatpush1.msra.mxu0 %v1962
    %1997 = vmatprep.subr.mxu0 0.0
    %1998 = vmatpush1.msra.mxu0 %v1961
    %1999 = vmatprep.subr.mxu0 0.0
    %2000 = vmatpush1.msra.mxu0 %v1960
    %2001 = vmatprep.subr.mxu0 0.0
    %2002 = vmatpush2.msra.mxu0 0.0
    %2003 = vmatprep.subr.mxu0 0.0
    %2004 = vmatpush2.msra.mxu0 0.0
    %2005 = vmatprep.subr.mxu0 0.0
    %2006 = vmatpush2.msra.mxu0 0.0
    %2007 = vmatprep.subr.mxu0 0.0
    %2008 = vmatpush2.msra.mxu0 0.0
    %2009 = vmatprep.subr.mxu0 0.0
    %2010 = vmatpush2.msra.mxu0 0.0
    %2011 = vmatprep.subr.mxu0 0.0
    %2012 = vmatpush2.msra.mxu0 0.0
    %2013 = vmatprep.subr.mxu0 0.0
    %2014 = vmatpush2.msra.mxu0 0.0
    %2015 = vmatprep.subr.mxu0 0.0
    %2016 = vmatpush2.msra.mxu0 0.0
    %2017 = vmatprep.subr.mxu0 0.0
    %2018 = vmatpush2.msra.mxu0 0.0
    %2019 = vmatprep.subr.mxu0 0.0
    %2020 = vmatpush2.msra.mxu0 0.0
    %2021 = vmatprep.subr.mxu0 0.0
    %2022 = vmatpush2.msra.mxu0 0.0
    %2023 = vmatprep.subr.mxu0 0.0
    %2024 = vmatpush2.msra.mxu0 0.0
    %2025 = vmatprep.subr.mxu0 0.0
    %2026 = vmatpush2.msra.mxu0 0.0
    %2027 = vmatprep.subr.mxu0 0.0
    %2028 = vmatpush2.msra.mxu0 0.0
    %2029 = vmatprep.subr.mxu0 0.0
    %2030 = vmatpush2.msra.mxu0 0.0
    %2031 = vmatprep.subr.mxu0 0.0
    %2032 = vmatpush2.msra.mxu0 0.0
    %2033 = vmatprep.mubr.f32.mxu0 0.0
    %2034 = vmatmul.mubr.f32.gmra.mxu0 %v1967
    %v2035 = vpop.f32.mrf.mxu0
    %v2036 = vadd.f32 0.0, %v2035
    %v2037 = vpop.f32.mrf.mxu0
    %2038 = vdwg.mxu0
    %v2039 = vadd.f32 %v1959, %v2036
    %v2040 = vxor.u32 %v2039, 2147483648
    %v2041 = vmul.f32 %v2040, 1.442695
    %v2042 = vpow.pop %v2041
    %v2043 = vadd.f32 %v2042, 1.0
    %v2044 = vrcp.pop %v2043
    %v2045 = vmul.f32 1.0, %v2044
    %v2046 = vtanh.pop %v2039
    %v2047 = vmul.f32 %v2045, %v1835
    %2049 = vrot.lane.b32.xlu0 %v2046, 32
    %v2050 = vpop.permute.xlu0 %2049
    %v2052 = vmul.f32 %v2045, %v2050
    %2054 = vrot.lane.b32.xlu0 %v2052, 32
    %v2055 = vpop.permute.xlu0 %2054
    %v2057 = vadd.f32 %v2047, %v2055
    %v2058 = vtanh.pop %v2057
    %2060 = vrot.lane.b32.xlu0 %v2058, 32
    %v2061 = vpop.permute.xlu0 %2060
    %v2063 = vmul.f32 %v2045, %v2061
    %v2064 = vsel %vm539, %v2063, 0.0
    %2066 = vrot.lane.b32.xlu0 %v2064, 64
    %v2067 = vpop.permute.xlu0 %2066
    %s2069 = scalar_lea.vmem [#allocation4], 56
    %2070 = vst.msk [vmem:[%s2069] sm:$0xff] %vm162, %v2067
    %v2071 = vld [vmem:[#allocation3] sm:$0xff]
    %v2072 = vld [vmem:[#allocation12] sm:$0xff]
    %v2073 = vld [vmem:[#allocation12 + $0x8] sm:$0xff]
    %v2074 = vld [vmem:[#allocation12 + $0x10] sm:$0xff]
    %v2075 = vld [vmem:[#allocation12 + $0x18] sm:$0xff]
    %2077 = vrot.lane.b32.xlu0 %v1949, 64
    %v2078 = vpop.permute.xlu0 %2077
    %v2079 = vsel %vm162, %v2078, 0
    %2081 = vmatprep.subr.mxu0 0.0
    %2082 = vmatpush1.msra.mxu0 0.0
    %2083 = vmatprep.subr.mxu0 0.0
    %2084 = vmatpush1.msra.mxu0 0.0
    %2085 = vmatprep.subr.mxu0 0.0
    %2086 = vmatpush1.msra.mxu0 0.0
    %2087 = vmatprep.subr.mxu0 0.0
    %2088 = vmatpush1.msra.mxu0 0.0
    %2089 = vmatprep.subr.mxu0 0.0
    %2090 = vmatpush1.msra.mxu0 0.0
    %2091 = vmatprep.subr.mxu0 0.0
    %2092 = vmatpush1.msra.mxu0 0.0
    %2093 = vmatprep.subr.mxu0 0.0
    %2094 = vmatpush1.msra.mxu0 0.0
    %2095 = vmatprep.subr.mxu0 0.0
    %2096 = vmatpush1.msra.mxu0 0.0
    %2097 = vmatprep.subr.mxu0 0.0
    %2098 = vmatpush1.msra.mxu0 0.0
    %2099 = vmatprep.subr.mxu0 0.0
    %2100 = vmatpush1.msra.mxu0 0.0
    %2101 = vmatprep.subr.mxu0 0.0
    %2102 = vmatpush1.msra.mxu0 0.0
    %2103 = vmatprep.subr.mxu0 0.0
    %2104 = vmatpush1.msra.mxu0 0.0
    %2105 = vmatprep.subr.mxu0 0.0
    %2106 = vmatpush1.msra.mxu0 %v2075
    %2107 = vmatprep.subr.mxu0 0.0
    %2108 = vmatpush1.msra.mxu0 %v2074
    %2109 = vmatprep.subr.mxu0 0.0
    %2110 = vmatpush1.msra.mxu0 %v2073
    %2111 = vmatprep.subr.mxu0 0.0
    %2112 = vmatpush1.msra.mxu0 %v2072
    %2113 = vmatprep.subr.mxu0 0.0
    %2114 = vmatpush2.msra.mxu0 0.0
    %2115 = vmatprep.subr.mxu0 0.0
    %2116 = vmatpush2.msra.mxu0 0.0
    %2117 = vmatprep.subr.mxu0 0.0
    %2118 = vmatpush2.msra.mxu0 0.0
    %2119 = vmatprep.subr.mxu0 0.0
    %2120 = vmatpush2.msra.mxu0 0.0
    %2121 = vmatprep.subr.mxu0 0.0
    %2122 = vmatpush2.msra.mxu0 0.0
    %2123 = vmatprep.subr.mxu0 0.0
    %2124 = vmatpush2.msra.mxu0 0.0
    %2125 = vmatprep.subr.mxu0 0.0
    %2126 = vmatpush2.msra.mxu0 0.0
    %2127 = vmatprep.subr.mxu0 0.0
    %2128 = vmatpush2.msra.mxu0 0.0
    %2129 = vmatprep.subr.mxu0 0.0
    %2130 = vmatpush2.msra.mxu0 0.0
    %2131 = vmatprep.subr.mxu0 0.0
    %2132 = vmatpush2.msra.mxu0 0.0
    %2133 = vmatprep.subr.mxu0 0.0
    %2134 = vmatpush2.msra.mxu0 0.0
    %2135 = vmatprep.subr.mxu0 0.0
    %2136 = vmatpush2.msra.mxu0 0.0
    %2137 = vmatprep.subr.mxu0 0.0
    %2138 = vmatpush2.msra.mxu0 0.0
    %2139 = vmatprep.subr.mxu0 0.0
    %2140 = vmatpush2.msra.mxu0 0.0
    %2141 = vmatprep.subr.mxu0 0.0
    %2142 = vmatpush2.msra.mxu0 0.0
    %2143 = vmatprep.subr.mxu0 0.0
    %2144 = vmatpush2.msra.mxu0 0.0
    %2145 = vmatprep.mubr.f32.mxu0 0.0
    %2146 = vmatmul.mubr.f32.gmra.mxu0 %v2079
    %v2147 = vpop.f32.mrf.mxu0
    %v2148 = vadd.f32 0.0, %v2147
    %v2149 = vpop.f32.mrf.mxu0
    %2150 = vdwg.mxu0
    %v2151 = vadd.f32 %v2071, %v2148
    %v2152 = vxor.u32 %v2151, 2147483648
    %v2153 = vmul.f32 %v2152, 1.442695
    %v2154 = vpow.pop %v2153
    %v2155 = vadd.f32 %v2154, 1.0
    %v2156 = vrcp.pop %v2155
    %v2157 = vmul.f32 1.0, %v2156
    %v2158 = vtanh.pop %v2151
    %v2159 = vmul.f32 %v2157, %v1950
    %2161 = vrot.lane.b32.xlu0 %v2158, 32
    %v2162 = vpop.permute.xlu0 %2161
    %v2164 = vmul.f32 %v2157, %v2162
    %2166 = vrot.lane.b32.xlu0 %v2164, 32
    %v2167 = vpop.permute.xlu0 %2166
    %v2169 = vadd.f32 %v2159, %v2167
    %v2170 = vtanh.pop %v2169
    %2172 = vrot.lane.b32.xlu0 %v2170, 32
    %v2173 = vpop.permute.xlu0 %2172
    %v2175 = vmul.f32 %v2157, %v2173
    %v2176 = vsel %vm425, %v2175, 0.0
    %2178 = vrot.lane.b32.xlu0 %v2176, 64
    %v2179 = vpop.permute.xlu0 %2178
    %2181 = vst.msk [vmem:[#allocation5] sm:$0xff] %vm162, %v2179
    %v2182 = vld [vmem:[#allocation4] sm:$0xff]
    %v2183 = vld [vmem:[#allocation4 + $0x8] sm:$0xff]
    %v2184 = vld [vmem:[#allocation4 + $0x10] sm:$0xff]
    %v2185 = vld [vmem:[#allocation4 + $0x18] sm:$0xff]
    %v2186 = vld [vmem:[#allocation4 + $0x20] sm:$0xff]
    %v2187 = vld [vmem:[#allocation4 + $0x28] sm:$0xff]
    %v2188 = vld [vmem:[#allocation4 + $0x30] sm:$0xff]
    %v2189 = vld [vmem:[#allocation4 + $0x38] sm:$0xff]
    %v2190 = vld [vmem:[#allocation5] sm:$0xff]
    %v2191 = vld [vmem:[#allocation5 + $0x8] sm:$0xff]
    %v2192 = vld [vmem:[#allocation5 + $0x10] sm:$0xff]
    %v2193 = vld [vmem:[#allocation5 + $0x18] sm:$0xff]
    %v2194 = vld [vmem:[#allocation5 + $0x20] sm:$0xff]
    %v2195 = vld [vmem:[#allocation5 + $0x28] sm:$0xff]
    %v2196 = vld [vmem:[#allocation5 + $0x30] sm:$0xff]
    %v2197 = vld [vmem:[#allocation5 + $0x38] sm:$0xff]
    %v2198 = vld [vmem:[#allocation14] sm:$0xff]
    %v2199 = vld [vmem:[#allocation14 + $0x8] sm:$0xff]
    %v2200 = vld [vmem:[#allocation14 + $0x10] sm:$0xff]
    %v2201 = vld [vmem:[#allocation14 + $0x18] sm:$0xff]
    %v2202 = vld [vmem:[#allocation15] sm:$0xff]
    %v2203 = vld [vmem:[#allocation15 + $0x8] sm:$0xff]
    %v2204 = vld [vmem:[#allocation15 + $0x10] sm:$0xff]
    %v2205 = vld [vmem:[#allocation15 + $0x18] sm:$0xff]
    %v2207 = vsel %vm162, %v2190, 0
    %v2210 = vsel %vm162, %v2191, 0
    %v2213 = vsel %vm162, %v2192, 0
    %v2216 = vsel %vm162, %v2193, 0
    %v2219 = vsel %vm162, %v2194, 0
    %v2222 = vsel %vm162, %v2195, 0
    %v2225 = vsel %vm162, %v2196, 0
    %v2228 = vsel %vm162, %v2197, 0
    %2230 = vmatprep.subr.mxu0 0.0
    %2231 = vmatpush1.msra.mxu0 0.0
    %2232 = vmatprep.subr.mxu0 0.0
    %2233 = vmatpush1.msra.mxu0 0.0
    %2234 = vmatprep.subr.mxu0 0.0
    %2235 = vmatpush1.msra.mxu0 0.0
    %2236 = vmatprep.subr.mxu0 0.0
    %2237 = vmatpush1.msra.mxu0 0.0
    %2238 = vmatprep.subr.mxu0 0.0
    %2239 = vmatpush1.msra.mxu0 0.0
    %2240 = vmatprep.subr.mxu0 0.0
    %2241 = vmatpush1.msra.mxu0 0.0
    %2242 = vmatprep.subr.mxu0 0.0
    %2243 = vmatpush1.msra.mxu0 0.0
    %2244 = vmatprep.subr.mxu0 0.0
    %2245 = vmatpush1.msra.mxu0 0.0
    %2246 = vmatprep.subr.mxu0 0.0
    %2247 = vmatpush1.msra.mxu0 0.0
    %2248 = vmatprep.subr.mxu0 0.0
    %2249 = vmatpush1.msra.mxu0 0.0
    %2250 = vmatprep.subr.mxu0 0.0
    %2251 = vmatpush1.msra.mxu0 0.0
    %2252 = vmatprep.subr.mxu0 0.0
    %2253 = vmatpush1.msra.mxu0 0.0
    %2254 = vmatprep.subr.mxu0 0.0
    %2255 = vmatpush1.msra.mxu0 %v2205
    %2256 = vmatprep.subr.mxu0 0.0
    %2257 = vmatpush1.msra.mxu0 %v2204
    %2258 = vmatprep.subr.mxu0 0.0
    %2259 = vmatpush1.msra.mxu0 %v2203
    %2260 = vmatprep.subr.mxu0 0.0
    %2261 = vmatpush1.msra.mxu0 %v2202
    %2262 = vmatprep.subr.mxu0 0.0
    %2263 = vmatpush2.msra.mxu0 0.0
    %2264 = vmatprep.subr.mxu0 0.0
    %2265 = vmatpush2.msra.mxu0 0.0
    %2266 = vmatprep.subr.mxu0 0.0
    %2267 = vmatpush2.msra.mxu0 0.0
    %2268 = vmatprep.subr.mxu0 0.0
    %2269 = vmatpush2.msra.mxu0 0.0
    %2270 = vmatprep.subr.mxu0 0.0
    %2271 = vmatpush2.msra.mxu0 0.0
    %2272 = vmatprep.subr.mxu0 0.0
    %2273 = vmatpush2.msra.mxu0 0.0
    %2274 = vmatprep.subr.mxu0 0.0
    %2275 = vmatpush2.msra.mxu0 0.0
    %2276 = vmatprep.subr.mxu0 0.0
    %2277 = vmatpush2.msra.mxu0 0.0
    %2278 = vmatprep.subr.mxu0 0.0
    %2279 = vmatpush2.msra.mxu0 0.0
    %2280 = vmatprep.subr.mxu0 0.0
    %2281 = vmatpush2.msra.mxu0 0.0
    %2282 = vmatprep.subr.mxu0 0.0
    %2283 = vmatpush2.msra.mxu0 0.0
    %2284 = vmatprep.subr.mxu0 0.0
    %2285 = vmatpush2.msra.mxu0 0.0
    %2286 = vmatprep.subr.mxu0 0.0
    %2287 = vmatpush2.msra.mxu0 0.0
    %2288 = vmatprep.subr.mxu0 0.0
    %2289 = vmatpush2.msra.mxu0 0.0
    %2290 = vmatprep.subr.mxu0 0.0
    %2291 = vmatpush2.msra.mxu0 0.0
    %2292 = vmatprep.subr.mxu0 0.0
    %2293 = vmatpush2.msra.mxu0 0.0
    %2294 = vmatprep.mubr.f32.mxu0 0.0
    %2295 = vmatmul.mubr.f32.gmra.mxu0 %v2207
    %v2296 = vpop.f32.mrf.mxu0
    %v2297 = vadd.f32 0.0, %v2296
    %v2298 = vpop.f32.mrf.mxu0
    %2299 = vmatprep.mubr.f32.mxu0 0.0
    %2300 = vmatmul.mubr.f32.gmra.mxu0 %v2210
    %v2301 = vpop.f32.mrf.mxu0
    %v2302 = vadd.f32 0.0, %v2301
    %v2303 = vpop.f32.mrf.mxu0
    %2304 = vmatprep.mubr.f32.mxu0 0.0
    %2305 = vmatmul.mubr.f32.gmra.mxu0 %v2213
    %v2306 = vpop.f32.mrf.mxu0
    %v2307 = vadd.f32 0.0, %v2306
    %v2308 = vpop.f32.mrf.mxu0
    %2309 = vmatprep.mubr.f32.mxu0 0.0
    %2310 = vmatmul.mubr.f32.gmra.mxu0 %v2216
    %v2311 = vpop.f32.mrf.mxu0
    %v2312 = vadd.f32 0.0, %v2311
    %v2313 = vpop.f32.mrf.mxu0
    %2314 = vmatprep.mubr.f32.mxu0 0.0
    %2315 = vmatmul.mubr.f32.gmra.mxu0 %v2219
    %v2316 = vpop.f32.mrf.mxu0
    %v2317 = vadd.f32 0.0, %v2316
    %v2318 = vpop.f32.mrf.mxu0
    %2319 = vmatprep.mubr.f32.mxu0 0.0
    %2320 = vmatmul.mubr.f32.gmra.mxu0 %v2222
    %v2321 = vpop.f32.mrf.mxu0
    %v2322 = vadd.f32 0.0, %v2321
    %v2323 = vpop.f32.mrf.mxu0
    %2324 = vmatprep.mubr.f32.mxu0 0.0
    %2325 = vmatmul.mubr.f32.gmra.mxu0 %v2225
    %v2326 = vpop.f32.mrf.mxu0
    %v2327 = vadd.f32 0.0, %v2326
    %v2328 = vpop.f32.mrf.mxu0
    %2329 = vmatprep.mubr.f32.mxu0 0.0
    %2330 = vmatmul.mubr.f32.gmra.mxu0 %v2228
    %v2331 = vpop.f32.mrf.mxu0
    %v2332 = vadd.f32 0.0, %v2331
    %v2333 = vpop.f32.mrf.mxu0
    %2334 = vdwg.mxu0
    %v2336 = vsel %vm162, %v2182, 0
    %v2339 = vsel %vm162, %v2183, 0
    %v2342 = vsel %vm162, %v2184, 0
    %v2345 = vsel %vm162, %v2185, 0
    %v2348 = vsel %vm162, %v2186, 0
    %v2351 = vsel %vm162, %v2187, 0
    %v2354 = vsel %vm162, %v2188, 0
    %v2357 = vsel %vm162, %v2189, 0
    %2359 = vmatprep.subr.mxu0 0.0
    %2360 = vmatpush1.msra.mxu0 0.0
    %2361 = vmatprep.subr.mxu0 0.0
    %2362 = vmatpush1.msra.mxu0 0.0
    %2363 = vmatprep.subr.mxu0 0.0
    %2364 = vmatpush1.msra.mxu0 0.0
    %2365 = vmatprep.subr.mxu0 0.0
    %2366 = vmatpush1.msra.mxu0 0.0
    %2367 = vmatprep.subr.mxu0 0.0
    %2368 = vmatpush1.msra.mxu0 0.0
    %2369 = vmatprep.subr.mxu0 0.0
    %2370 = vmatpush1.msra.mxu0 0.0
    %2371 = vmatprep.subr.mxu0 0.0
    %2372 = vmatpush1.msra.mxu0 0.0
    %2373 = vmatprep.subr.mxu0 0.0
    %2374 = vmatpush1.msra.mxu0 0.0
    %2375 = vmatprep.subr.mxu0 0.0
    %2376 = vmatpush1.msra.mxu0 0.0
    %2377 = vmatprep.subr.mxu0 0.0
    %2378 = vmatpush1.msra.mxu0 0.0
    %2379 = vmatprep.subr.mxu0 0.0
    %2380 = vmatpush1.msra.mxu0 0.0
    %2381 = vmatprep.subr.mxu0 0.0
    %2382 = vmatpush1.msra.mxu0 0.0
    %2383 = vmatprep.subr.mxu0 0.0
    %2384 = vmatpush1.msra.mxu0 %v2201
    %2385 = vmatprep.subr.mxu0 0.0
    %2386 = vmatpush1.msra.mxu0 %v2200
    %2387 = vmatprep.subr.mxu0 0.0
    %2388 = vmatpush1.msra.mxu0 %v2199
    %2389 = vmatprep.subr.mxu0 0.0
    %2390 = vmatpush1.msra.mxu0 %v2198
    %2391 = vmatprep.subr.mxu0 0.0
    %2392 = vmatpush2.msra.mxu0 0.0
    %2393 = vmatprep.subr.mxu0 0.0
    %2394 = vmatpush2.msra.mxu0 0.0
    %2395 = vmatprep.subr.mxu0 0.0
    %2396 = vmatpush2.msra.mxu0 0.0
    %2397 = vmatprep.subr.mxu0 0.0
    %2398 = vmatpush2.msra.mxu0 0.0
    %2399 = vmatprep.subr.mxu0 0.0
    %2400 = vmatpush2.msra.mxu0 0.0
    %2401 = vmatprep.subr.mxu0 0.0
    %2402 = vmatpush2.msra.mxu0 0.0
    %2403 = vmatprep.subr.mxu0 0.0
    %2404 = vmatpush2.msra.mxu0 0.0
    %2405 = vmatprep.subr.mxu0 0.0
    %2406 = vmatpush2.msra.mxu0 0.0
    %2407 = vmatprep.subr.mxu0 0.0
    %2408 = vmatpush2.msra.mxu0 0.0
    %2409 = vmatprep.subr.mxu0 0.0
    %2410 = vmatpush2.msra.mxu0 0.0
    %2411 = vmatprep.subr.mxu0 0.0
    %2412 = vmatpush2.msra.mxu0 0.0
    %2413 = vmatprep.subr.mxu0 0.0
    %2414 = vmatpush2.msra.mxu0 0.0
    %2415 = vmatprep.subr.mxu0 0.0
    %2416 = vmatpush2.msra.mxu0 0.0
    %2417 = vmatprep.subr.mxu0 0.0
    %2418 = vmatpush2.msra.mxu0 0.0
    %2419 = vmatprep.subr.mxu0 0.0
    %2420 = vmatpush2.msra.mxu0 0.0
    %2421 = vmatprep.subr.mxu0 0.0
    %2422 = vmatpush2.msra.mxu0 0.0
    %2423 = vmatprep.mubr.f32.mxu0 0.0
    %2424 = vmatmul.mubr.f32.gmra.mxu0 %v2336
    %v2425 = vpop.f32.mrf.mxu0
    %v2426 = vadd.f32 %v2297, %v2425
    %v2427 = vpop.f32.mrf.mxu0
    %2428 = vmatprep.mubr.f32.mxu0 0.0
    %2429 = vmatmul.mubr.f32.gmra.mxu0 %v2339
    %v2430 = vpop.f32.mrf.mxu0
    %v2431 = vadd.f32 %v2302, %v2430
    %v2432 = vpop.f32.mrf.mxu0
    %2433 = vmatprep.mubr.f32.mxu0 0.0
    %2434 = vmatmul.mubr.f32.gmra.mxu0 %v2342
    %v2435 = vpop.f32.mrf.mxu0
    %v2436 = vadd.f32 %v2307, %v2435
    %v2437 = vpop.f32.mrf.mxu0
    %2438 = vmatprep.mubr.f32.mxu0 0.0
    %2439 = vmatmul.mubr.f32.gmra.mxu0 %v2345
    %v2440 = vpop.f32.mrf.mxu0
    %v2441 = vadd.f32 %v2312, %v2440
    %v2442 = vpop.f32.mrf.mxu0
    %2443 = vmatprep.mubr.f32.mxu0 0.0
    %2444 = vmatmul.mubr.f32.gmra.mxu0 %v2348
    %v2445 = vpop.f32.mrf.mxu0
    %v2446 = vadd.f32 %v2317, %v2445
    %v2447 = vpop.f32.mrf.mxu0
    %2448 = vmatprep.mubr.f32.mxu0 0.0
    %2449 = vmatmul.mubr.f32.gmra.mxu0 %v2351
    %v2450 = vpop.f32.mrf.mxu0
    %v2451 = vadd.f32 %v2322, %v2450
    %v2452 = vpop.f32.mrf.mxu0
    %2453 = vmatprep.mubr.f32.mxu0 0.0
    %2454 = vmatmul.mubr.f32.gmra.mxu0 %v2354
    %v2455 = vpop.f32.mrf.mxu0
    %v2456 = vadd.f32 %v2327, %v2455
    %v2457 = vpop.f32.mrf.mxu0
    %2458 = vmatprep.mubr.f32.mxu0 0.0
    %2459 = vmatmul.mubr.f32.gmra.mxu0 %v2357
    %v2460 = vpop.f32.mrf.mxu0
    %v2461 = vadd.f32 %v2332, %v2460
    %v2462 = vpop.f32.mrf.mxu0
    %2463 = vdwg.mxu0
    %v2464 = vld [vmem:[%s8] sm:$0x1]
    %v2466 = vlaneseq
    %v2467 = vshrl.u32 %v2466, 7
    %v2468 = vsub.s32 0, %v2467
    %v2469 = vrot.slane %v2464, %v2468
    %v2471 = vadd.f32 %v2426, %v2469
    %v2472 = vadd.f32 %v2431, %v2469
    %v2473 = vadd.f32 %v2436, %v2469
    %v2474 = vadd.f32 %v2441, %v2469
    %v2475 = vadd.f32 %v2446, %v2469
    %v2476 = vadd.f32 %v2451, %v2469
    %v2477 = vadd.f32 %v2456, %v2469
    %v2478 = vadd.f32 %v2461, %v2469
    %v2479 = vmax.f32 %v2471, 0.0
    %v2480 = vmax.f32 %v2472, 0.0
    %v2481 = vmax.f32 %v2473, 0.0
    %v2482 = vmax.f32 %v2474, 0.0
    %v2483 = vmax.f32 %v2475, 0.0
    %v2484 = vmax.f32 %v2476, 0.0
    %v2485 = vmax.f32 %v2477, 0.0
    %v2486 = vmax.f32 %v2478, 0.0
    %v2487 = vld [vmem:[#allocation17] sm:$0xff]
    %v2488 = vld [vmem:[#allocation17 + $0x8] sm:$0xff]
    %v2489 = vld [vmem:[#allocation17 + $0x10] sm:$0xff]
    %v2490 = vld [vmem:[#allocation17 + $0x18] sm:$0xff]
    %v2491 = vld [vmem:[%s10] sm:$0x1]
    %v2493 = vlaneseq
    %v2494 = vshrl.u32 %v2493, 7
    %v2495 = vsub.s32 0, %v2494
    %v2496 = vrot.slane %v2491, %v2495
    %v2499 = vsel %vm162, %v2479, 0
    %v2502 = vsel %vm162, %v2480, 0
    %v2505 = vsel %vm162, %v2481, 0
    %v2508 = vsel %vm162, %v2482, 0
    %v2511 = vsel %vm162, %v2483, 0
    %v2514 = vsel %vm162, %v2484, 0
    %v2517 = vsel %vm162, %v2485, 0
    %v2520 = vsel %vm162, %v2486, 0
    %2522 = vmatprep.subr.mxu0 0.0
    %2523 = vmatpush1.msra.mxu0 0.0
    %2524 = vmatprep.subr.mxu0 0.0
    %2525 = vmatpush1.msra.mxu0 0.0
    %2526 = vmatprep.subr.mxu0 0.0
    %2527 = vmatpush1.msra.mxu0 0.0
    %2528 = vmatprep.subr.mxu0 0.0
    %2529 = vmatpush1.msra.mxu0 0.0
    %2530 = vmatprep.subr.mxu0 0.0
    %2531 = vmatpush1.msra.mxu0 0.0
    %2532 = vmatprep.subr.mxu0 0.0
    %2533 = vmatpush1.msra.mxu0 0.0
    %2534 = vmatprep.subr.mxu0 0.0
    %2535 = vmatpush1.msra.mxu0 0.0
    %2536 = vmatprep.subr.mxu0 0.0
    %2537 = vmatpush1.msra.mxu0 0.0
    %2538 = vmatprep.subr.mxu0 0.0
    %2539 = vmatpush1.msra.mxu0 0.0
    %2540 = vmatprep.subr.mxu0 0.0
    %2541 = vmatpush1.msra.mxu0 0.0
    %2542 = vmatprep.subr.mxu0 0.0
    %2543 = vmatpush1.msra.mxu0 0.0
    %2544 = vmatprep.subr.mxu0 0.0
    %2545 = vmatpush1.msra.mxu0 0.0
    %2546 = vmatprep.subr.mxu0 0.0
    %2547 = vmatpush1.msra.mxu0 %v2490
    %2548 = vmatprep.subr.mxu0 0.0
    %2549 = vmatpush1.msra.mxu0 %v2489
    %2550 = vmatprep.subr.mxu0 0.0
    %2551 = vmatpush1.msra.mxu0 %v2488
    %2552 = vmatprep.subr.mxu0 0.0
    %2553 = vmatpush1.msra.mxu0 %v2487
    %2554 = vmatprep.subr.mxu0 0.0
    %2555 = vmatpush2.msra.mxu0 0.0
    %2556 = vmatprep.subr.mxu0 0.0
    %2557 = vmatpush2.msra.mxu0 0.0
    %2558 = vmatprep.subr.mxu0 0.0
    %2559 = vmatpush2.msra.mxu0 0.0
    %2560 = vmatprep.subr.mxu0 0.0
    %2561 = vmatpush2.msra.mxu0 0.0
    %2562 = vmatprep.subr.mxu0 0.0
    %2563 = vmatpush2.msra.mxu0 0.0
    %2564 = vmatprep.subr.mxu0 0.0
    %2565 = vmatpush2.msra.mxu0 0.0
    %2566 = vmatprep.subr.mxu0 0.0
    %2567 = vmatpush2.msra.mxu0 0.0
    %2568 = vmatprep.subr.mxu0 0.0
    %2569 = vmatpush2.msra.mxu0 0.0
    %2570 = vmatprep.subr.mxu0 0.0
    %2571 = vmatpush2.msra.mxu0 0.0
    %2572 = vmatprep.subr.mxu0 0.0
    %2573 = vmatpush2.msra.mxu0 0.0
    %2574 = vmatprep.subr.mxu0 0.0
    %2575 = vmatpush2.msra.mxu0 0.0
    %2576 = vmatprep.subr.mxu0 0.0
    %2577 = vmatpush2.msra.mxu0 0.0
    %2578 = vmatprep.subr.mxu0 0.0
    %2579 = vmatpush2.msra.mxu0 0.0
    %2580 = vmatprep.subr.mxu0 0.0
    %2581 = vmatpush2.msra.mxu0 0.0
    %2582 = vmatprep.subr.mxu0 0.0
    %2583 = vmatpush2.msra.mxu0 0.0
    %2584 = vmatprep.subr.mxu0 0.0
    %2585 = vmatpush2.msra.mxu0 0.0
    %2586 = vmatprep.mubr.f32.mxu0 0.0
    %2587 = vmatmul.mubr.f32.gmra.mxu0 %v2499
    %v2588 = vpop.f32.mrf.mxu0
    %v2589 = vadd.f32 %v2496, %v2588
    %v2590 = vpop.f32.mrf.mxu0
    %2591 = vmatprep.mubr.f32.mxu0 0.0
    %2592 = vmatmul.mubr.f32.gmra.mxu0 %v2502
    %v2593 = vpop.f32.mrf.mxu0
    %v2594 = vadd.f32 %v2496, %v2593
    %v2595 = vpop.f32.mrf.mxu0
    %2596 = vmatprep.mubr.f32.mxu0 0.0
    %2597 = vmatmul.mubr.f32.gmra.mxu0 %v2505
    %v2598 = vpop.f32.mrf.mxu0
    %v2599 = vadd.f32 %v2496, %v2598
    %v2600 = vpop.f32.mrf.mxu0
    %2601 = vmatprep.mubr.f32.mxu0 0.0
    %2602 = vmatmul.mubr.f32.gmra.mxu0 %v2508
    %v2603 = vpop.f32.mrf.mxu0
    %v2604 = vadd.f32 %v2496, %v2603
    %v2605 = vpop.f32.mrf.mxu0
    %2606 = vmatprep.mubr.f32.mxu0 0.0
    %2607 = vmatmul.mubr.f32.gmra.mxu0 %v2511
    %v2608 = vpop.f32.mrf.mxu0
    %v2609 = vadd.f32 %v2496, %v2608
    %v2610 = vpop.f32.mrf.mxu0
    %2611 = vmatprep.mubr.f32.mxu0 0.0
    %2612 = vmatmul.mubr.f32.gmra.mxu0 %v2514
    %v2613 = vpop.f32.mrf.mxu0
    %v2614 = vadd.f32 %v2496, %v2613
    %v2615 = vpop.f32.mrf.mxu0
    %2616 = vmatprep.mubr.f32.mxu0 0.0
    %2617 = vmatmul.mubr.f32.gmra.mxu0 %v2517
    %v2618 = vpop.f32.mrf.mxu0
    %v2619 = vadd.f32 %v2496, %v2618
    %v2620 = vpop.f32.mrf.mxu0
    %2621 = vmatprep.mubr.f32.mxu0 0.0
    %2622 = vmatmul.mubr.f32.gmra.mxu0 %v2520
    %v2623 = vpop.f32.mrf.mxu0
    %v2624 = vadd.f32 %v2496, %v2623
    %v2625 = vpop.f32.mrf.mxu0
    %2626 = vdwg.mxu0
    %2627 = vst [vmem:[#allocation18] sm:$0xff] %v2589
    %2628 = vst [vmem:[#allocation18 + $0x8] sm:$0xff] %v2594
    %2629 = vst [vmem:[#allocation18 + $0x10] sm:$0xff] %v2599
    %2630 = vst [vmem:[#allocation18 + $0x18] sm:$0xff] %v2604
    %2631 = vst [vmem:[#allocation18 + $0x20] sm:$0xff] %v2609
    %2632 = vst [vmem:[#allocation18 + $0x28] sm:$0xff] %v2614
    %2633 = vst [vmem:[#allocation18 + $0x30] sm:$0xff] %v2619
    %2634 = vst [vmem:[#allocation18 + $0x38] sm:$0xff] %v2624
    // Predicated region
    $region74: #{tpu_custom_call.1} parent=1 // pred_check
      _
    $region75: #{tpu_custom_call.1} parent=1 // pred_check_branch
      %2636 = sbr.rel (0) target = $region77
    $region76: #{tpu_custom_call.1} parent=1 // pred_region
      %s2638 = ssub.s32 1024, 1024
      %2639 = vsyncadd [#allocation8], %s2638
      %s2640 = sshll.u32 [#allocation18], 4
      %s2641 = int_to_ptr.vmem [resolvable:$true] %s2640
      %2646 = dma.vmem_to_hbm [thread:$0]  %s2641, 1024, %s11, [#allocation8], 128, 128, 8
    $region77: #{tpu_custom_call.1} parent=1 // pred_fallthru
      _
    // Predicated region
    $region78: #{tpu_custom_call.1} parent=1 // pred_check
      _
    $region79: #{tpu_custom_call.1} parent=1 // pred_check_branch
      %2648 = sbr.rel (0) target = $region81
    $region80: #{tpu_custom_call.1} parent=1 // pred_region
      %2649 = dma.done [#allocation8], 1024
    $region81: #{tpu_custom_call.1} parent=1 // pred_fallthru
      _
    %2650 = vsyncpa [#allocation7], 1
    %2651 = vsyncpa [#allocation10], 1
    %2652 = vsyncpa [#allocation13], 1
    %2653 = vsyncpa [#allocation16], 1
    %2654 = vsyncpa [#allocation8], 1

</llo_original>
